<compile_context>
chip_gen: v6e
topology: v6e:2x2x1
jax: 0.10.0
libtpu: 0.0.40
codegen_flags: <defaults>
</compile_context>

<pallas_src>
import math

import jax
import jax.numpy as jnp
from jax.experimental import pallas as pl
from jax.experimental.pallas import tpu as pltpu


# ----------------------------- Pallas kernel -----------------------------

def actor_kernel(x_ref, hin_ref,
                 wih0_ref, whh0_ref, bx0_ref, bhn0_ref,
                 wih1_ref, whh1_ref, bin1_ref, bh1_ref,
                 wl_ref, bl_ref,
                 y_ref, hout_ref):
    TB = x_ref.shape[0]
    H = whh0_ref.shape[0]
    B = hin_ref.shape[0] // 2
    T = TB // B
    f32 = jnp.float32

    # Recurrent weights stay resident as values for the whole kernel.
    whh0 = whh0_ref[...]
    wih1 = wih1_ref[...]
    whh1 = whh1_ref[...]

    # Biases broadcast once, outside the unrolled loop.
    bhn0 = jnp.broadcast_to(bhn0_ref[...], (B, H))        # layer-0 n-gate hidden bias
    bin1 = jnp.broadcast_to(bin1_ref[...], (B, H))        # layer-1 n-gate input bias
    bh1 = jnp.broadcast_to(bh1_ref[...], (B, 3 * H))      # layer-1 fused hidden-side bias

    # Hoisted layer-0 input projection: one (T*B, IN) @ (IN, 3H) matmul with
    # the fused bias (b_ih0 + b_hh0[r,z]) added once, off the serial chain.
    gx0_all = (jnp.dot(x_ref[...].astype(f32), wih0_ref[...],
                       preferred_element_type=f32)
               + jnp.broadcast_to(bx0_ref[...], (TB, 3 * H)))

    hin = hin_ref[...].astype(f32)
    h0 = hin[:B]
    h1 = hin[B:]

    h1_steps = []
    # T is a small compile-time constant; fully unrolled so the VLIW scheduler
    # can overlap adjacent steps.
    # TODO(synk): for large T switch to lax.fori_loop(..., unroll=2..4) with a
    # (T, B, H) VMEM scratch to bound vreg live ranges.
    for t in range(T):
        gx0 = gx0_all[t * B:(t + 1) * B, :]
        # gh1 depends only on the previous step's h1 -> schedulable early,
        # overlapping with the layer-0 cell below.
        gh1 = jnp.dot(h1, whh1, preferred_element_type=f32) + bh1

        # ----- layer 0 GRU cell -----
        gh0 = jnp.dot(h0, whh0, preferred_element_type=f32)
        rz0 = jax.nn.sigmoid(gx0[:, :2 * H] + gh0[:, :2 * H])  # one EUP pass for r|z
        r0 = rz0[:, :H]
        z0 = rz0[:, H:]
        n0 = jnp.tanh(gx0[:, 2 * H:] + r0 * (gh0[:, 2 * H:] + bhn0))
        h0 = (1.0 - z0) * n0 + z0 * h0

        # ----- layer 1 GRU cell -----
        gx1 = jnp.dot(h0, wih1, preferred_element_type=f32)
        rz1 = jax.nn.sigmoid(gx1[:, :2 * H] + gh1[:, :2 * H])
        r1 = rz1[:, :H]
        z1 = rz1[:, H:]
        n1 = jnp.tanh(gx1[:, 2 * H:] + bin1 + r1 * gh1[:, 2 * H:])
        h1 = (1.0 - z1) * n1 + z1 * h1

        h1_steps.append(h1)

    # Final hidden state: one contiguous (2B, H) store.
    hout_ref[...] = jnp.concatenate([h0, h1], axis=0).astype(hout_ref.dtype)

    # Hoisted output head: per-step hidden states collected in registers,
    # concatenated once, then a single matmul + tanh.  The head weight is
    # zero-padded to 128 lanes so the result store is unmasked/lane-dense.
    h1_all = jnp.concatenate(h1_steps, axis=0)              # (T*B, H)
    y = jnp.tanh(jnp.dot(h1_all, wl_ref[...], preferred_element_type=f32)
                 + jnp.broadcast_to(bl_ref[...], (TB, wl_ref.shape[1])))
    y_ref[...] = y.astype(y_ref.dtype)


# ------------------------------ wrapper -----------------------------------

def actor_forward(x, hidden_in, params, return_hidden=True):
    T, B, IN = x.shape
    H = params["w_hh0"].shape[0]
    A = params["w_l1"].shape[1]
    AP = ((A + 127) // 128) * 128            # lane-padded head width

    if hidden_in is None:
        hidden_in = jnp.zeros((2, B, H), x.dtype)

    # ---- wrapper-side bias fusion / weight padding (tiny, one-time) -------
    b_ih0, b_hh0 = params["b_ih0"], params["b_hh0"]
    b_ih1, b_hh1 = params["b_ih1"], params["b_hh1"]
    # layer 0: fold b_ih0 (all gates) + b_hh0 (r,z) into the hoisted input
    # projection; keep b_hh0_n separate (it lives inside the r* term).
    bx0 = jnp.concatenate([b_ih0[:, :2 * H] + b_hh0[:, :2 * H],
                           b_ih0[:, 2 * H:]], axis=1)            # (1, 3H)
    bhn0 = b_hh0[:, 2 * H:]                                      # (1, H)
    # layer 1: fold the r,z biases (both sides) + b_hh1_n into the h-side
    # matmul (it only depends on the previous step, so it is off the critical
    # path); keep b_ih1_n separate.
    bh1 = jnp.concatenate([b_ih1[:, :2 * H] + b_hh1[:, :2 * H],
                           b_hh1[:, 2 * H:]], axis=1)            # (1, 3H)
    bin1 = b_ih1[:, 2 * H:]                                      # (1, H)
    # head: zero-pad the output dim to a full 128-lane block.
    wl_pad = jnp.zeros((H, AP), params["w_l1"].dtype).at[:, :A].set(params["w_l1"])
    bl_pad = jnp.zeros((1, AP), params["b_l1"].dtype).at[:, :A].set(params["b_l1"])

    vmem = lambda: pl.BlockSpec(memory_space=pltpu.MemorySpace.VMEM)

    y_pad, h_flat = pl.pallas_call(
        actor_kernel,
        out_shape=(jax.ShapeDtypeStruct((T * B, AP), x.dtype),
                   jax.ShapeDtypeStruct((2 * B, H), x.dtype)),
        in_specs=[vmem() for _ in range(12)],
        out_specs=(vmem(), vmem()),
    )(x.reshape(T * B, IN), hidden_in.reshape(2 * B, H),
      params["w_ih0"], params["w_hh0"], bx0, bhn0,
      params["w_ih1"], params["w_hh1"], bin1, bh1,
      wl_pad, bl_pad)

    y = y_pad[:, :A].reshape(T, B, A)
    h_out = h_flat.reshape(2, B, H)
    if return_hidden:
        return y, h_out
    return y


# -------------------------- pure-JAX reference -----------------------------

def _ref_cell(x_t, h, w_ih, w_hh, b_ih, b_hh):
    H = h.shape[-1]
    gx = x_t @ w_ih + b_ih[0]
    gh = h @ w_hh + b_hh[0]
    r = jax.nn.sigmoid(gx[:, :H] + gh[:, :H])
    z = jax.nn.sigmoid(gx[:, H:2 * H] + gh[:, H:2 * H])
    n = jnp.tanh(gx[:, 2 * H:] + r * gh[:, 2 * H:])
    return (1.0 - z) * n + z * h


def actor_reference(x, hidden_in, params):
    def step(h, x_t):
        h0 = _ref_cell(x_t, h[0], params["w_ih0"], params["w_hh0"],
                       params["b_ih0"], params["b_hh0"])
        h1 = _ref_cell(h0, h[1], params["w_ih1"], params["w_hh1"],
                       params["b_ih1"], params["b_hh1"])
        y = jnp.tanh(h1 @ params["w_l1"] + params["b_l1"][0])
        return jnp.stack([h0, h1]), y

    h_final, ys = jax.lax.scan(step, hidden_in, x)
    return ys, h_final


# ------------------------------ params -------------------------------------

def init_params(key, in_dim, hidden, action):
    ks = jax.random.split(key, 10)
    bound = 1.0 / math.sqrt(hidden)
    u = lambda k, shape: jax.random.uniform(k, shape, jnp.float32, -bound, bound)
    return dict(
        # GRU weights stored fused + pre-transposed: (in, 3H), gate order r,z,n
        w_ih0=u(ks[0], (in_dim, 3 * hidden)),
        w_hh0=u(ks[1], (hidden, 3 * hidden)),
        b_ih0=u(ks[2], (1, 3 * hidden)),
        b_hh0=u(ks[3], (1, 3 * hidden)),
        w_ih1=u(ks[4], (hidden, 3 * hidden)),
        w_hh1=u(ks[5], (hidden, 3 * hidden)),
        b_ih1=u(ks[6], (1, 3 * hidden)),
        b_hh1=u(ks[7], (1, 3 * hidden)),
        # nn.Linear(RNN_SIZE, ACTION_DIM), stored transposed: (H, A)
        w_l1=u(ks[8], (hidden, action)),
        b_l1=u(ks[9], (1, action)),
    )


if __name__ == "__main__":
    OBS_DIM, ACTION_DIM, TARGET_DIM = 10, 4, 2
    RNN_SIZE, FC_SIZE = 32, 32          # FC_SIZE unused by the module's forward
    T, B = 8, 4
    IN = OBS_DIM + ACTION_DIM + TARGET_DIM   # 16

    key = jax.random.PRNGKey(0)
    pkey, xkey, hkey = jax.random.split(key, 3)
    params = init_params(pkey, IN, RNN_SIZE, ACTION_DIM)

    x = jax.random.normal(xkey, (T, B, IN), jnp.float32)
    hidden_in = 0.1 * jax.random.normal(hkey, (2, B, RNN_SIZE), jnp.float32)

    y, h_out = actor_forward(x, hidden_in, params, return_hidden=True)
    jax.block_until_ready((y, h_out))

    y_ref, h_ref = actor_reference(x, hidden_in, params)
    assert y.shape == (T, B, ACTION_DIM) and h_out.shape == (2, B, RNN_SIZE)
    assert jnp.allclose(y, y_ref, atol=1e-4, rtol=1e-4)
    assert jnp.allclose(h_out, h_ref, atol=1e-4, rtol=1e-4)

    print("KERNEL_OK")
</pallas_src>

<mosaic_0001>
module attributes {stable_mosaic.version = 11 : i64} {
  func.func @actor_kernel(%arg0: memref<32x16xf32, #tpu.memory_space<vmem>>, %arg1: memref<8x32xf32, #tpu.memory_space<vmem>>, %arg2: memref<16x96xf32, #tpu.memory_space<vmem>>, %arg3: memref<32x96xf32, #tpu.memory_space<vmem>>, %arg4: memref<1x96xf32, #tpu.memory_space<vmem>>, %arg5: memref<1x32xf32, #tpu.memory_space<vmem>>, %arg6: memref<32x96xf32, #tpu.memory_space<vmem>>, %arg7: memref<32x96xf32, #tpu.memory_space<vmem>>, %arg8: memref<1x32xf32, #tpu.memory_space<vmem>>, %arg9: memref<1x96xf32, #tpu.memory_space<vmem>>, %arg10: memref<32x128xf32, #tpu.memory_space<vmem>>, %arg11: memref<1x128xf32, #tpu.memory_space<vmem>>, %arg12: memref<32x128xf32, #tpu.memory_space<vmem>>, %arg13: memref<8x32xf32, #tpu.memory_space<vmem>>) attributes {dimension_semantics = [], scalar_prefetch = 0 : i64, scratch_operands = 0 : i64, tpu.core_type = #tpu.core_type<tc>} {
    %c0 = arith.constant 0 : index
    %c0_0 = arith.constant 0 : index
    %0 = vector.load %arg3[%c0, %c0_0] : memref<32x96xf32, #tpu.memory_space<vmem>>, vector<32x96xf32>
    %c0_1 = arith.constant 0 : index
    %c0_2 = arith.constant 0 : index
    %1 = vector.load %arg6[%c0_1, %c0_2] : memref<32x96xf32, #tpu.memory_space<vmem>>, vector<32x96xf32>
    %c0_3 = arith.constant 0 : index
    %c0_4 = arith.constant 0 : index
    %2 = vector.load %arg7[%c0_3, %c0_4] : memref<32x96xf32, #tpu.memory_space<vmem>>, vector<32x96xf32>
    %c0_5 = arith.constant 0 : index
    %c0_6 = arith.constant 0 : index
    %3 = vector.load %arg5[%c0_5, %c0_6] : memref<1x32xf32, #tpu.memory_space<vmem>>, vector<1x32xf32>
    %4 = vector.shape_cast %3 : vector<1x32xf32> to vector<1x32xf32>
    %5 = vector.broadcast %4 : vector<1x32xf32> to vector<4x32xf32>
    %c0_7 = arith.constant 0 : index
    %c0_8 = arith.constant 0 : index
    %6 = vector.load %arg8[%c0_7, %c0_8] : memref<1x32xf32, #tpu.memory_space<vmem>>, vector<1x32xf32>
    %7 = vector.shape_cast %6 : vector<1x32xf32> to vector<1x32xf32>
    %8 = vector.broadcast %7 : vector<1x32xf32> to vector<4x32xf32>
    %c0_9 = arith.constant 0 : index
    %c0_10 = arith.constant 0 : index
    %9 = vector.load %arg9[%c0_9, %c0_10] : memref<1x96xf32, #tpu.memory_space<vmem>>, vector<1x96xf32>
    %10 = vector.shape_cast %9 : vector<1x96xf32> to vector<1x96xf32>
    %11 = vector.broadcast %10 : vector<1x96xf32> to vector<4x96xf32>
    %c0_11 = arith.constant 0 : index
    %c0_12 = arith.constant 0 : index
    %12 = vector.load %arg0[%c0_11, %c0_12] : memref<32x16xf32, #tpu.memory_space<vmem>>, vector<32x16xf32>
    %c0_13 = arith.constant 0 : index
    %c0_14 = arith.constant 0 : index
    %13 = vector.load %arg2[%c0_13, %c0_14] : memref<16x96xf32, #tpu.memory_space<vmem>>, vector<16x96xf32>
    %cst = arith.constant dense<0.000000e+00> : vector<32x96xf32>
    %14 = tpu.matmul %12, %13, %cst {dimension_numbers = #tpu.dot_dimension_numbers<[1], [0], [0], [1], [0, 0, 1, 1], [], []>} : vector<32x16xf32>, vector<16x96xf32>, vector<32x96xf32> -> vector<32x96xf32>
    %c0_15 = arith.constant 0 : index
    %c0_16 = arith.constant 0 : index
    %15 = vector.load %arg4[%c0_15, %c0_16] : memref<1x96xf32, #tpu.memory_space<vmem>>, vector<1x96xf32>
    %16 = vector.shape_cast %15 : vector<1x96xf32> to vector<1x96xf32>
    %17 = vector.broadcast %16 : vector<1x96xf32> to vector<32x96xf32>
    %18 = arith.addf %14, %17 : vector<32x96xf32>
    %c0_17 = arith.constant 0 : index
    %c0_18 = arith.constant 0 : index
    %19 = vector.load %arg1[%c0_17, %c0_18] : memref<8x32xf32, #tpu.memory_space<vmem>>, vector<8x32xf32>
    %20 = vector.extract_strided_slice %19 {offsets = [0, 0], sizes = [4, 32], strides = [1, 1]} : vector<8x32xf32> to vector<4x32xf32>
    %21 = vector.extract_strided_slice %19 {offsets = [4, 0], sizes = [4, 32], strides = [1, 1]} : vector<8x32xf32> to vector<4x32xf32>
    %22 = vector.extract_strided_slice %18 {offsets = [0, 0], sizes = [4, 96], strides = [1, 1]} : vector<32x96xf32> to vector<4x96xf32>
    %cst_19 = arith.constant dense<0.000000e+00> : vector<4x96xf32>
    %23 = tpu.matmul %21, %2, %cst_19 {dimension_numbers = #tpu.dot_dimension_numbers<[1], [0], [0], [1], [0, 0, 1, 1], [], []>} : vector<4x32xf32>, vector<32x96xf32>, vector<4x96xf32> -> vector<4x96xf32>
    %24 = arith.addf %23, %11 : vector<4x96xf32>
    %cst_20 = arith.constant dense<0.000000e+00> : vector<4x96xf32>
    %25 = tpu.matmul %20, %0, %cst_20 {dimension_numbers = #tpu.dot_dimension_numbers<[1], [0], [0], [1], [0, 0, 1, 1], [], []>} : vector<4x32xf32>, vector<32x96xf32>, vector<4x96xf32> -> vector<4x96xf32>
    %26 = vector.extract_strided_slice %22 {offsets = [0, 0], sizes = [4, 64], strides = [1, 1]} : vector<4x96xf32> to vector<4x64xf32>
    %27 = vector.extract_strided_slice %25 {offsets = [0, 0], sizes = [4, 64], strides = [1, 1]} : vector<4x96xf32> to vector<4x64xf32>
    %28 = arith.addf %26, %27 : vector<4x64xf32>
    %29 = arith.negf %28 : vector<4x64xf32>
    %30 = math.exp %29 : vector<4x64xf32>
    %cst_21 = arith.constant 1.000000e+00 : f32
    %31 = vector.broadcast %cst_21 : f32 to vector<4x64xf32>
    %32 = arith.addf %31, %30 : vector<4x64xf32>
    %33 = arith.divf %31, %32 : vector<4x64xf32>
    %34 = vector.extract_strided_slice %33 {offsets = [0, 0], sizes = [4, 32], strides = [1, 1]} : vector<4x64xf32> to vector<4x32xf32>
    %35 = vector.extract_strided_slice %33 {offsets = [0, 32], sizes = [4, 32], strides = [1, 1]} : vector<4x64xf32> to vector<4x32xf32>
    %36 = vector.extract_strided_slice %22 {offsets = [0, 64], sizes = [4, 32], strides = [1, 1]} : vector<4x96xf32> to vector<4x32xf32>
    %37 = vector.extract_strided_slice %25 {offsets = [0, 64], sizes = [4, 32], strides = [1, 1]} : vector<4x96xf32> to vector<4x32xf32>
    %38 = arith.addf %37, %5 : vector<4x32xf32>
    %39 = arith.mulf %34, %38 : vector<4x32xf32>
    %40 = arith.addf %36, %39 : vector<4x32xf32>
    %41 = math.tanh %40 : vector<4x32xf32>
    %cst_22 = arith.constant 1.000000e+00 : f32
    %42 = vector.broadcast %cst_22 : f32 to vector<4x32xf32>
    %43 = arith.subf %42, %35 : vector<4x32xf32>
    %44 = arith.mulf %43, %41 : vector<4x32xf32>
    %45 = arith.mulf %35, %20 : vector<4x32xf32>
    %46 = arith.addf %44, %45 : vector<4x32xf32>
    %cst_23 = arith.constant dense<0.000000e+00> : vector<4x96xf32>
    %47 = tpu.matmul %46, %1, %cst_23 {dimension_numbers = #tpu.dot_dimension_numbers<[1], [0], [0], [1], [0, 0, 1, 1], [], []>} : vector<4x32xf32>, vector<32x96xf32>, vector<4x96xf32> -> vector<4x96xf32>
    %48 = vector.extract_strided_slice %47 {offsets = [0, 0], sizes = [4, 64], strides = [1, 1]} : vector<4x96xf32> to vector<4x64xf32>
    %49 = vector.extract_strided_slice %24 {offsets = [0, 0], sizes = [4, 64], strides = [1, 1]} : vector<4x96xf32> to vector<4x64xf32>
    %50 = arith.addf %48, %49 : vector<4x64xf32>
    %51 = arith.negf %50 : vector<4x64xf32>
    %52 = math.exp %51 : vector<4x64xf32>
    %cst_24 = arith.constant 1.000000e+00 : f32
    %53 = vector.broadcast %cst_24 : f32 to vector<4x64xf32>
    %54 = arith.addf %53, %52 : vector<4x64xf32>
    %55 = arith.divf %53, %54 : vector<4x64xf32>
    %56 = vector.extract_strided_slice %55 {offsets = [0, 0], sizes = [4, 32], strides = [1, 1]} : vector<4x64xf32> to vector<4x32xf32>
    %57 = vector.extract_strided_slice %55 {offsets = [0, 32], sizes = [4, 32], strides = [1, 1]} : vector<4x64xf32> to vector<4x32xf32>
    %58 = vector.extract_strided_slice %47 {offsets = [0, 64], sizes = [4, 32], strides = [1, 1]} : vector<4x96xf32> to vector<4x32xf32>
    %59 = arith.addf %58, %8 : vector<4x32xf32>
    %60 = vector.extract_strided_slice %24 {offsets = [0, 64], sizes = [4, 32], strides = [1, 1]} : vector<4x96xf32> to vector<4x32xf32>
    %61 = arith.mulf %56, %60 : vector<4x32xf32>
    %62 = arith.addf %59, %61 : vector<4x32xf32>
    %63 = math.tanh %62 : vector<4x32xf32>
    %cst_25 = arith.constant 1.000000e+00 : f32
    %64 = vector.broadcast %cst_25 : f32 to vector<4x32xf32>
    %65 = arith.subf %64, %57 : vector<4x32xf32>
    %66 = arith.mulf %65, %63 : vector<4x32xf32>
    %67 = arith.mulf %57, %21 : vector<4x32xf32>
    %68 = arith.addf %66, %67 : vector<4x32xf32>
    %69 = vector.extract_strided_slice %18 {offsets = [4, 0], sizes = [4, 96], strides = [1, 1]} : vector<32x96xf32> to vector<4x96xf32>
    %cst_26 = arith.constant dense<0.000000e+00> : vector<4x96xf32>
    %70 = tpu.matmul %68, %2, %cst_26 {dimension_numbers = #tpu.dot_dimension_numbers<[1], [0], [0], [1], [0, 0, 1, 1], [], []>} : vector<4x32xf32>, vector<32x96xf32>, vector<4x96xf32> -> vector<4x96xf32>
    %71 = arith.addf %70, %11 : vector<4x96xf32>
    %cst_27 = arith.constant dense<0.000000e+00> : vector<4x96xf32>
    %72 = tpu.matmul %46, %0, %cst_27 {dimension_numbers = #tpu.dot_dimension_numbers<[1], [0], [0], [1], [0, 0, 1, 1], [], []>} : vector<4x32xf32>, vector<32x96xf32>, vector<4x96xf32> -> vector<4x96xf32>
    %73 = vector.extract_strided_slice %69 {offsets = [0, 0], sizes = [4, 64], strides = [1, 1]} : vector<4x96xf32> to vector<4x64xf32>
    %74 = vector.extract_strided_slice %72 {offsets = [0, 0], sizes = [4, 64], strides = [1, 1]} : vector<4x96xf32> to vector<4x64xf32>
    %75 = arith.addf %73, %74 : vector<4x64xf32>
    %76 = arith.negf %75 : vector<4x64xf32>
    %77 = math.exp %76 : vector<4x64xf32>
    %cst_28 = arith.constant 1.000000e+00 : f32
    %78 = vector.broadcast %cst_28 : f32 to vector<4x64xf32>
    %79 = arith.addf %78, %77 : vector<4x64xf32>
    %80 = arith.divf %78, %79 : vector<4x64xf32>
    %81 = vector.extract_strided_slice %80 {offsets = [0, 0], sizes = [4, 32], strides = [1, 1]} : vector<4x64xf32> to vector<4x32xf32>
    %82 = vector.extract_strided_slice %80 {offsets = [0, 32], sizes = [4, 32], strides = [1, 1]} : vector<4x64xf32> to vector<4x32xf32>
    %83 = vector.extract_strided_slice %69 {offsets = [0, 64], sizes = [4, 32], strides = [1, 1]} : vector<4x96xf32> to vector<4x32xf32>
    %84 = vector.extract_strided_slice %72 {offsets = [0, 64], sizes = [4, 32], strides = [1, 1]} : vector<4x96xf32> to vector<4x32xf32>
    %85 = arith.addf %84, %5 : vector<4x32xf32>
    %86 = arith.mulf %81, %85 : vector<4x32xf32>
    %87 = arith.addf %83, %86 : vector<4x32xf32>
    %88 = math.tanh %87 : vector<4x32xf32>
    %cst_29 = arith.constant 1.000000e+00 : f32
    %89 = vector.broadcast %cst_29 : f32 to vector<4x32xf32>
    %90 = arith.subf %89, %82 : vector<4x32xf32>
    %91 = arith.mulf %90, %88 : vector<4x32xf32>
    %92 = arith.mulf %82, %46 : vector<4x32xf32>
    %93 = arith.addf %91, %92 : vector<4x32xf32>
    %cst_30 = arith.constant dense<0.000000e+00> : vector<4x96xf32>
    %94 = tpu.matmul %93, %1, %cst_30 {dimension_numbers = #tpu.dot_dimension_numbers<[1], [0], [0], [1], [0, 0, 1, 1], [], []>} : vector<4x32xf32>, vector<32x96xf32>, vector<4x96xf32> -> vector<4x96xf32>
    %95 = vector.extract_strided_slice %94 {offsets = [0, 0], sizes = [4, 64], strides = [1, 1]} : vector<4x96xf32> to vector<4x64xf32>
    %96 = vector.extract_strided_slice %71 {offsets = [0, 0], sizes = [4, 64], strides = [1, 1]} : vector<4x96xf32> to vector<4x64xf32>
    %97 = arith.addf %95, %96 : vector<4x64xf32>
    %98 = arith.negf %97 : vector<4x64xf32>
    %99 = math.exp %98 : vector<4x64xf32>
    %cst_31 = arith.constant 1.000000e+00 : f32
    %100 = vector.broadcast %cst_31 : f32 to vector<4x64xf32>
    %101 = arith.addf %100, %99 : vector<4x64xf32>
    %102 = arith.divf %100, %101 : vector<4x64xf32>
    %103 = vector.extract_strided_slice %102 {offsets = [0, 0], sizes = [4, 32], strides = [1, 1]} : vector<4x64xf32> to vector<4x32xf32>
    %104 = vector.extract_strided_slice %102 {offsets = [0, 32], sizes = [4, 32], strides = [1, 1]} : vector<4x64xf32> to vector<4x32xf32>
    %105 = vector.extract_strided_slice %94 {offsets = [0, 64], sizes = [4, 32], strides = [1, 1]} : vector<4x96xf32> to vector<4x32xf32>
    %106 = arith.addf %105, %8 : vector<4x32xf32>
    %107 = vector.extract_strided_slice %71 {offsets = [0, 64], sizes = [4, 32], strides = [1, 1]} : vector<4x96xf32> to vector<4x32xf32>
    %108 = arith.mulf %103, %107 : vector<4x32xf32>
    %109 = arith.addf %106, %108 : vector<4x32xf32>
    %110 = math.tanh %109 : vector<4x32xf32>
    %cst_32 = arith.constant 1.000000e+00 : f32
    %111 = vector.broadcast %cst_32 : f32 to vector<4x32xf32>
    %112 = arith.subf %111, %104 : vector<4x32xf32>
    %113 = arith.mulf %112, %110 : vector<4x32xf32>
    %114 = arith.mulf %104, %68 : vector<4x32xf32>
    %115 = arith.addf %113, %114 : vector<4x32xf32>
    %116 = vector.extract_strided_slice %18 {offsets = [8, 0], sizes = [4, 96], strides = [1, 1]} : vector<32x96xf32> to vector<4x96xf32>
    %cst_33 = arith.constant dense<0.000000e+00> : vector<4x96xf32>
    %117 = tpu.matmul %115, %2, %cst_33 {dimension_numbers = #tpu.dot_dimension_numbers<[1], [0], [0], [1], [0, 0, 1, 1], [], []>} : vector<4x32xf32>, vector<32x96xf32>, vector<4x96xf32> -> vector<4x96xf32>
    %118 = arith.addf %117, %11 : vector<4x96xf32>
    %cst_34 = arith.constant dense<0.000000e+00> : vector<4x96xf32>
    %119 = tpu.matmul %93, %0, %cst_34 {dimension_numbers = #tpu.dot_dimension_numbers<[1], [0], [0], [1], [0, 0, 1, 1], [], []>} : vector<4x32xf32>, vector<32x96xf32>, vector<4x96xf32> -> vector<4x96xf32>
    %120 = vector.extract_strided_slice %116 {offsets = [0, 0], sizes = [4, 64], strides = [1, 1]} : vector<4x96xf32> to vector<4x64xf32>
    %121 = vector.extract_strided_slice %119 {offsets = [0, 0], sizes = [4, 64], strides = [1, 1]} : vector<4x96xf32> to vector<4x64xf32>
    %122 = arith.addf %120, %121 : vector<4x64xf32>
    %123 = arith.negf %122 : vector<4x64xf32>
    %124 = math.exp %123 : vector<4x64xf32>
    %cst_35 = arith.constant 1.000000e+00 : f32
    %125 = vector.broadcast %cst_35 : f32 to vector<4x64xf32>
    %126 = arith.addf %125, %124 : vector<4x64xf32>
    %127 = arith.divf %125, %126 : vector<4x64xf32>
    %128 = vector.extract_strided_slice %127 {offsets = [0, 0], sizes = [4, 32], strides = [1, 1]} : vector<4x64xf32> to vector<4x32xf32>
    %129 = vector.extract_strided_slice %127 {offsets = [0, 32], sizes = [4, 32], strides = [1, 1]} : vector<4x64xf32> to vector<4x32xf32>
    %130 = vector.extract_strided_slice %116 {offsets = [0, 64], sizes = [4, 32], strides = [1, 1]} : vector<4x96xf32> to vector<4x32xf32>
    %131 = vector.extract_strided_slice %119 {offsets = [0, 64], sizes = [4, 32], strides = [1, 1]} : vector<4x96xf32> to vector<4x32xf32>
    %132 = arith.addf %131, %5 : vector<4x32xf32>
    %133 = arith.mulf %128, %132 : vector<4x32xf32>
    %134 = arith.addf %130, %133 : vector<4x32xf32>
    %135 = math.tanh %134 : vector<4x32xf32>
    %cst_36 = arith.constant 1.000000e+00 : f32
    %136 = vector.broadcast %cst_36 : f32 to vector<4x32xf32>
    %137 = arith.subf %136, %129 : vector<4x32xf32>
    %138 = arith.mulf %137, %135 : vector<4x32xf32>
    %139 = arith.mulf %129, %93 : vector<4x32xf32>
    %140 = arith.addf %138, %139 : vector<4x32xf32>
    %cst_37 = arith.constant dense<0.000000e+00> : vector<4x96xf32>
    %141 = tpu.matmul %140, %1, %cst_37 {dimension_numbers = #tpu.dot_dimension_numbers<[1], [0], [0], [1], [0, 0, 1, 1], [], []>} : vector<4x32xf32>, vector<32x96xf32>, vector<4x96xf32> -> vector<4x96xf32>
    %142 = vector.extract_strided_slice %141 {offsets = [0, 0], sizes = [4, 64], strides = [1, 1]} : vector<4x96xf32> to vector<4x64xf32>
    %143 = vector.extract_strided_slice %118 {offsets = [0, 0], sizes = [4, 64], strides = [1, 1]} : vector<4x96xf32> to vector<4x64xf32>
    %144 = arith.addf %142, %143 : vector<4x64xf32>
    %145 = arith.negf %144 : vector<4x64xf32>
    %146 = math.exp %145 : vector<4x64xf32>
    %cst_38 = arith.constant 1.000000e+00 : f32
    %147 = vector.broadcast %cst_38 : f32 to vector<4x64xf32>
    %148 = arith.addf %147, %146 : vector<4x64xf32>
    %149 = arith.divf %147, %148 : vector<4x64xf32>
    %150 = vector.extract_strided_slice %149 {offsets = [0, 0], sizes = [4, 32], strides = [1, 1]} : vector<4x64xf32> to vector<4x32xf32>
    %151 = vector.extract_strided_slice %149 {offsets = [0, 32], sizes = [4, 32], strides = [1, 1]} : vector<4x64xf32> to vector<4x32xf32>
    %152 = vector.extract_strided_slice %141 {offsets = [0, 64], sizes = [4, 32], strides = [1, 1]} : vector<4x96xf32> to vector<4x32xf32>
    %153 = arith.addf %152, %8 : vector<4x32xf32>
    %154 = vector.extract_strided_slice %118 {offsets = [0, 64], sizes = [4, 32], strides = [1, 1]} : vector<4x96xf32> to vector<4x32xf32>
    %155 = arith.mulf %150, %154 : vector<4x32xf32>
    %156 = arith.addf %153, %155 : vector<4x32xf32>
    %157 = math.tanh %156 : vector<4x32xf32>
    %cst_39 = arith.constant 1.000000e+00 : f32
    %158 = vector.broadcast %cst_39 : f32 to vector<4x32xf32>
    %159 = arith.subf %158, %151 : vector<4x32xf32>
    %160 = arith.mulf %159, %157 : vector<4x32xf32>
    %161 = arith.mulf %151, %115 : vector<4x32xf32>
    %162 = arith.addf %160, %161 : vector<4x32xf32>
    %163 = vector.extract_strided_slice %18 {offsets = [12, 0], sizes = [4, 96], strides = [1, 1]} : vector<32x96xf32> to vector<4x96xf32>
    %cst_40 = arith.constant dense<0.000000e+00> : vector<4x96xf32>
    %164 = tpu.matmul %162, %2, %cst_40 {dimension_numbers = #tpu.dot_dimension_numbers<[1], [0], [0], [1], [0, 0, 1, 1], [], []>} : vector<4x32xf32>, vector<32x96xf32>, vector<4x96xf32> -> vector<4x96xf32>
    %165 = arith.addf %164, %11 : vector<4x96xf32>
    %cst_41 = arith.constant dense<0.000000e+00> : vector<4x96xf32>
    %166 = tpu.matmul %140, %0, %cst_41 {dimension_numbers = #tpu.dot_dimension_numbers<[1], [0], [0], [1], [0, 0, 1, 1], [], []>} : vector<4x32xf32>, vector<32x96xf32>, vector<4x96xf32> -> vector<4x96xf32>
    %167 = vector.extract_strided_slice %163 {offsets = [0, 0], sizes = [4, 64], strides = [1, 1]} : vector<4x96xf32> to vector<4x64xf32>
    %168 = vector.extract_strided_slice %166 {offsets = [0, 0], sizes = [4, 64], strides = [1, 1]} : vector<4x96xf32> to vector<4x64xf32>
    %169 = arith.addf %167, %168 : vector<4x64xf32>
    %170 = arith.negf %169 : vector<4x64xf32>
    %171 = math.exp %170 : vector<4x64xf32>
    %cst_42 = arith.constant 1.000000e+00 : f32
    %172 = vector.broadcast %cst_42 : f32 to vector<4x64xf32>
    %173 = arith.addf %172, %171 : vector<4x64xf32>
    %174 = arith.divf %172, %173 : vector<4x64xf32>
    %175 = vector.extract_strided_slice %174 {offsets = [0, 0], sizes = [4, 32], strides = [1, 1]} : vector<4x64xf32> to vector<4x32xf32>
    %176 = vector.extract_strided_slice %174 {offsets = [0, 32], sizes = [4, 32], strides = [1, 1]} : vector<4x64xf32> to vector<4x32xf32>
    %177 = vector.extract_strided_slice %163 {offsets = [0, 64], sizes = [4, 32], strides = [1, 1]} : vector<4x96xf32> to vector<4x32xf32>
    %178 = vector.extract_strided_slice %166 {offsets = [0, 64], sizes = [4, 32], strides = [1, 1]} : vector<4x96xf32> to vector<4x32xf32>
    %179 = arith.addf %178, %5 : vector<4x32xf32>
    %180 = arith.mulf %175, %179 : vector<4x32xf32>
    %181 = arith.addf %177, %180 : vector<4x32xf32>
    %182 = math.tanh %181 : vector<4x32xf32>
    %cst_43 = arith.constant 1.000000e+00 : f32
    %183 = vector.broadcast %cst_43 : f32 to vector<4x32xf32>
    %184 = arith.subf %183, %176 : vector<4x32xf32>
    %185 = arith.mulf %184, %182 : vector<4x32xf32>
    %186 = arith.mulf %176, %140 : vector<4x32xf32>
    %187 = arith.addf %185, %186 : vector<4x32xf32>
    %cst_44 = arith.constant dense<0.000000e+00> : vector<4x96xf32>
    %188 = tpu.matmul %187, %1, %cst_44 {dimension_numbers = #tpu.dot_dimension_numbers<[1], [0], [0], [1], [0, 0, 1, 1], [], []>} : vector<4x32xf32>, vector<32x96xf32>, vector<4x96xf32> -> vector<4x96xf32>
    %189 = vector.extract_strided_slice %188 {offsets = [0, 0], sizes = [4, 64], strides = [1, 1]} : vector<4x96xf32> to vector<4x64xf32>
    %190 = vector.extract_strided_slice %165 {offsets = [0, 0], sizes = [4, 64], strides = [1, 1]} : vector<4x96xf32> to vector<4x64xf32>
    %191 = arith.addf %189, %190 : vector<4x64xf32>
    %192 = arith.negf %191 : vector<4x64xf32>
    %193 = math.exp %192 : vector<4x64xf32>
    %cst_45 = arith.constant 1.000000e+00 : f32
    %194 = vector.broadcast %cst_45 : f32 to vector<4x64xf32>
    %195 = arith.addf %194, %193 : vector<4x64xf32>
    %196 = arith.divf %194, %195 : vector<4x64xf32>
    %197 = vector.extract_strided_slice %196 {offsets = [0, 0], sizes = [4, 32], strides = [1, 1]} : vector<4x64xf32> to vector<4x32xf32>
    %198 = vector.extract_strided_slice %196 {offsets = [0, 32], sizes = [4, 32], strides = [1, 1]} : vector<4x64xf32> to vector<4x32xf32>
    %199 = vector.extract_strided_slice %188 {offsets = [0, 64], sizes = [4, 32], strides = [1, 1]} : vector<4x96xf32> to vector<4x32xf32>
    %200 = arith.addf %199, %8 : vector<4x32xf32>
    %201 = vector.extract_strided_slice %165 {offsets = [0, 64], sizes = [4, 32], strides = [1, 1]} : vector<4x96xf32> to vector<4x32xf32>
    %202 = arith.mulf %197, %201 : vector<4x32xf32>
    %203 = arith.addf %200, %202 : vector<4x32xf32>
    %204 = math.tanh %203 : vector<4x32xf32>
    %cst_46 = arith.constant 1.000000e+00 : f32
    %205 = vector.broadcast %cst_46 : f32 to vector<4x32xf32>
    %206 = arith.subf %205, %198 : vector<4x32xf32>
    %207 = arith.mulf %206, %204 : vector<4x32xf32>
    %208 = arith.mulf %198, %162 : vector<4x32xf32>
    %209 = arith.addf %207, %208 : vector<4x32xf32>
    %210 = vector.extract_strided_slice %18 {offsets = [16, 0], sizes = [4, 96], strides = [1, 1]} : vector<32x96xf32> to vector<4x96xf32>
    %cst_47 = arith.constant dense<0.000000e+00> : vector<4x96xf32>
    %211 = tpu.matmul %209, %2, %cst_47 {dimension_numbers = #tpu.dot_dimension_numbers<[1], [0], [0], [1], [0, 0, 1, 1], [], []>} : vector<4x32xf32>, vector<32x96xf32>, vector<4x96xf32> -> vector<4x96xf32>
    %212 = arith.addf %211, %11 : vector<4x96xf32>
    %cst_48 = arith.constant dense<0.000000e+00> : vector<4x96xf32>
    %213 = tpu.matmul %187, %0, %cst_48 {dimension_numbers = #tpu.dot_dimension_numbers<[1], [0], [0], [1], [0, 0, 1, 1], [], []>} : vector<4x32xf32>, vector<32x96xf32>, vector<4x96xf32> -> vector<4x96xf32>
    %214 = vector.extract_strided_slice %210 {offsets = [0, 0], sizes = [4, 64], strides = [1, 1]} : vector<4x96xf32> to vector<4x64xf32>
    %215 = vector.extract_strided_slice %213 {offsets = [0, 0], sizes = [4, 64], strides = [1, 1]} : vector<4x96xf32> to vector<4x64xf32>
    %216 = arith.addf %214, %215 : vector<4x64xf32>
    %217 = arith.negf %216 : vector<4x64xf32>
    %218 = math.exp %217 : vector<4x64xf32>
    %cst_49 = arith.constant 1.000000e+00 : f32
    %219 = vector.broadcast %cst_49 : f32 to vector<4x64xf32>
    %220 = arith.addf %219, %218 : vector<4x64xf32>
    %221 = arith.divf %219, %220 : vector<4x64xf32>
    %222 = vector.extract_strided_slice %221 {offsets = [0, 0], sizes = [4, 32], strides = [1, 1]} : vector<4x64xf32> to vector<4x32xf32>
    %223 = vector.extract_strided_slice %221 {offsets = [0, 32], sizes = [4, 32], strides = [1, 1]} : vector<4x64xf32> to vector<4x32xf32>
    %224 = vector.extract_strided_slice %210 {offsets = [0, 64], sizes = [4, 32], strides = [1, 1]} : vector<4x96xf32> to vector<4x32xf32>
    %225 = vector.extract_strided_slice %213 {offsets = [0, 64], sizes = [4, 32], strides = [1, 1]} : vector<4x96xf32> to vector<4x32xf32>
    %226 = arith.addf %225, %5 : vector<4x32xf32>
    %227 = arith.mulf %222, %226 : vector<4x32xf32>
    %228 = arith.addf %224, %227 : vector<4x32xf32>
    %229 = math.tanh %228 : vector<4x32xf32>
    %cst_50 = arith.constant 1.000000e+00 : f32
    %230 = vector.broadcast %cst_50 : f32 to vector<4x32xf32>
    %231 = arith.subf %230, %223 : vector<4x32xf32>
    %232 = arith.mulf %231, %229 : vector<4x32xf32>
    %233 = arith.mulf %223, %187 : vector<4x32xf32>
    %234 = arith.addf %232, %233 : vector<4x32xf32>
    %cst_51 = arith.constant dense<0.000000e+00> : vector<4x96xf32>
    %235 = tpu.matmul %234, %1, %cst_51 {dimension_numbers = #tpu.dot_dimension_numbers<[1], [0], [0], [1], [0, 0, 1, 1], [], []>} : vector<4x32xf32>, vector<32x96xf32>, vector<4x96xf32> -> vector<4x96xf32>
    %236 = vector.extract_strided_slice %235 {offsets = [0, 0], sizes = [4, 64], strides = [1, 1]} : vector<4x96xf32> to vector<4x64xf32>
    %237 = vector.extract_strided_slice %212 {offsets = [0, 0], sizes = [4, 64], strides = [1, 1]} : vector<4x96xf32> to vector<4x64xf32>
    %238 = arith.addf %236, %237 : vector<4x64xf32>
    %239 = arith.negf %238 : vector<4x64xf32>
    %240 = math.exp %239 : vector<4x64xf32>
    %cst_52 = arith.constant 1.000000e+00 : f32
    %241 = vector.broadcast %cst_52 : f32 to vector<4x64xf32>
    %242 = arith.addf %241, %240 : vector<4x64xf32>
    %243 = arith.divf %241, %242 : vector<4x64xf32>
    %244 = vector.extract_strided_slice %243 {offsets = [0, 0], sizes = [4, 32], strides = [1, 1]} : vector<4x64xf32> to vector<4x32xf32>
    %245 = vector.extract_strided_slice %243 {offsets = [0, 32], sizes = [4, 32], strides = [1, 1]} : vector<4x64xf32> to vector<4x32xf32>
    %246 = vector.extract_strided_slice %235 {offsets = [0, 64], sizes = [4, 32], strides = [1, 1]} : vector<4x96xf32> to vector<4x32xf32>
    %247 = arith.addf %246, %8 : vector<4x32xf32>
    %248 = vector.extract_strided_slice %212 {offsets = [0, 64], sizes = [4, 32], strides = [1, 1]} : vector<4x96xf32> to vector<4x32xf32>
    %249 = arith.mulf %244, %248 : vector<4x32xf32>
    %250 = arith.addf %247, %249 : vector<4x32xf32>
    %251 = math.tanh %250 : vector<4x32xf32>
    %cst_53 = arith.constant 1.000000e+00 : f32
    %252 = vector.broadcast %cst_53 : f32 to vector<4x32xf32>
    %253 = arith.subf %252, %245 : vector<4x32xf32>
    %254 = arith.mulf %253, %251 : vector<4x32xf32>
    %255 = arith.mulf %245, %209 : vector<4x32xf32>
    %256 = arith.addf %254, %255 : vector<4x32xf32>
    %257 = vector.extract_strided_slice %18 {offsets = [20, 0], sizes = [4, 96], strides = [1, 1]} : vector<32x96xf32> to vector<4x96xf32>
    %cst_54 = arith.constant dense<0.000000e+00> : vector<4x96xf32>
    %258 = tpu.matmul %256, %2, %cst_54 {dimension_numbers = #tpu.dot_dimension_numbers<[1], [0], [0], [1], [0, 0, 1, 1], [], []>} : vector<4x32xf32>, vector<32x96xf32>, vector<4x96xf32> -> vector<4x96xf32>
    %259 = arith.addf %258, %11 : vector<4x96xf32>
    %cst_55 = arith.constant dense<0.000000e+00> : vector<4x96xf32>
    %260 = tpu.matmul %234, %0, %cst_55 {dimension_numbers = #tpu.dot_dimension_numbers<[1], [0], [0], [1], [0, 0, 1, 1], [], []>} : vector<4x32xf32>, vector<32x96xf32>, vector<4x96xf32> -> vector<4x96xf32>
    %261 = vector.extract_strided_slice %257 {offsets = [0, 0], sizes = [4, 64], strides = [1, 1]} : vector<4x96xf32> to vector<4x64xf32>
    %262 = vector.extract_strided_slice %260 {offsets = [0, 0], sizes = [4, 64], strides = [1, 1]} : vector<4x96xf32> to vector<4x64xf32>
    %263 = arith.addf %261, %262 : vector<4x64xf32>
    %264 = arith.negf %263 : vector<4x64xf32>
    %265 = math.exp %264 : vector<4x64xf32>
    %cst_56 = arith.constant 1.000000e+00 : f32
    %266 = vector.broadcast %cst_56 : f32 to vector<4x64xf32>
    %267 = arith.addf %266, %265 : vector<4x64xf32>
    %268 = arith.divf %266, %267 : vector<4x64xf32>
    %269 = vector.extract_strided_slice %268 {offsets = [0, 0], sizes = [4, 32], strides = [1, 1]} : vector<4x64xf32> to vector<4x32xf32>
    %270 = vector.extract_strided_slice %268 {offsets = [0, 32], sizes = [4, 32], strides = [1, 1]} : vector<4x64xf32> to vector<4x32xf32>
    %271 = vector.extract_strided_slice %257 {offsets = [0, 64], sizes = [4, 32], strides = [1, 1]} : vector<4x96xf32> to vector<4x32xf32>
    %272 = vector.extract_strided_slice %260 {offsets = [0, 64], sizes = [4, 32], strides = [1, 1]} : vector<4x96xf32> to vector<4x32xf32>
    %273 = arith.addf %272, %5 : vector<4x32xf32>
    %274 = arith.mulf %269, %273 : vector<4x32xf32>
    %275 = arith.addf %271, %274 : vector<4x32xf32>
    %276 = math.tanh %275 : vector<4x32xf32>
    %cst_57 = arith.constant 1.000000e+00 : f32
    %277 = vector.broadcast %cst_57 : f32 to vector<4x32xf32>
    %278 = arith.subf %277, %270 : vector<4x32xf32>
    %279 = arith.mulf %278, %276 : vector<4x32xf32>
    %280 = arith.mulf %270, %234 : vector<4x32xf32>
    %281 = arith.addf %279, %280 : vector<4x32xf32>
    %cst_58 = arith.constant dense<0.000000e+00> : vector<4x96xf32>
    %282 = tpu.matmul %281, %1, %cst_58 {dimension_numbers = #tpu.dot_dimension_numbers<[1], [0], [0], [1], [0, 0, 1, 1], [], []>} : vector<4x32xf32>, vector<32x96xf32>, vector<4x96xf32> -> vector<4x96xf32>
    %283 = vector.extract_strided_slice %282 {offsets = [0, 0], sizes = [4, 64], strides = [1, 1]} : vector<4x96xf32> to vector<4x64xf32>
    %284 = vector.extract_strided_slice %259 {offsets = [0, 0], sizes = [4, 64], strides = [1, 1]} : vector<4x96xf32> to vector<4x64xf32>
    %285 = arith.addf %283, %284 : vector<4x64xf32>
    %286 = arith.negf %285 : vector<4x64xf32>
    %287 = math.exp %286 : vector<4x64xf32>
    %cst_59 = arith.constant 1.000000e+00 : f32
    %288 = vector.broadcast %cst_59 : f32 to vector<4x64xf32>
    %289 = arith.addf %288, %287 : vector<4x64xf32>
    %290 = arith.divf %288, %289 : vector<4x64xf32>
    %291 = vector.extract_strided_slice %290 {offsets = [0, 0], sizes = [4, 32], strides = [1, 1]} : vector<4x64xf32> to vector<4x32xf32>
    %292 = vector.extract_strided_slice %290 {offsets = [0, 32], sizes = [4, 32], strides = [1, 1]} : vector<4x64xf32> to vector<4x32xf32>
    %293 = vector.extract_strided_slice %282 {offsets = [0, 64], sizes = [4, 32], strides = [1, 1]} : vector<4x96xf32> to vector<4x32xf32>
    %294 = arith.addf %293, %8 : vector<4x32xf32>
    %295 = vector.extract_strided_slice %259 {offsets = [0, 64], sizes = [4, 32], strides = [1, 1]} : vector<4x96xf32> to vector<4x32xf32>
    %296 = arith.mulf %291, %295 : vector<4x32xf32>
    %297 = arith.addf %294, %296 : vector<4x32xf32>
    %298 = math.tanh %297 : vector<4x32xf32>
    %cst_60 = arith.constant 1.000000e+00 : f32
    %299 = vector.broadcast %cst_60 : f32 to vector<4x32xf32>
    %300 = arith.subf %299, %292 : vector<4x32xf32>
    %301 = arith.mulf %300, %298 : vector<4x32xf32>
    %302 = arith.mulf %292, %256 : vector<4x32xf32>
    %303 = arith.addf %301, %302 : vector<4x32xf32>
    %304 = vector.extract_strided_slice %18 {offsets = [24, 0], sizes = [4, 96], strides = [1, 1]} : vector<32x96xf32> to vector<4x96xf32>
    %cst_61 = arith.constant dense<0.000000e+00> : vector<4x96xf32>
    %305 = tpu.matmul %303, %2, %cst_61 {dimension_numbers = #tpu.dot_dimension_numbers<[1], [0], [0], [1], [0, 0, 1, 1], [], []>} : vector<4x32xf32>, vector<32x96xf32>, vector<4x96xf32> -> vector<4x96xf32>
    %306 = arith.addf %305, %11 : vector<4x96xf32>
    %cst_62 = arith.constant dense<0.000000e+00> : vector<4x96xf32>
    %307 = tpu.matmul %281, %0, %cst_62 {dimension_numbers = #tpu.dot_dimension_numbers<[1], [0], [0], [1], [0, 0, 1, 1], [], []>} : vector<4x32xf32>, vector<32x96xf32>, vector<4x96xf32> -> vector<4x96xf32>
    %308 = vector.extract_strided_slice %304 {offsets = [0, 0], sizes = [4, 64], strides = [1, 1]} : vector<4x96xf32> to vector<4x64xf32>
    %309 = vector.extract_strided_slice %307 {offsets = [0, 0], sizes = [4, 64], strides = [1, 1]} : vector<4x96xf32> to vector<4x64xf32>
    %310 = arith.addf %308, %309 : vector<4x64xf32>
    %311 = arith.negf %310 : vector<4x64xf32>
    %312 = math.exp %311 : vector<4x64xf32>
    %cst_63 = arith.constant 1.000000e+00 : f32
    %313 = vector.broadcast %cst_63 : f32 to vector<4x64xf32>
    %314 = arith.addf %313, %312 : vector<4x64xf32>
    %315 = arith.divf %313, %314 : vector<4x64xf32>
    %316 = vector.extract_strided_slice %315 {offsets = [0, 0], sizes = [4, 32], strides = [1, 1]} : vector<4x64xf32> to vector<4x32xf32>
    %317 = vector.extract_strided_slice %315 {offsets = [0, 32], sizes = [4, 32], strides = [1, 1]} : vector<4x64xf32> to vector<4x32xf32>
    %318 = vector.extract_strided_slice %304 {offsets = [0, 64], sizes = [4, 32], strides = [1, 1]} : vector<4x96xf32> to vector<4x32xf32>
    %319 = vector.extract_strided_slice %307 {offsets = [0, 64], sizes = [4, 32], strides = [1, 1]} : vector<4x96xf32> to vector<4x32xf32>
    %320 = arith.addf %319, %5 : vector<4x32xf32>
    %321 = arith.mulf %316, %320 : vector<4x32xf32>
    %322 = arith.addf %318, %321 : vector<4x32xf32>
    %323 = math.tanh %322 : vector<4x32xf32>
    %cst_64 = arith.constant 1.000000e+00 : f32
    %324 = vector.broadcast %cst_64 : f32 to vector<4x32xf32>
    %325 = arith.subf %324, %317 : vector<4x32xf32>
    %326 = arith.mulf %325, %323 : vector<4x32xf32>
    %327 = arith.mulf %317, %281 : vector<4x32xf32>
    %328 = arith.addf %326, %327 : vector<4x32xf32>
    %cst_65 = arith.constant dense<0.000000e+00> : vector<4x96xf32>
    %329 = tpu.matmul %328, %1, %cst_65 {dimension_numbers = #tpu.dot_dimension_numbers<[1], [0], [0], [1], [0, 0, 1, 1], [], []>} : vector<4x32xf32>, vector<32x96xf32>, vector<4x96xf32> -> vector<4x96xf32>
    %330 = vector.extract_strided_slice %329 {offsets = [0, 0], sizes = [4, 64], strides = [1, 1]} : vector<4x96xf32> to vector<4x64xf32>
    %331 = vector.extract_strided_slice %306 {offsets = [0, 0], sizes = [4, 64], strides = [1, 1]} : vector<4x96xf32> to vector<4x64xf32>
    %332 = arith.addf %330, %331 : vector<4x64xf32>
    %333 = arith.negf %332 : vector<4x64xf32>
    %334 = math.exp %333 : vector<4x64xf32>
    %cst_66 = arith.constant 1.000000e+00 : f32
    %335 = vector.broadcast %cst_66 : f32 to vector<4x64xf32>
    %336 = arith.addf %335, %334 : vector<4x64xf32>
    %337 = arith.divf %335, %336 : vector<4x64xf32>
    %338 = vector.extract_strided_slice %337 {offsets = [0, 0], sizes = [4, 32], strides = [1, 1]} : vector<4x64xf32> to vector<4x32xf32>
    %339 = vector.extract_strided_slice %337 {offsets = [0, 32], sizes = [4, 32], strides = [1, 1]} : vector<4x64xf32> to vector<4x32xf32>
    %340 = vector.extract_strided_slice %329 {offsets = [0, 64], sizes = [4, 32], strides = [1, 1]} : vector<4x96xf32> to vector<4x32xf32>
    %341 = arith.addf %340, %8 : vector<4x32xf32>
    %342 = vector.extract_strided_slice %306 {offsets = [0, 64], sizes = [4, 32], strides = [1, 1]} : vector<4x96xf32> to vector<4x32xf32>
    %343 = arith.mulf %338, %342 : vector<4x32xf32>
    %344 = arith.addf %341, %343 : vector<4x32xf32>
    %345 = math.tanh %344 : vector<4x32xf32>
    %cst_67 = arith.constant 1.000000e+00 : f32
    %346 = vector.broadcast %cst_67 : f32 to vector<4x32xf32>
    %347 = arith.subf %346, %339 : vector<4x32xf32>
    %348 = arith.mulf %347, %345 : vector<4x32xf32>
    %349 = arith.mulf %339, %303 : vector<4x32xf32>
    %350 = arith.addf %348, %349 : vector<4x32xf32>
    %351 = vector.extract_strided_slice %18 {offsets = [28, 0], sizes = [4, 96], strides = [1, 1]} : vector<32x96xf32> to vector<4x96xf32>
    %cst_68 = arith.constant dense<0.000000e+00> : vector<4x96xf32>
    %352 = tpu.matmul %350, %2, %cst_68 {dimension_numbers = #tpu.dot_dimension_numbers<[1], [0], [0], [1], [0, 0, 1, 1], [], []>} : vector<4x32xf32>, vector<32x96xf32>, vector<4x96xf32> -> vector<4x96xf32>
    %353 = arith.addf %352, %11 : vector<4x96xf32>
    %cst_69 = arith.constant dense<0.000000e+00> : vector<4x96xf32>
    %354 = tpu.matmul %328, %0, %cst_69 {dimension_numbers = #tpu.dot_dimension_numbers<[1], [0], [0], [1], [0, 0, 1, 1], [], []>} : vector<4x32xf32>, vector<32x96xf32>, vector<4x96xf32> -> vector<4x96xf32>
    %355 = vector.extract_strided_slice %351 {offsets = [0, 0], sizes = [4, 64], strides = [1, 1]} : vector<4x96xf32> to vector<4x64xf32>
    %356 = vector.extract_strided_slice %354 {offsets = [0, 0], sizes = [4, 64], strides = [1, 1]} : vector<4x96xf32> to vector<4x64xf32>
    %357 = arith.addf %355, %356 : vector<4x64xf32>
    %358 = arith.negf %357 : vector<4x64xf32>
    %359 = math.exp %358 : vector<4x64xf32>
    %cst_70 = arith.constant 1.000000e+00 : f32
    %360 = vector.broadcast %cst_70 : f32 to vector<4x64xf32>
    %361 = arith.addf %360, %359 : vector<4x64xf32>
    %362 = arith.divf %360, %361 : vector<4x64xf32>
    %363 = vector.extract_strided_slice %362 {offsets = [0, 0], sizes = [4, 32], strides = [1, 1]} : vector<4x64xf32> to vector<4x32xf32>
    %364 = vector.extract_strided_slice %362 {offsets = [0, 32], sizes = [4, 32], strides = [1, 1]} : vector<4x64xf32> to vector<4x32xf32>
    %365 = vector.extract_strided_slice %351 {offsets = [0, 64], sizes = [4, 32], strides = [1, 1]} : vector<4x96xf32> to vector<4x32xf32>
    %366 = vector.extract_strided_slice %354 {offsets = [0, 64], sizes = [4, 32], strides = [1, 1]} : vector<4x96xf32> to vector<4x32xf32>
    %367 = arith.addf %366, %5 : vector<4x32xf32>
    %368 = arith.mulf %363, %367 : vector<4x32xf32>
    %369 = arith.addf %365, %368 : vector<4x32xf32>
    %370 = math.tanh %369 : vector<4x32xf32>
    %cst_71 = arith.constant 1.000000e+00 : f32
    %371 = vector.broadcast %cst_71 : f32 to vector<4x32xf32>
    %372 = arith.subf %371, %364 : vector<4x32xf32>
    %373 = arith.mulf %372, %370 : vector<4x32xf32>
    %374 = arith.mulf %364, %328 : vector<4x32xf32>
    %375 = arith.addf %373, %374 : vector<4x32xf32>
    %cst_72 = arith.constant dense<0.000000e+00> : vector<4x96xf32>
    %376 = tpu.matmul %375, %1, %cst_72 {dimension_numbers = #tpu.dot_dimension_numbers<[1], [0], [0], [1], [0, 0, 1, 1], [], []>} : vector<4x32xf32>, vector<32x96xf32>, vector<4x96xf32> -> vector<4x96xf32>
    %377 = vector.extract_strided_slice %376 {offsets = [0, 0], sizes = [4, 64], strides = [1, 1]} : vector<4x96xf32> to vector<4x64xf32>
    %378 = vector.extract_strided_slice %353 {offsets = [0, 0], sizes = [4, 64], strides = [1, 1]} : vector<4x96xf32> to vector<4x64xf32>
    %379 = arith.addf %377, %378 : vector<4x64xf32>
    %380 = arith.negf %379 : vector<4x64xf32>
    %381 = math.exp %380 : vector<4x64xf32>
    %cst_73 = arith.constant 1.000000e+00 : f32
    %382 = vector.broadcast %cst_73 : f32 to vector<4x64xf32>
    %383 = arith.addf %382, %381 : vector<4x64xf32>
    %384 = arith.divf %382, %383 : vector<4x64xf32>
    %385 = vector.extract_strided_slice %384 {offsets = [0, 0], sizes = [4, 32], strides = [1, 1]} : vector<4x64xf32> to vector<4x32xf32>
    %386 = vector.extract_strided_slice %384 {offsets = [0, 32], sizes = [4, 32], strides = [1, 1]} : vector<4x64xf32> to vector<4x32xf32>
    %387 = vector.extract_strided_slice %376 {offsets = [0, 64], sizes = [4, 32], strides = [1, 1]} : vector<4x96xf32> to vector<4x32xf32>
    %388 = arith.addf %387, %8 : vector<4x32xf32>
    %389 = vector.extract_strided_slice %353 {offsets = [0, 64], sizes = [4, 32], strides = [1, 1]} : vector<4x96xf32> to vector<4x32xf32>
    %390 = arith.mulf %385, %389 : vector<4x32xf32>
    %391 = arith.addf %388, %390 : vector<4x32xf32>
    %392 = math.tanh %391 : vector<4x32xf32>
    %cst_74 = arith.constant 1.000000e+00 : f32
    %393 = vector.broadcast %cst_74 : f32 to vector<4x32xf32>
    %394 = arith.subf %393, %386 : vector<4x32xf32>
    %395 = arith.mulf %394, %392 : vector<4x32xf32>
    %396 = arith.mulf %386, %350 : vector<4x32xf32>
    %397 = arith.addf %395, %396 : vector<4x32xf32>
    %398 = tpu.concatenate %375, %397 in 0 : vector<4x32xf32>, vector<4x32xf32> -> vector<8x32xf32>
    %c0_75 = arith.constant 0 : index
    %c0_76 = arith.constant 0 : index
    %399 = vector.load %arg13[%c0_75, %c0_76] : memref<8x32xf32, #tpu.memory_space<vmem>>, vector<8x32xf32>
    tpu.vector_store %arg13[%c0_75, %c0_76], %398 {strides = array<i32>} : memref<8x32xf32, #tpu.memory_space<vmem>>, vector<8x32xf32>,
    %400 = tpu.concatenate %68, %115, %162, %209, %256, %303, %350, %397 in 0 : vector<4x32xf32>, vector<4x32xf32>, vector<4x32xf32>, vector<4x32xf32>, vector<4x32xf32>, vector<4x32xf32>, vector<4x32xf32>, vector<4x32xf32> -> vector<32x32xf32>
    %c0_77 = arith.constant 0 : index
    %c0_78 = arith.constant 0 : index
    %401 = vector.load %arg10[%c0_77, %c0_78] : memref<32x128xf32, #tpu.memory_space<vmem>>, vector<32x128xf32>
    %cst_79 = arith.constant dense<0.000000e+00> : vector<32x128xf32>
    %402 = tpu.matmul %400, %401, %cst_79 {dimension_numbers = #tpu.dot_dimension_numbers<[1], [0], [0], [1], [0, 0, 1, 1], [], []>} : vector<32x32xf32>, vector<32x128xf32>, vector<32x128xf32> -> vector<32x128xf32>
    %c0_80 = arith.constant 0 : index
    %c0_81 = arith.constant 0 : index
    %403 = vector.load %arg11[%c0_80, %c0_81] : memref<1x128xf32, #tpu.memory_space<vmem>>, vector<1x128xf32>
    %404 = vector.shape_cast %403 : vector<1x128xf32> to vector<1x128xf32>
    %405 = vector.broadcast %404 : vector<1x128xf32> to vector<32x128xf32>
    %406 = arith.addf %402, %405 : vector<32x128xf32>
    %407 = math.tanh %406 : vector<32x128xf32>
    %c0_82 = arith.constant 0 : index
    %c0_83 = arith.constant 0 : index
    %408 = vector.load %arg12[%c0_82, %c0_83] : memref<32x128xf32, #tpu.memory_space<vmem>>, vector<32x128xf32>
    tpu.vector_store %arg12[%c0_82, %c0_83], %407 {strides = array<i32>} : memref<32x128xf32, #tpu.memory_space<vmem>>, vector<32x128xf32>,
    return
  }
}

</mosaic_0001>

<llo_original>
// kernel: tpu_custom_call.1
$region0: #{tpu_custom_call.1}
  #allocation0 [shape = 'u32[]', space=smem, size = 0x4, offset = 0x4, fixed_abs, tag = 'smem constant byte address 0x4 - core index']
  #allocation1 [shape = 'u32[144,128]{1,0:T(1,128)}', space=vmem, size = 0x12000, scoped, tag = 'internal scratch']
  %s0 = inlined_call_operand.vmem [shape: f32[32,16], index: 0, kind: input, shape index: {}]
  %s1 = inlined_call_operand.hbm [shape: f32[8,32], index: 1, kind: input, shape index: {}]
  %s2 = inlined_call_operand.hbm [shape: f32[16,96], index: 2, kind: input, shape index: {}]
  %s3 = inlined_call_operand.vmem [shape: f32[32,96], index: 3, kind: input, shape index: {}]
  %s4 = inlined_call_operand.hbm [shape: f32[1,96], index: 4, kind: input, shape index: {}]
  %s5 = inlined_call_operand.hbm [shape: f32[1,32], index: 5, kind: input, shape index: {}]
  %s6 = inlined_call_operand.hbm [shape: f32[32,96], index: 6, kind: input, shape index: {}]
  %s7 = inlined_call_operand.hbm [shape: f32[32,96], index: 7, kind: input, shape index: {}]
  %s8 = inlined_call_operand.hbm [shape: f32[1,32], index: 8, kind: input, shape index: {}]
  %s9 = inlined_call_operand.hbm [shape: f32[1,96], index: 9, kind: input, shape index: {}]
  %s10 = inlined_call_operand.vmem [shape: f32[32,128], index: 10, kind: input, shape index: {}]
  %s11 = inlined_call_operand.vmem [shape: f32[1,128], index: 11, kind: input, shape index: {}]
  %s12 = inlined_call_operand.hbm [shape: f32[32,128], index: 12, kind: output, shape index: {0}]
  %s13 = inlined_call_operand.hbm [shape: f32[8,32], index: 13, kind: output, shape index: {1}]
  %14 = xla_tuple %s12, %s13
  %s15 = sld [smem:[#allocation0]]
  $region98: #{tpu_custom_call.1} parent=0
    _
  %s17 = ssub.s32 1, %s15
  %s18 = scalar_select 0, %s17, %s15
  $region1: #{tpu_custom_call.1} parent=0
    #allocation2 [shape = 'u8[4096]{0}', space=vmem, size = 0x1000, scoped, tag = 'input window, operand 1, single buffered']
    #allocation3 [shape = 's32[1]{0}', space=sflag, size = 0x4, scoped, tag = 'scoped memory for tpu_custom_call.1']
    #allocation4 [shape = 's32[1]{0}', space=sflag, size = 0x4, scoped, tag = 'scoped memory for tpu_custom_call.1']
    #allocation5 [shape = 'u8[8192]{0}', space=vmem, size = 0x2000, scoped, tag = 'input window, operand 2, single buffered']
    #allocation6 [shape = 's32[1]{0}', space=sflag, size = 0x4, scoped, tag = 'scoped memory for tpu_custom_call.1']
    #allocation7 [shape = 'u8[512]{0}', space=vmem, size = 0x400, scoped, tag = 'input window, operand 4, single buffered']
    #allocation8 [shape = 'u8[512]{0}', space=vmem, size = 0x400, scoped, tag = 'input window, operand 5, single buffered']
    #allocation9 [shape = 's32[1]{0}', space=sflag, size = 0x4, scoped, tag = 'scoped memory for tpu_custom_call.1']
    #allocation10 [shape = 'u8[16384]{0}', space=vmem, size = 0x4000, scoped, tag = 'input window, operand 6, single buffered']
    #allocation11 [shape = 'u8[16384]{0}', space=vmem, size = 0x4000, scoped, tag = 'input window, operand 7, single buffered']
    #allocation12 [shape = 's32[1]{0}', space=sflag, size = 0x4, scoped, tag = 'scoped memory for tpu_custom_call.1']
    #allocation13 [shape = 'u8[512]{0}', space=vmem, size = 0x400, scoped, tag = 'input window, operand 8, single buffered']
    #allocation14 [shape = 'u8[512]{0}', space=vmem, size = 0x400, scoped, tag = 'input window, operand 9, single buffered']
    #allocation15 [shape = 's32[1]{0}', space=sflag, size = 0x4, scoped, tag = 'scoped memory for tpu_custom_call.1']
    #allocation16 [shape = 'u8[16384]{0}', space=vmem, size = 0x4000, scoped, tag = 'output window, operand 0, single buffered']
    #allocation17 [shape = 'u8[4096]{0}', space=vmem, size = 0x1000, scoped, tag = 'output window, operand 1, single buffered']
    #allocation18 [shape = 's32[1]{0}', space=sflag, size = 0x4, scoped, tag = 'scoped memory for tpu_custom_call.1']
    %19 = vsyncpa [#allocation3], 0
    %20 = vsyncpa [#allocation6], 0
    %21 = vsyncpa [#allocation9], 0
    %22 = vsyncpa [#allocation12], 0
    %23 = vsyncpa [#allocation15], 0
    %24 = vsyncpa [#allocation4], 0
    %25 = vsyncpa [#allocation18], 0
    // Predicated region
    $region2: #{tpu_custom_call.1} parent=1 // pred_check
      _
    $region3: #{tpu_custom_call.1} parent=1 // pred_check_branch
      %27 = sbr.rel (0) target = $region5
    $region4: #{tpu_custom_call.1} parent=1 // pred_region
      _
    $region5: #{tpu_custom_call.1} parent=1 // pred_fallthru
      _
    // Predicated region
    $region6: #{tpu_custom_call.1} parent=1 // pred_check
      _
    $region7: #{tpu_custom_call.1} parent=1 // pred_check_branch
      %29 = sbr.rel (0) target = $region9
    $region8: #{tpu_custom_call.1} parent=1 // pred_region
      %s31 = ssub.s32 128, 128
      %32 = vsyncadd [#allocation3], %s31
      %s34 = sshll.u32 [#allocation2], 4
      %s35 = int_to_ptr.vmem [resolvable:$true] %s34
      %37 = dma.hbm_to_vmem [thread:$0]  %s1, 128, %s35, [#allocation3]
    $region9: #{tpu_custom_call.1} parent=1 // pred_fallthru
      _
    // Predicated region
    $region10: #{tpu_custom_call.1} parent=1 // pred_check
      _
    $region11: #{tpu_custom_call.1} parent=1 // pred_check_branch
      %39 = sbr.rel (0) target = $region13
    $region12: #{tpu_custom_call.1} parent=1 // pred_region
      %s41 = ssub.s32 256, 256
      %42 = vsyncadd [#allocation6], %s41
      %s43 = sshll.u32 [#allocation5], 4
      %s44 = int_to_ptr.vmem [resolvable:$true] %s43
      %49 = dma.hbm_to_vmem [thread:$0]  %s2, 256, %s44, [#allocation6], 128, 128, 8
    $region13: #{tpu_custom_call.1} parent=1 // pred_fallthru
      _
    // Predicated region
    $region14: #{tpu_custom_call.1} parent=1 // pred_check
      _
    $region15: #{tpu_custom_call.1} parent=1 // pred_check_branch
      %51 = sbr.rel (0) target = $region17
    $region16: #{tpu_custom_call.1} parent=1 // pred_region
      _
    $region17: #{tpu_custom_call.1} parent=1 // pred_fallthru
      _
    // Predicated region
    $region18: #{tpu_custom_call.1} parent=1 // pred_check
      _
    $region19: #{tpu_custom_call.1} parent=1 // pred_check_branch
      %53 = sbr.rel (0) target = $region21
    $region20: #{tpu_custom_call.1} parent=1 // pred_region
      %s55 = ssub.s32 16, 16
      %56 = vsyncadd [#allocation6], %s55
      %s58 = sshll.u32 [#allocation7], 4
      %s59 = int_to_ptr.vmem [resolvable:$true] %s58
      %61 = dma.hbm_to_vmem [thread:$0]  %s4, 16, %s59, [#allocation6]
    $region21: #{tpu_custom_call.1} parent=1 // pred_fallthru
      _
    // Predicated region
    $region22: #{tpu_custom_call.1} parent=1 // pred_check
      _
    $region23: #{tpu_custom_call.1} parent=1 // pred_check_branch
      %63 = sbr.rel (0) target = $region25
    $region24: #{tpu_custom_call.1} parent=1 // pred_region
      %s65 = ssub.s32 16, 16
      %66 = vsyncadd [#allocation9], %s65
      %s68 = sshll.u32 [#allocation8], 4
      %s69 = int_to_ptr.vmem [resolvable:$true] %s68
      %71 = dma.hbm_to_vmem [thread:$0]  %s5, 16, %s69, [#allocation9]
    $region25: #{tpu_custom_call.1} parent=1 // pred_fallthru
      _
    // Predicated region
    $region26: #{tpu_custom_call.1} parent=1 // pred_check
      _
    $region27: #{tpu_custom_call.1} parent=1 // pred_check_branch
      %73 = sbr.rel (0) target = $region29
    $region28: #{tpu_custom_call.1} parent=1 // pred_region
      %s75 = ssub.s32 512, 512
      %76 = vsyncadd [#allocation9], %s75
      %s77 = sshll.u32 [#allocation10], 4
      %s78 = int_to_ptr.vmem [resolvable:$true] %s77
      %83 = dma.hbm_to_vmem [thread:$0]  %s6, 512, %s78, [#allocation9], 128, 128, 8
    $region29: #{tpu_custom_call.1} parent=1 // pred_fallthru
      _
    // Predicated region
    $region30: #{tpu_custom_call.1} parent=1 // pred_check
      _
    $region31: #{tpu_custom_call.1} parent=1 // pred_check_branch
      %85 = sbr.rel (0) target = $region33
    $region32: #{tpu_custom_call.1} parent=1 // pred_region
      %s87 = ssub.s32 512, 512
      %88 = vsyncadd [#allocation12], %s87
      %s89 = sshll.u32 [#allocation11], 4
      %s90 = int_to_ptr.vmem [resolvable:$true] %s89
      %95 = dma.hbm_to_vmem [thread:$0]  %s7, 512, %s90, [#allocation12], 128, 128, 8
    $region33: #{tpu_custom_call.1} parent=1 // pred_fallthru
      _
    // Predicated region
    $region34: #{tpu_custom_call.1} parent=1 // pred_check
      _
    $region35: #{tpu_custom_call.1} parent=1 // pred_check_branch
      %97 = sbr.rel (0) target = $region37
    $region36: #{tpu_custom_call.1} parent=1 // pred_region
      %s99 = ssub.s32 16, 16
      %100 = vsyncadd [#allocation12], %s99
      %s102 = sshll.u32 [#allocation13], 4
      %s103 = int_to_ptr.vmem [resolvable:$true] %s102
      %105 = dma.hbm_to_vmem [thread:$0]  %s8, 16, %s103, [#allocation12]
    $region37: #{tpu_custom_call.1} parent=1 // pred_fallthru
      _
    // Predicated region
    $region38: #{tpu_custom_call.1} parent=1 // pred_check
      _
    $region39: #{tpu_custom_call.1} parent=1 // pred_check_branch
      %107 = sbr.rel (0) target = $region41
    $region40: #{tpu_custom_call.1} parent=1 // pred_region
      %s109 = ssub.s32 16, 16
      %110 = vsyncadd [#allocation15], %s109
      %s112 = sshll.u32 [#allocation14], 4
      %s113 = int_to_ptr.vmem [resolvable:$true] %s112
      %115 = dma.hbm_to_vmem [thread:$0]  %s9, 16, %s113, [#allocation15]
    $region41: #{tpu_custom_call.1} parent=1 // pred_fallthru
      _
    // Predicated region
    $region42: #{tpu_custom_call.1} parent=1 // pred_check
      _
    $region43: #{tpu_custom_call.1} parent=1 // pred_check_branch
      %117 = sbr.rel (0) target = $region45
    $region44: #{tpu_custom_call.1} parent=1 // pred_region
      _
    $region45: #{tpu_custom_call.1} parent=1 // pred_fallthru
      _
    // Predicated region
    $region46: #{tpu_custom_call.1} parent=1 // pred_check
      _
    $region47: #{tpu_custom_call.1} parent=1 // pred_check_branch
      %119 = sbr.rel (0) target = $region49
    $region48: #{tpu_custom_call.1} parent=1 // pred_region
      _
    $region49: #{tpu_custom_call.1} parent=1 // pred_fallthru
      _
    // Predicated region
    $region50: #{tpu_custom_call.1} parent=1 // pred_check
      _
    $region51: #{tpu_custom_call.1} parent=1 // pred_check_branch
      %121 = sbr.rel (0) target = $region53
    $region52: #{tpu_custom_call.1} parent=1 // pred_region
      %122 = dma.done [#allocation3], 128
    $region53: #{tpu_custom_call.1} parent=1 // pred_fallthru
      _
    // Predicated region
    $region54: #{tpu_custom_call.1} parent=1 // pred_check
      _
    $region55: #{tpu_custom_call.1} parent=1 // pred_check_branch
      %124 = sbr.rel (0) target = $region57
    $region56: #{tpu_custom_call.1} parent=1 // pred_region
      %125 = dma.done [#allocation6], 256
    $region57: #{tpu_custom_call.1} parent=1 // pred_fallthru
      _
    // Predicated region
    $region58: #{tpu_custom_call.1} parent=1 // pred_check
      _
    $region59: #{tpu_custom_call.1} parent=1 // pred_check_branch
      %127 = sbr.rel (0) target = $region61
    $region60: #{tpu_custom_call.1} parent=1 // pred_region
      %128 = dma.done [#allocation6], 16
    $region61: #{tpu_custom_call.1} parent=1 // pred_fallthru
      _
    // Predicated region
    $region62: #{tpu_custom_call.1} parent=1 // pred_check
      _
    $region63: #{tpu_custom_call.1} parent=1 // pred_check_branch
      %130 = sbr.rel (0) target = $region65
    $region64: #{tpu_custom_call.1} parent=1 // pred_region
      %131 = dma.done [#allocation9], 16
    $region65: #{tpu_custom_call.1} parent=1 // pred_fallthru
      _
    // Predicated region
    $region66: #{tpu_custom_call.1} parent=1 // pred_check
      _
    $region67: #{tpu_custom_call.1} parent=1 // pred_check_branch
      %133 = sbr.rel (0) target = $region69
    $region68: #{tpu_custom_call.1} parent=1 // pred_region
      %134 = dma.done [#allocation9], 512
    $region69: #{tpu_custom_call.1} parent=1 // pred_fallthru
      _
    // Predicated region
    $region70: #{tpu_custom_call.1} parent=1 // pred_check
      _
    $region71: #{tpu_custom_call.1} parent=1 // pred_check_branch
      %136 = sbr.rel (0) target = $region73
    $region72: #{tpu_custom_call.1} parent=1 // pred_region
      %137 = dma.done [#allocation12], 512
    $region73: #{tpu_custom_call.1} parent=1 // pred_fallthru
      _
    // Predicated region
    $region74: #{tpu_custom_call.1} parent=1 // pred_check
      _
    $region75: #{tpu_custom_call.1} parent=1 // pred_check_branch
      %139 = sbr.rel (0) target = $region77
    $region76: #{tpu_custom_call.1} parent=1 // pred_region
      %140 = dma.done [#allocation12], 16
    $region77: #{tpu_custom_call.1} parent=1 // pred_fallthru
      _
    // Predicated region
    $region78: #{tpu_custom_call.1} parent=1 // pred_check
      _
    $region79: #{tpu_custom_call.1} parent=1 // pred_check_branch
      %142 = sbr.rel (0) target = $region81
    $region80: #{tpu_custom_call.1} parent=1 // pred_region
      %143 = dma.done [#allocation15], 16
    $region81: #{tpu_custom_call.1} parent=1 // pred_fallthru
      _
    %v144 = vld [vmem:[%s3] sm:$0xff]
    %v145 = vld [vmem:[%s3 + $0x8] sm:$0xff]
    %v146 = vld [vmem:[%s3 + $0x10] sm:$0xff]
    %v147 = vld [vmem:[%s3 + $0x18] sm:$0xff]
    %v148 = vld [vmem:[#allocation10] sm:$0xff]
    %v149 = vld [vmem:[#allocation10 + $0x8] sm:$0xff]
    %v150 = vld [vmem:[#allocation10 + $0x10] sm:$0xff]
    %v151 = vld [vmem:[#allocation10 + $0x18] sm:$0xff]
    %v152 = vld [vmem:[#allocation11] sm:$0xff]
    %v153 = vld [vmem:[#allocation11 + $0x8] sm:$0xff]
    %v154 = vld [vmem:[#allocation11 + $0x10] sm:$0xff]
    %v155 = vld [vmem:[#allocation11 + $0x18] sm:$0xff]
    %v156 = vld [vmem:[#allocation8] sm:$0x1]
    %v158 = vlaneseq
    %v159 = vshrl.u32 %v158, 7
    %v160 = vsub.s32 0, %v159
    %v161 = vrot.slane %v156, %v160
    %v162 = vld [vmem:[#allocation13] sm:$0x1]
    %v164 = vlaneseq
    %v165 = vshrl.u32 %v164, 7
    %v166 = vsub.s32 0, %v165
    %v167 = vrot.slane %v162, %v166
    %v168 = vld [vmem:[#allocation14] sm:$0x1]
    %v170 = vlaneseq
    %v171 = vshrl.u32 %v170, 7
    %v172 = vsub.s32 0, %v171
    %v173 = vrot.slane %v168, %v172
    %v175 = vld [vmem:[%s0] sm:$0xff]
    %v176 = vld [vmem:[%s0 + $0x8] sm:$0xff]
    %v177 = vld [vmem:[%s0 + $0x10] sm:$0xff]
    %v178 = vld [vmem:[%s0 + $0x18] sm:$0xff]
    %v179 = vld [vmem:[#allocation5] sm:$0xff]
    %v180 = vld [vmem:[#allocation5 + $0x8] sm:$0xff]
    %v181 = vld [vmem:[#allocation7] sm:$0x1]
    %v183 = vlaneseq
    %v184 = vshrl.u32 %v183, 7
    %v185 = vsub.s32 0, %v184
    %v186 = vrot.slane %v181, %v185
    %vm188 = vcmask 130048
    %v190 = vsel %vm188, %v175, 0
    %v193 = vsel %vm188, %v176, 0
    %v196 = vsel %vm188, %v177, 0
    %v199 = vsel %vm188, %v178, 0
    %201 = vmatprep.subr.mxu0 0.0
    %202 = vmatpush1.msra.mxu0 0.0
    %203 = vmatprep.subr.mxu0 0.0
    %204 = vmatpush1.msra.mxu0 0.0
    %205 = vmatprep.subr.mxu0 0.0
    %206 = vmatpush1.msra.mxu0 0.0
    %207 = vmatprep.subr.mxu0 0.0
    %208 = vmatpush1.msra.mxu0 0.0
    %209 = vmatprep.subr.mxu0 0.0
    %210 = vmatpush1.msra.mxu0 0.0
    %211 = vmatprep.subr.mxu0 0.0
    %212 = vmatpush1.msra.mxu0 0.0
    %213 = vmatprep.subr.mxu0 0.0
    %214 = vmatpush1.msra.mxu0 0.0
    %215 = vmatprep.subr.mxu0 0.0
    %216 = vmatpush1.msra.mxu0 0.0
    %217 = vmatprep.subr.mxu0 0.0
    %218 = vmatpush1.msra.mxu0 0.0
    %219 = vmatprep.subr.mxu0 0.0
    %220 = vmatpush1.msra.mxu0 0.0
    %221 = vmatprep.subr.mxu0 0.0
    %222 = vmatpush1.msra.mxu0 0.0
    %223 = vmatprep.subr.mxu0 0.0
    %224 = vmatpush1.msra.mxu0 0.0
    %225 = vmatprep.subr.mxu0 0.0
    %226 = vmatpush1.msra.mxu0 0.0
    %227 = vmatprep.subr.mxu0 0.0
    %228 = vmatpush1.msra.mxu0 0.0
    %229 = vmatprep.subr.mxu0 0.0
    %230 = vmatpush1.msra.mxu0 %v180
    %231 = vmatprep.subr.mxu0 0.0
    %232 = vmatpush1.msra.mxu0 %v179
    %233 = vmatprep.subr.mxu0 0.0
    %234 = vmatpush2.msra.mxu0 0.0
    %235 = vmatprep.subr.mxu0 0.0
    %236 = vmatpush2.msra.mxu0 0.0
    %237 = vmatprep.subr.mxu0 0.0
    %238 = vmatpush2.msra.mxu0 0.0
    %239 = vmatprep.subr.mxu0 0.0
    %240 = vmatpush2.msra.mxu0 0.0
    %241 = vmatprep.subr.mxu0 0.0
    %242 = vmatpush2.msra.mxu0 0.0
    %243 = vmatprep.subr.mxu0 0.0
    %244 = vmatpush2.msra.mxu0 0.0
    %245 = vmatprep.subr.mxu0 0.0
    %246 = vmatpush2.msra.mxu0 0.0
    %247 = vmatprep.subr.mxu0 0.0
    %248 = vmatpush2.msra.mxu0 0.0
    %249 = vmatprep.subr.mxu0 0.0
    %250 = vmatpush2.msra.mxu0 0.0
    %251 = vmatprep.subr.mxu0 0.0
    %252 = vmatpush2.msra.mxu0 0.0
    %253 = vmatprep.subr.mxu0 0.0
    %254 = vmatpush2.msra.mxu0 0.0
    %255 = vmatprep.subr.mxu0 0.0
    %256 = vmatpush2.msra.mxu0 0.0
    %257 = vmatprep.subr.mxu0 0.0
    %258 = vmatpush2.msra.mxu0 0.0
    %259 = vmatprep.subr.mxu0 0.0
    %260 = vmatpush2.msra.mxu0 0.0
    %261 = vmatprep.subr.mxu0 0.0
    %262 = vmatpush2.msra.mxu0 0.0
    %263 = vmatprep.subr.mxu0 0.0
    %264 = vmatpush2.msra.mxu0 0.0
    %265 = vmatprep.mubr.f32.mxu0 0.0
    %266 = vmatmul.mubr.f32.gmra.mxu0 %v190
    %v267 = vpop.f32.mrf.mxu0
    %v268 = vadd.f32 %v186, %v267
    %v269 = vpop.f32.mrf.mxu0
    %270 = vmatprep.mubr.f32.mxu0 0.0
    %271 = vmatmul.mubr.f32.gmra.mxu0 %v193
    %v272 = vpop.f32.mrf.mxu0
    %v273 = vadd.f32 %v186, %v272
    %v274 = vpop.f32.mrf.mxu0
    %275 = vmatprep.mubr.f32.mxu0 0.0
    %276 = vmatmul.mubr.f32.gmra.mxu0 %v196
    %v277 = vpop.f32.mrf.mxu0
    %v278 = vadd.f32 %v186, %v277
    %v279 = vpop.f32.mrf.mxu0
    %280 = vmatprep.mubr.f32.mxu0 0.0
    %281 = vmatmul.mubr.f32.gmra.mxu0 %v199
    %v282 = vpop.f32.mrf.mxu0
    %v283 = vadd.f32 %v186, %v282
    %v284 = vpop.f32.mrf.mxu0
    %285 = vdwg.mxu0
    %v286 = vld [vmem:[#allocation2] sm:$0xff]
    %v288 = vrot.slane %v286, 4
    %vm289 = vcmask 261120
    %v290 = vsel %vm289, %v288, 0
    %292 = vmatprep.subr.mxu0 0.0
    %293 = vmatpush1.msra.mxu0 0.0
    %294 = vmatprep.subr.mxu0 0.0
    %295 = vmatpush1.msra.mxu0 0.0
    %296 = vmatprep.subr.mxu0 0.0
    %297 = vmatpush1.msra.mxu0 0.0
    %298 = vmatprep.subr.mxu0 0.0
    %299 = vmatpush1.msra.mxu0 0.0
    %300 = vmatprep.subr.mxu0 0.0
    %301 = vmatpush1.msra.mxu0 0.0
    %302 = vmatprep.subr.mxu0 0.0
    %303 = vmatpush1.msra.mxu0 0.0
    %304 = vmatprep.subr.mxu0 0.0
    %305 = vmatpush1.msra.mxu0 0.0
    %306 = vmatprep.subr.mxu0 0.0
    %307 = vmatpush1.msra.mxu0 0.0
    %308 = vmatprep.subr.mxu0 0.0
    %309 = vmatpush1.msra.mxu0 0.0
    %310 = vmatprep.subr.mxu0 0.0
    %311 = vmatpush1.msra.mxu0 0.0
    %312 = vmatprep.subr.mxu0 0.0
    %313 = vmatpush1.msra.mxu0 0.0
    %314 = vmatprep.subr.mxu0 0.0
    %315 = vmatpush1.msra.mxu0 0.0
    %316 = vmatprep.subr.mxu0 0.0
    %317 = vmatpush1.msra.mxu0 %v155
    %318 = vmatprep.subr.mxu0 0.0
    %319 = vmatpush1.msra.mxu0 %v154
    %320 = vmatprep.subr.mxu0 0.0
    %321 = vmatpush1.msra.mxu0 %v153
    %322 = vmatprep.subr.mxu0 0.0
    %323 = vmatpush1.msra.mxu0 %v152
    %324 = vmatprep.subr.mxu0 0.0
    %325 = vmatpush2.msra.mxu0 0.0
    %326 = vmatprep.subr.mxu0 0.0
    %327 = vmatpush2.msra.mxu0 0.0
    %328 = vmatprep.subr.mxu0 0.0
    %329 = vmatpush2.msra.mxu0 0.0
    %330 = vmatprep.subr.mxu0 0.0
    %331 = vmatpush2.msra.mxu0 0.0
    %332 = vmatprep.subr.mxu0 0.0
    %333 = vmatpush2.msra.mxu0 0.0
    %334 = vmatprep.subr.mxu0 0.0
    %335 = vmatpush2.msra.mxu0 0.0
    %336 = vmatprep.subr.mxu0 0.0
    %337 = vmatpush2.msra.mxu0 0.0
    %338 = vmatprep.subr.mxu0 0.0
    %339 = vmatpush2.msra.mxu0 0.0
    %340 = vmatprep.subr.mxu0 0.0
    %341 = vmatpush2.msra.mxu0 0.0
    %342 = vmatprep.subr.mxu0 0.0
    %343 = vmatpush2.msra.mxu0 0.0
    %344 = vmatprep.subr.mxu0 0.0
    %345 = vmatpush2.msra.mxu0 0.0
    %346 = vmatprep.subr.mxu0 0.0
    %347 = vmatpush2.msra.mxu0 0.0
    %348 = vmatprep.subr.mxu0 0.0
    %349 = vmatpush2.msra.mxu0 0.0
    %350 = vmatprep.subr.mxu0 0.0
    %351 = vmatpush2.msra.mxu0 0.0
    %352 = vmatprep.subr.mxu0 0.0
    %353 = vmatpush2.msra.mxu0 0.0
    %354 = vmatprep.subr.mxu0 0.0
    %355 = vmatpush2.msra.mxu0 0.0
    %356 = vmatprep.mubr.f32.mxu0 0.0
    %357 = vmatmul.mubr.f32.gmra.mxu0 %v290
    %v358 = vpop.f32.mrf.mxu0
    %v359 = vadd.f32 %v173, %v358
    %v360 = vpop.f32.mrf.mxu0
    %361 = vdwg.mxu0
    %v362 = vsel %vm289, %v286, 0
    %364 = vmatprep.subr.mxu0 0.0
    %365 = vmatpush1.msra.mxu0 0.0
    %366 = vmatprep.subr.mxu0 0.0
    %367 = vmatpush1.msra.mxu0 0.0
    %368 = vmatprep.subr.mxu0 0.0
    %369 = vmatpush1.msra.mxu0 0.0
    %370 = vmatprep.subr.mxu0 0.0
    %371 = vmatpush1.msra.mxu0 0.0
    %372 = vmatprep.subr.mxu0 0.0
    %373 = vmatpush1.msra.mxu0 0.0
    %374 = vmatprep.subr.mxu0 0.0
    %375 = vmatpush1.msra.mxu0 0.0
    %376 = vmatprep.subr.mxu0 0.0
    %377 = vmatpush1.msra.mxu0 0.0
    %378 = vmatprep.subr.mxu0 0.0
    %379 = vmatpush1.msra.mxu0 0.0
    %380 = vmatprep.subr.mxu0 0.0
    %381 = vmatpush1.msra.mxu0 0.0
    %382 = vmatprep.subr.mxu0 0.0
    %383 = vmatpush1.msra.mxu0 0.0
    %384 = vmatprep.subr.mxu0 0.0
    %385 = vmatpush1.msra.mxu0 0.0
    %386 = vmatprep.subr.mxu0 0.0
    %387 = vmatpush1.msra.mxu0 0.0
    %388 = vmatprep.subr.mxu0 0.0
    %389 = vmatpush1.msra.mxu0 %v147
    %390 = vmatprep.subr.mxu0 0.0
    %391 = vmatpush1.msra.mxu0 %v146
    %392 = vmatprep.subr.mxu0 0.0
    %393 = vmatpush1.msra.mxu0 %v145
    %394 = vmatprep.subr.mxu0 0.0
    %395 = vmatpush1.msra.mxu0 %v144
    %396 = vmatprep.subr.mxu0 0.0
    %397 = vmatpush2.msra.mxu0 0.0
    %398 = vmatprep.subr.mxu0 0.0
    %399 = vmatpush2.msra.mxu0 0.0
    %400 = vmatprep.subr.mxu0 0.0
    %401 = vmatpush2.msra.mxu0 0.0
    %402 = vmatprep.subr.mxu0 0.0
    %403 = vmatpush2.msra.mxu0 0.0
    %404 = vmatprep.subr.mxu0 0.0
    %405 = vmatpush2.msra.mxu0 0.0
    %406 = vmatprep.subr.mxu0 0.0
    %407 = vmatpush2.msra.mxu0 0.0
    %408 = vmatprep.subr.mxu0 0.0
    %409 = vmatpush2.msra.mxu0 0.0
    %410 = vmatprep.subr.mxu0 0.0
    %411 = vmatpush2.msra.mxu0 0.0
    %412 = vmatprep.subr.mxu0 0.0
    %413 = vmatpush2.msra.mxu0 0.0
    %414 = vmatprep.subr.mxu0 0.0
    %415 = vmatpush2.msra.mxu0 0.0
    %416 = vmatprep.subr.mxu0 0.0
    %417 = vmatpush2.msra.mxu0 0.0
    %418 = vmatprep.subr.mxu0 0.0
    %419 = vmatpush2.msra.mxu0 0.0
    %420 = vmatprep.subr.mxu0 0.0
    %421 = vmatpush2.msra.mxu0 0.0
    %422 = vmatprep.subr.mxu0 0.0
    %423 = vmatpush2.msra.mxu0 0.0
    %424 = vmatprep.subr.mxu0 0.0
    %425 = vmatpush2.msra.mxu0 0.0
    %426 = vmatprep.subr.mxu0 0.0
    %427 = vmatpush2.msra.mxu0 0.0
    %428 = vmatprep.mubr.f32.mxu0 0.0
    %429 = vmatmul.mubr.f32.gmra.mxu0 %v362
    %v430 = vpop.f32.mrf.mxu0
    %v431 = vadd.f32 0.0, %v430
    %v432 = vpop.f32.mrf.mxu0
    %433 = vdwg.mxu0
    %v434 = vadd.f32 %v268, %v431
    %v435 = vxor.u32 %v434, 2147483648
    %v436 = vmul.f32 %v435, 1.442695
    %v437 = vpow.pop %v436
    %v438 = vadd.f32 %v437, 1.0
    %v439 = vrcp.pop %v438
    %v440 = vmul.f32 1.0, %v439
    %441 = vrot.lane.b32.xlu0 %v161, 64
    %v442 = vpop.permute.xlu0 %441
    %v444 = vadd.f32 %v431, %v442
    %446 = vrot.lane.b32.xlu0 %v444, 64
    %v447 = vpop.permute.xlu0 %446
    %v449 = vmul.f32 %v440, %v447
    %451 = vrot.lane.b32.xlu0 %v449, 64
    %v452 = vpop.permute.xlu0 %451
    %v454 = vadd.f32 %v268, %v452
    %v455 = vtanh.pop %v454
    %v456 = vsub.f32 1.0, %v440
    %458 = vrot.lane.b32.xlu0 %v455, 96
    %v459 = vpop.permute.xlu0 %458
    %v461 = vmul.f32 %v456, %v459
    %462 = vrot.lane.b32.xlu0 %v286, 32
    %v463 = vpop.permute.xlu0 %462
    %v465 = vmul.f32 %v440, %v463
    %v466 = vadd.f32 %v461, %v465
    %468 = vrot.lane.b32.xlu0 %v466, 96
    %v469 = vpop.permute.xlu0 %468
    %v470 = vsel %vm289, %v469, 0
    %472 = vmatprep.subr.mxu0 0.0
    %473 = vmatpush1.msra.mxu0 0.0
    %474 = vmatprep.subr.mxu0 0.0
    %475 = vmatpush1.msra.mxu0 0.0
    %476 = vmatprep.subr.mxu0 0.0
    %477 = vmatpush1.msra.mxu0 0.0
    %478 = vmatprep.subr.mxu0 0.0
    %479 = vmatpush1.msra.mxu0 0.0
    %480 = vmatprep.subr.mxu0 0.0
    %481 = vmatpush1.msra.mxu0 0.0
    %482 = vmatprep.subr.mxu0 0.0
    %483 = vmatpush1.msra.mxu0 0.0
    %484 = vmatprep.subr.mxu0 0.0
    %485 = vmatpush1.msra.mxu0 0.0
    %486 = vmatprep.subr.mxu0 0.0
    %487 = vmatpush1.msra.mxu0 0.0
    %488 = vmatprep.subr.mxu0 0.0
    %489 = vmatpush1.msra.mxu0 0.0
    %490 = vmatprep.subr.mxu0 0.0
    %491 = vmatpush1.msra.mxu0 0.0
    %492 = vmatprep.subr.mxu0 0.0
    %493 = vmatpush1.msra.mxu0 0.0
    %494 = vmatprep.subr.mxu0 0.0
    %495 = vmatpush1.msra.mxu0 0.0
    %496 = vmatprep.subr.mxu0 0.0
    %497 = vmatpush1.msra.mxu0 %v151
    %498 = vmatprep.subr.mxu0 0.0
    %499 = vmatpush1.msra.mxu0 %v150
    %500 = vmatprep.subr.mxu0 0.0
    %501 = vmatpush1.msra.mxu0 %v149
    %502 = vmatprep.subr.mxu0 0.0
    %503 = vmatpush1.msra.mxu0 %v148
    %504 = vmatprep.subr.mxu0 0.0
    %505 = vmatpush2.msra.mxu0 0.0
    %506 = vmatprep.subr.mxu0 0.0
    %507 = vmatpush2.msra.mxu0 0.0
    %508 = vmatprep.subr.mxu0 0.0
    %509 = vmatpush2.msra.mxu0 0.0
    %510 = vmatprep.subr.mxu0 0.0
    %511 = vmatpush2.msra.mxu0 0.0
    %512 = vmatprep.subr.mxu0 0.0
    %513 = vmatpush2.msra.mxu0 0.0
    %514 = vmatprep.subr.mxu0 0.0
    %515 = vmatpush2.msra.mxu0 0.0
    %516 = vmatprep.subr.mxu0 0.0
    %517 = vmatpush2.msra.mxu0 0.0
    %518 = vmatprep.subr.mxu0 0.0
    %519 = vmatpush2.msra.mxu0 0.0
    %520 = vmatprep.subr.mxu0 0.0
    %521 = vmatpush2.msra.mxu0 0.0
    %522 = vmatprep.subr.mxu0 0.0
    %523 = vmatpush2.msra.mxu0 0.0
    %524 = vmatprep.subr.mxu0 0.0
    %525 = vmatpush2.msra.mxu0 0.0
    %526 = vmatprep.subr.mxu0 0.0
    %527 = vmatpush2.msra.mxu0 0.0
    %528 = vmatprep.subr.mxu0 0.0
    %529 = vmatpush2.msra.mxu0 0.0
    %530 = vmatprep.subr.mxu0 0.0
    %531 = vmatpush2.msra.mxu0 0.0
    %532 = vmatprep.subr.mxu0 0.0
    %533 = vmatpush2.msra.mxu0 0.0
    %534 = vmatprep.subr.mxu0 0.0
    %535 = vmatpush2.msra.mxu0 0.0
    %536 = vmatprep.mubr.f32.mxu0 0.0
    %537 = vmatmul.mubr.f32.gmra.mxu0 %v470
    %v538 = vpop.f32.mrf.mxu0
    %v539 = vadd.f32 0.0, %v538
    %v540 = vpop.f32.mrf.mxu0
    %541 = vdwg.mxu0
    %v542 = vadd.f32 %v539, %v359
    %v543 = vxor.u32 %v542, 2147483648
    %v544 = vmul.f32 %v543, 1.442695
    %v545 = vpow.pop %v544
    %v546 = vadd.f32 %v545, 1.0
    %v547 = vrcp.pop %v546
    %v548 = vmul.f32 1.0, %v547
    %549 = vrot.lane.b32.xlu0 %v167, 64
    %v550 = vpop.permute.xlu0 %549
    %v552 = vadd.f32 %v539, %v550
    %554 = vrot.lane.b32.xlu0 %v359, 64
    %v555 = vpop.permute.xlu0 %554
    %v557 = vmul.f32 %v548, %v555
    %559 = vrot.lane.b32.xlu0 %v557, 64
    %v560 = vpop.permute.xlu0 %559
    %v562 = vadd.f32 %v552, %v560
    %v563 = vtanh.pop %v562
    %v564 = vsub.f32 1.0, %v548
    %566 = vrot.lane.b32.xlu0 %v563, 96
    %v567 = vpop.permute.xlu0 %566
    %v569 = vmul.f32 %v564, %v567
    %570 = vrot.lane.b32.xlu0 %v288, 32
    %v571 = vpop.permute.xlu0 %570
    %v573 = vmul.f32 %v548, %v571
    %v574 = vadd.f32 %v569, %v573
    %576 = vrot.lane.b32.xlu0 %v574, 96
    %v577 = vpop.permute.xlu0 %576
    %v578 = vsel %vm289, %v577, 0
    %580 = vmatprep.subr.mxu0 0.0
    %581 = vmatpush1.msra.mxu0 0.0
    %582 = vmatprep.subr.mxu0 0.0
    %583 = vmatpush1.msra.mxu0 0.0
    %584 = vmatprep.subr.mxu0 0.0
    %585 = vmatpush1.msra.mxu0 0.0
    %586 = vmatprep.subr.mxu0 0.0
    %587 = vmatpush1.msra.mxu0 0.0
    %588 = vmatprep.subr.mxu0 0.0
    %589 = vmatpush1.msra.mxu0 0.0
    %590 = vmatprep.subr.mxu0 0.0
    %591 = vmatpush1.msra.mxu0 0.0
    %592 = vmatprep.subr.mxu0 0.0
    %593 = vmatpush1.msra.mxu0 0.0
    %594 = vmatprep.subr.mxu0 0.0
    %595 = vmatpush1.msra.mxu0 0.0
    %596 = vmatprep.subr.mxu0 0.0
    %597 = vmatpush1.msra.mxu0 0.0
    %598 = vmatprep.subr.mxu0 0.0
    %599 = vmatpush1.msra.mxu0 0.0
    %600 = vmatprep.subr.mxu0 0.0
    %601 = vmatpush1.msra.mxu0 0.0
    %602 = vmatprep.subr.mxu0 0.0
    %603 = vmatpush1.msra.mxu0 0.0
    %604 = vmatprep.subr.mxu0 0.0
    %605 = vmatpush1.msra.mxu0 %v155
    %606 = vmatprep.subr.mxu0 0.0
    %607 = vmatpush1.msra.mxu0 %v154
    %608 = vmatprep.subr.mxu0 0.0
    %609 = vmatpush1.msra.mxu0 %v153
    %610 = vmatprep.subr.mxu0 0.0
    %611 = vmatpush1.msra.mxu0 %v152
    %612 = vmatprep.subr.mxu0 0.0
    %613 = vmatpush2.msra.mxu0 0.0
    %614 = vmatprep.subr.mxu0 0.0
    %615 = vmatpush2.msra.mxu0 0.0
    %616 = vmatprep.subr.mxu0 0.0
    %617 = vmatpush2.msra.mxu0 0.0
    %618 = vmatprep.subr.mxu0 0.0
    %619 = vmatpush2.msra.mxu0 0.0
    %620 = vmatprep.subr.mxu0 0.0
    %621 = vmatpush2.msra.mxu0 0.0
    %622 = vmatprep.subr.mxu0 0.0
    %623 = vmatpush2.msra.mxu0 0.0
    %624 = vmatprep.subr.mxu0 0.0
    %625 = vmatpush2.msra.mxu0 0.0
    %626 = vmatprep.subr.mxu0 0.0
    %627 = vmatpush2.msra.mxu0 0.0
    %628 = vmatprep.subr.mxu0 0.0
    %629 = vmatpush2.msra.mxu0 0.0
    %630 = vmatprep.subr.mxu0 0.0
    %631 = vmatpush2.msra.mxu0 0.0
    %632 = vmatprep.subr.mxu0 0.0
    %633 = vmatpush2.msra.mxu0 0.0
    %634 = vmatprep.subr.mxu0 0.0
    %635 = vmatpush2.msra.mxu0 0.0
    %636 = vmatprep.subr.mxu0 0.0
    %637 = vmatpush2.msra.mxu0 0.0
    %638 = vmatprep.subr.mxu0 0.0
    %639 = vmatpush2.msra.mxu0 0.0
    %640 = vmatprep.subr.mxu0 0.0
    %641 = vmatpush2.msra.mxu0 0.0
    %642 = vmatprep.subr.mxu0 0.0
    %643 = vmatpush2.msra.mxu0 0.0
    %644 = vmatprep.mubr.f32.mxu0 0.0
    %645 = vmatmul.mubr.f32.gmra.mxu0 %v578
    %v646 = vpop.f32.mrf.mxu0
    %v647 = vadd.f32 %v173, %v646
    %v648 = vpop.f32.mrf.mxu0
    %649 = vdwg.mxu0
    %650 = vmatprep.subr.mxu0 0.0
    %651 = vmatpush1.msra.mxu0 0.0
    %652 = vmatprep.subr.mxu0 0.0
    %653 = vmatpush1.msra.mxu0 0.0
    %654 = vmatprep.subr.mxu0 0.0
    %655 = vmatpush1.msra.mxu0 0.0
    %656 = vmatprep.subr.mxu0 0.0
    %657 = vmatpush1.msra.mxu0 0.0
    %658 = vmatprep.subr.mxu0 0.0
    %659 = vmatpush1.msra.mxu0 0.0
    %660 = vmatprep.subr.mxu0 0.0
    %661 = vmatpush1.msra.mxu0 0.0
    %662 = vmatprep.subr.mxu0 0.0
    %663 = vmatpush1.msra.mxu0 0.0
    %664 = vmatprep.subr.mxu0 0.0
    %665 = vmatpush1.msra.mxu0 0.0
    %666 = vmatprep.subr.mxu0 0.0
    %667 = vmatpush1.msra.mxu0 0.0
    %668 = vmatprep.subr.mxu0 0.0
    %669 = vmatpush1.msra.mxu0 0.0
    %670 = vmatprep.subr.mxu0 0.0
    %671 = vmatpush1.msra.mxu0 0.0
    %672 = vmatprep.subr.mxu0 0.0
    %673 = vmatpush1.msra.mxu0 0.0
    %674 = vmatprep.subr.mxu0 0.0
    %675 = vmatpush1.msra.mxu0 %v147
    %676 = vmatprep.subr.mxu0 0.0
    %677 = vmatpush1.msra.mxu0 %v146
    %678 = vmatprep.subr.mxu0 0.0
    %679 = vmatpush1.msra.mxu0 %v145
    %680 = vmatprep.subr.mxu0 0.0
    %681 = vmatpush1.msra.mxu0 %v144
    %682 = vmatprep.subr.mxu0 0.0
    %683 = vmatpush2.msra.mxu0 0.0
    %684 = vmatprep.subr.mxu0 0.0
    %685 = vmatpush2.msra.mxu0 0.0
    %686 = vmatprep.subr.mxu0 0.0
    %687 = vmatpush2.msra.mxu0 0.0
    %688 = vmatprep.subr.mxu0 0.0
    %689 = vmatpush2.msra.mxu0 0.0
    %690 = vmatprep.subr.mxu0 0.0
    %691 = vmatpush2.msra.mxu0 0.0
    %692 = vmatprep.subr.mxu0 0.0
    %693 = vmatpush2.msra.mxu0 0.0
    %694 = vmatprep.subr.mxu0 0.0
    %695 = vmatpush2.msra.mxu0 0.0
    %696 = vmatprep.subr.mxu0 0.0
    %697 = vmatpush2.msra.mxu0 0.0
    %698 = vmatprep.subr.mxu0 0.0
    %699 = vmatpush2.msra.mxu0 0.0
    %700 = vmatprep.subr.mxu0 0.0
    %701 = vmatpush2.msra.mxu0 0.0
    %702 = vmatprep.subr.mxu0 0.0
    %703 = vmatpush2.msra.mxu0 0.0
    %704 = vmatprep.subr.mxu0 0.0
    %705 = vmatpush2.msra.mxu0 0.0
    %706 = vmatprep.subr.mxu0 0.0
    %707 = vmatpush2.msra.mxu0 0.0
    %708 = vmatprep.subr.mxu0 0.0
    %709 = vmatpush2.msra.mxu0 0.0
    %710 = vmatprep.subr.mxu0 0.0
    %711 = vmatpush2.msra.mxu0 0.0
    %712 = vmatprep.subr.mxu0 0.0
    %713 = vmatpush2.msra.mxu0 0.0
    %714 = vmatprep.mubr.f32.mxu0 0.0
    %715 = vmatmul.mubr.f32.gmra.mxu0 %v470
    %v716 = vpop.f32.mrf.mxu0
    %v717 = vadd.f32 0.0, %v716
    %v718 = vpop.f32.mrf.mxu0
    %719 = vdwg.mxu0
    %v721 = vrot.slane %v717, 4
    %v723 = vadd.f32 %v268, %v721
    %v724 = vxor.u32 %v723, 2147483648
    %v725 = vmul.f32 %v724, 1.442695
    %v726 = vpow.pop %v725
    %v727 = vadd.f32 %v726, 1.0
    %v728 = vrcp.pop %v727
    %v729 = vmul.f32 1.0, %v728
    %v730 = vadd.f32 %v717, %v442
    %v732 = vrot.slane %v730, 4
    %733 = vrot.lane.b32.xlu0 %v732, 64
    %v734 = vpop.permute.xlu0 %733
    %v736 = vmul.f32 %v729, %v734
    %738 = vrot.lane.b32.xlu0 %v736, 64
    %v739 = vpop.permute.xlu0 %738
    %v741 = vadd.f32 %v268, %v739
    %v742 = vtanh.pop %v741
    %v743 = vsub.f32 1.0, %v729
    %745 = vrot.lane.b32.xlu0 %v742, 96
    %v746 = vpop.permute.xlu0 %745
    %v748 = vmul.f32 %v743, %v746
    %v749 = vrot.slane %v466, 4
    %v751 = vmul.f32 %v729, %v749
    %v752 = vadd.f32 %v748, %v751
    %v754 = vrot.slane %v752, 4
    %755 = vrot.lane.b32.xlu0 %v754, 96
    %v756 = vpop.permute.xlu0 %755
    %v757 = vsel %vm289, %v756, 0
    %759 = vmatprep.subr.mxu0 0.0
    %760 = vmatpush1.msra.mxu0 0.0
    %761 = vmatprep.subr.mxu0 0.0
    %762 = vmatpush1.msra.mxu0 0.0
    %763 = vmatprep.subr.mxu0 0.0
    %764 = vmatpush1.msra.mxu0 0.0
    %765 = vmatprep.subr.mxu0 0.0
    %766 = vmatpush1.msra.mxu0 0.0
    %767 = vmatprep.subr.mxu0 0.0
    %768 = vmatpush1.msra.mxu0 0.0
    %769 = vmatprep.subr.mxu0 0.0
    %770 = vmatpush1.msra.mxu0 0.0
    %771 = vmatprep.subr.mxu0 0.0
    %772 = vmatpush1.msra.mxu0 0.0
    %773 = vmatprep.subr.mxu0 0.0
    %774 = vmatpush1.msra.mxu0 0.0
    %775 = vmatprep.subr.mxu0 0.0
    %776 = vmatpush1.msra.mxu0 0.0
    %777 = vmatprep.subr.mxu0 0.0
    %778 = vmatpush1.msra.mxu0 0.0
    %779 = vmatprep.subr.mxu0 0.0
    %780 = vmatpush1.msra.mxu0 0.0
    %781 = vmatprep.subr.mxu0 0.0
    %782 = vmatpush1.msra.mxu0 0.0
    %783 = vmatprep.subr.mxu0 0.0
    %784 = vmatpush1.msra.mxu0 %v151
    %785 = vmatprep.subr.mxu0 0.0
    %786 = vmatpush1.msra.mxu0 %v150
    %787 = vmatprep.subr.mxu0 0.0
    %788 = vmatpush1.msra.mxu0 %v149
    %789 = vmatprep.subr.mxu0 0.0
    %790 = vmatpush1.msra.mxu0 %v148
    %791 = vmatprep.subr.mxu0 0.0
    %792 = vmatpush2.msra.mxu0 0.0
    %793 = vmatprep.subr.mxu0 0.0
    %794 = vmatpush2.msra.mxu0 0.0
    %795 = vmatprep.subr.mxu0 0.0
    %796 = vmatpush2.msra.mxu0 0.0
    %797 = vmatprep.subr.mxu0 0.0
    %798 = vmatpush2.msra.mxu0 0.0
    %799 = vmatprep.subr.mxu0 0.0
    %800 = vmatpush2.msra.mxu0 0.0
    %801 = vmatprep.subr.mxu0 0.0
    %802 = vmatpush2.msra.mxu0 0.0
    %803 = vmatprep.subr.mxu0 0.0
    %804 = vmatpush2.msra.mxu0 0.0
    %805 = vmatprep.subr.mxu0 0.0
    %806 = vmatpush2.msra.mxu0 0.0
    %807 = vmatprep.subr.mxu0 0.0
    %808 = vmatpush2.msra.mxu0 0.0
    %809 = vmatprep.subr.mxu0 0.0
    %810 = vmatpush2.msra.mxu0 0.0
    %811 = vmatprep.subr.mxu0 0.0
    %812 = vmatpush2.msra.mxu0 0.0
    %813 = vmatprep.subr.mxu0 0.0
    %814 = vmatpush2.msra.mxu0 0.0
    %815 = vmatprep.subr.mxu0 0.0
    %816 = vmatpush2.msra.mxu0 0.0
    %817 = vmatprep.subr.mxu0 0.0
    %818 = vmatpush2.msra.mxu0 0.0
    %819 = vmatprep.subr.mxu0 0.0
    %820 = vmatpush2.msra.mxu0 0.0
    %821 = vmatprep.subr.mxu0 0.0
    %822 = vmatpush2.msra.mxu0 0.0
    %823 = vmatprep.mubr.f32.mxu0 0.0
    %824 = vmatmul.mubr.f32.gmra.mxu0 %v757
    %v825 = vpop.f32.mrf.mxu0
    %v826 = vadd.f32 0.0, %v825
    %v827 = vpop.f32.mrf.mxu0
    %828 = vdwg.mxu0
    %v829 = vadd.f32 %v826, %v647
    %v830 = vxor.u32 %v829, 2147483648
    %v831 = vmul.f32 %v830, 1.442695
    %v832 = vpow.pop %v831
    %v833 = vadd.f32 %v832, 1.0
    %v834 = vrcp.pop %v833
    %v835 = vmul.f32 1.0, %v834
    %v836 = vadd.f32 %v826, %v550
    %838 = vrot.lane.b32.xlu0 %v647, 64
    %v839 = vpop.permute.xlu0 %838
    %v841 = vmul.f32 %v835, %v839
    %843 = vrot.lane.b32.xlu0 %v841, 64
    %v844 = vpop.permute.xlu0 %843
    %v846 = vadd.f32 %v836, %v844
    %v847 = vtanh.pop %v846
    %v848 = vsub.f32 1.0, %v835
    %850 = vrot.lane.b32.xlu0 %v847, 96
    %v851 = vpop.permute.xlu0 %850
    %v853 = vmul.f32 %v848, %v851
    %v854 = vmul.f32 %v835, %v574
    %v855 = vadd.f32 %v853, %v854
    %857 = vrot.lane.b32.xlu0 %v855, 96
    %v858 = vpop.permute.xlu0 %857
    %v859 = vsel %vm289, %v858, 0
    %861 = vmatprep.subr.mxu0 0.0
    %862 = vmatpush1.msra.mxu0 0.0
    %863 = vmatprep.subr.mxu0 0.0
    %864 = vmatpush1.msra.mxu0 0.0
    %865 = vmatprep.subr.mxu0 0.0
    %866 = vmatpush1.msra.mxu0 0.0
    %867 = vmatprep.subr.mxu0 0.0
    %868 = vmatpush1.msra.mxu0 0.0
    %869 = vmatprep.subr.mxu0 0.0
    %870 = vmatpush1.msra.mxu0 0.0
    %871 = vmatprep.subr.mxu0 0.0
    %872 = vmatpush1.msra.mxu0 0.0
    %873 = vmatprep.subr.mxu0 0.0
    %874 = vmatpush1.msra.mxu0 0.0
    %875 = vmatprep.subr.mxu0 0.0
    %876 = vmatpush1.msra.mxu0 0.0
    %877 = vmatprep.subr.mxu0 0.0
    %878 = vmatpush1.msra.mxu0 0.0
    %879 = vmatprep.subr.mxu0 0.0
    %880 = vmatpush1.msra.mxu0 0.0
    %881 = vmatprep.subr.mxu0 0.0
    %882 = vmatpush1.msra.mxu0 0.0
    %883 = vmatprep.subr.mxu0 0.0
    %884 = vmatpush1.msra.mxu0 0.0
    %885 = vmatprep.subr.mxu0 0.0
    %886 = vmatpush1.msra.mxu0 %v155
    %887 = vmatprep.subr.mxu0 0.0
    %888 = vmatpush1.msra.mxu0 %v154
    %889 = vmatprep.subr.mxu0 0.0
    %890 = vmatpush1.msra.mxu0 %v153
    %891 = vmatprep.subr.mxu0 0.0
    %892 = vmatpush1.msra.mxu0 %v152
    %893 = vmatprep.subr.mxu0 0.0
    %894 = vmatpush2.msra.mxu0 0.0
    %895 = vmatprep.subr.mxu0 0.0
    %896 = vmatpush2.msra.mxu0 0.0
    %897 = vmatprep.subr.mxu0 0.0
    %898 = vmatpush2.msra.mxu0 0.0
    %899 = vmatprep.subr.mxu0 0.0
    %900 = vmatpush2.msra.mxu0 0.0
    %901 = vmatprep.subr.mxu0 0.0
    %902 = vmatpush2.msra.mxu0 0.0
    %903 = vmatprep.subr.mxu0 0.0
    %904 = vmatpush2.msra.mxu0 0.0
    %905 = vmatprep.subr.mxu0 0.0
    %906 = vmatpush2.msra.mxu0 0.0
    %907 = vmatprep.subr.mxu0 0.0
    %908 = vmatpush2.msra.mxu0 0.0
    %909 = vmatprep.subr.mxu0 0.0
    %910 = vmatpush2.msra.mxu0 0.0
    %911 = vmatprep.subr.mxu0 0.0
    %912 = vmatpush2.msra.mxu0 0.0
    %913 = vmatprep.subr.mxu0 0.0
    %914 = vmatpush2.msra.mxu0 0.0
    %915 = vmatprep.subr.mxu0 0.0
    %916 = vmatpush2.msra.mxu0 0.0
    %917 = vmatprep.subr.mxu0 0.0
    %918 = vmatpush2.msra.mxu0 0.0
    %919 = vmatprep.subr.mxu0 0.0
    %920 = vmatpush2.msra.mxu0 0.0
    %921 = vmatprep.subr.mxu0 0.0
    %922 = vmatpush2.msra.mxu0 0.0
    %923 = vmatprep.subr.mxu0 0.0
    %924 = vmatpush2.msra.mxu0 0.0
    %925 = vmatprep.mubr.f32.mxu0 0.0
    %926 = vmatmul.mubr.f32.gmra.mxu0 %v859
    %v927 = vpop.f32.mrf.mxu0
    %v928 = vadd.f32 %v173, %v927
    %v929 = vpop.f32.mrf.mxu0
    %930 = vdwg.mxu0
    %931 = vmatprep.subr.mxu0 0.0
    %932 = vmatpush1.msra.mxu0 0.0
    %933 = vmatprep.subr.mxu0 0.0
    %934 = vmatpush1.msra.mxu0 0.0
    %935 = vmatprep.subr.mxu0 0.0
    %936 = vmatpush1.msra.mxu0 0.0
    %937 = vmatprep.subr.mxu0 0.0
    %938 = vmatpush1.msra.mxu0 0.0
    %939 = vmatprep.subr.mxu0 0.0
    %940 = vmatpush1.msra.mxu0 0.0
    %941 = vmatprep.subr.mxu0 0.0
    %942 = vmatpush1.msra.mxu0 0.0
    %943 = vmatprep.subr.mxu0 0.0
    %944 = vmatpush1.msra.mxu0 0.0
    %945 = vmatprep.subr.mxu0 0.0
    %946 = vmatpush1.msra.mxu0 0.0
    %947 = vmatprep.subr.mxu0 0.0
    %948 = vmatpush1.msra.mxu0 0.0
    %949 = vmatprep.subr.mxu0 0.0
    %950 = vmatpush1.msra.mxu0 0.0
    %951 = vmatprep.subr.mxu0 0.0
    %952 = vmatpush1.msra.mxu0 0.0
    %953 = vmatprep.subr.mxu0 0.0
    %954 = vmatpush1.msra.mxu0 0.0
    %955 = vmatprep.subr.mxu0 0.0
    %956 = vmatpush1.msra.mxu0 %v147
    %957 = vmatprep.subr.mxu0 0.0
    %958 = vmatpush1.msra.mxu0 %v146
    %959 = vmatprep.subr.mxu0 0.0
    %960 = vmatpush1.msra.mxu0 %v145
    %961 = vmatprep.subr.mxu0 0.0
    %962 = vmatpush1.msra.mxu0 %v144
    %963 = vmatprep.subr.mxu0 0.0
    %964 = vmatpush2.msra.mxu0 0.0
    %965 = vmatprep.subr.mxu0 0.0
    %966 = vmatpush2.msra.mxu0 0.0
    %967 = vmatprep.subr.mxu0 0.0
    %968 = vmatpush2.msra.mxu0 0.0
    %969 = vmatprep.subr.mxu0 0.0
    %970 = vmatpush2.msra.mxu0 0.0
    %971 = vmatprep.subr.mxu0 0.0
    %972 = vmatpush2.msra.mxu0 0.0
    %973 = vmatprep.subr.mxu0 0.0
    %974 = vmatpush2.msra.mxu0 0.0
    %975 = vmatprep.subr.mxu0 0.0
    %976 = vmatpush2.msra.mxu0 0.0
    %977 = vmatprep.subr.mxu0 0.0
    %978 = vmatpush2.msra.mxu0 0.0
    %979 = vmatprep.subr.mxu0 0.0
    %980 = vmatpush2.msra.mxu0 0.0
    %981 = vmatprep.subr.mxu0 0.0
    %982 = vmatpush2.msra.mxu0 0.0
    %983 = vmatprep.subr.mxu0 0.0
    %984 = vmatpush2.msra.mxu0 0.0
    %985 = vmatprep.subr.mxu0 0.0
    %986 = vmatpush2.msra.mxu0 0.0
    %987 = vmatprep.subr.mxu0 0.0
    %988 = vmatpush2.msra.mxu0 0.0
    %989 = vmatprep.subr.mxu0 0.0
    %990 = vmatpush2.msra.mxu0 0.0
    %991 = vmatprep.subr.mxu0 0.0
    %992 = vmatpush2.msra.mxu0 0.0
    %993 = vmatprep.subr.mxu0 0.0
    %994 = vmatpush2.msra.mxu0 0.0
    %995 = vmatprep.mubr.f32.mxu0 0.0
    %996 = vmatmul.mubr.f32.gmra.mxu0 %v757
    %v997 = vpop.f32.mrf.mxu0
    %v998 = vadd.f32 0.0, %v997
    %v999 = vpop.f32.mrf.mxu0
    %1000 = vdwg.mxu0
    %v1001 = vadd.f32 %v273, %v998
    %v1002 = vxor.u32 %v1001, 2147483648
    %v1003 = vmul.f32 %v1002, 1.442695
    %v1004 = vpow.pop %v1003
    %v1005 = vadd.f32 %v1004, 1.0
    %v1006 = vrcp.pop %v1005
    %v1007 = vmul.f32 1.0, %v1006
    %v1008 = vadd.f32 %v998, %v442
    %1010 = vrot.lane.b32.xlu0 %v1008, 64
    %v1011 = vpop.permute.xlu0 %1010
    %v1013 = vmul.f32 %v1007, %v1011
    %1015 = vrot.lane.b32.xlu0 %v1013, 64
    %v1016 = vpop.permute.xlu0 %1015
    %v1018 = vadd.f32 %v273, %v1016
    %v1019 = vtanh.pop %v1018
    %v1020 = vsub.f32 1.0, %v1007
    %1022 = vrot.lane.b32.xlu0 %v1019, 96
    %v1023 = vpop.permute.xlu0 %1022
    %v1025 = vmul.f32 %v1020, %v1023
    %v1027 = vmul.f32 %v1007, %v754
    %v1028 = vadd.f32 %v1025, %v1027
    %1030 = vrot.lane.b32.xlu0 %v1028, 96
    %v1031 = vpop.permute.xlu0 %1030
    %v1032 = vsel %vm289, %v1031, 0
    %1034 = vmatprep.subr.mxu0 0.0
    %1035 = vmatpush1.msra.mxu0 0.0
    %1036 = vmatprep.subr.mxu0 0.0
    %1037 = vmatpush1.msra.mxu0 0.0
    %1038 = vmatprep.subr.mxu0 0.0
    %1039 = vmatpush1.msra.mxu0 0.0
    %1040 = vmatprep.subr.mxu0 0.0
    %1041 = vmatpush1.msra.mxu0 0.0
    %1042 = vmatprep.subr.mxu0 0.0
    %1043 = vmatpush1.msra.mxu0 0.0
    %1044 = vmatprep.subr.mxu0 0.0
    %1045 = vmatpush1.msra.mxu0 0.0
    %1046 = vmatprep.subr.mxu0 0.0
    %1047 = vmatpush1.msra.mxu0 0.0
    %1048 = vmatprep.subr.mxu0 0.0
    %1049 = vmatpush1.msra.mxu0 0.0
    %1050 = vmatprep.subr.mxu0 0.0
    %1051 = vmatpush1.msra.mxu0 0.0
    %1052 = vmatprep.subr.mxu0 0.0
    %1053 = vmatpush1.msra.mxu0 0.0
    %1054 = vmatprep.subr.mxu0 0.0
    %1055 = vmatpush1.msra.mxu0 0.0
    %1056 = vmatprep.subr.mxu0 0.0
    %1057 = vmatpush1.msra.mxu0 0.0
    %1058 = vmatprep.subr.mxu0 0.0
    %1059 = vmatpush1.msra.mxu0 %v151
    %1060 = vmatprep.subr.mxu0 0.0
    %1061 = vmatpush1.msra.mxu0 %v150
    %1062 = vmatprep.subr.mxu0 0.0
    %1063 = vmatpush1.msra.mxu0 %v149
    %1064 = vmatprep.subr.mxu0 0.0
    %1065 = vmatpush1.msra.mxu0 %v148
    %1066 = vmatprep.subr.mxu0 0.0
    %1067 = vmatpush2.msra.mxu0 0.0
    %1068 = vmatprep.subr.mxu0 0.0
    %1069 = vmatpush2.msra.mxu0 0.0
    %1070 = vmatprep.subr.mxu0 0.0
    %1071 = vmatpush2.msra.mxu0 0.0
    %1072 = vmatprep.subr.mxu0 0.0
    %1073 = vmatpush2.msra.mxu0 0.0
    %1074 = vmatprep.subr.mxu0 0.0
    %1075 = vmatpush2.msra.mxu0 0.0
    %1076 = vmatprep.subr.mxu0 0.0
    %1077 = vmatpush2.msra.mxu0 0.0
    %1078 = vmatprep.subr.mxu0 0.0
    %1079 = vmatpush2.msra.mxu0 0.0
    %1080 = vmatprep.subr.mxu0 0.0
    %1081 = vmatpush2.msra.mxu0 0.0
    %1082 = vmatprep.subr.mxu0 0.0
    %1083 = vmatpush2.msra.mxu0 0.0
    %1084 = vmatprep.subr.mxu0 0.0
    %1085 = vmatpush2.msra.mxu0 0.0
    %1086 = vmatprep.subr.mxu0 0.0
    %1087 = vmatpush2.msra.mxu0 0.0
    %1088 = vmatprep.subr.mxu0 0.0
    %1089 = vmatpush2.msra.mxu0 0.0
    %1090 = vmatprep.subr.mxu0 0.0
    %1091 = vmatpush2.msra.mxu0 0.0
    %1092 = vmatprep.subr.mxu0 0.0
    %1093 = vmatpush2.msra.mxu0 0.0
    %1094 = vmatprep.subr.mxu0 0.0
    %1095 = vmatpush2.msra.mxu0 0.0
    %1096 = vmatprep.subr.mxu0 0.0
    %1097 = vmatpush2.msra.mxu0 0.0
    %1098 = vmatprep.mubr.f32.mxu0 0.0
    %1099 = vmatmul.mubr.f32.gmra.mxu0 %v1032
    %v1100 = vpop.f32.mrf.mxu0
    %v1101 = vadd.f32 0.0, %v1100
    %v1102 = vpop.f32.mrf.mxu0
    %1103 = vdwg.mxu0
    %v1104 = vadd.f32 %v1101, %v928
    %v1105 = vxor.u32 %v1104, 2147483648
    %v1106 = vmul.f32 %v1105, 1.442695
    %v1107 = vpow.pop %v1106
    %v1108 = vadd.f32 %v1107, 1.0
    %v1109 = vrcp.pop %v1108
    %v1110 = vmul.f32 1.0, %v1109
    %v1111 = vadd.f32 %v1101, %v550
    %1113 = vrot.lane.b32.xlu0 %v928, 64
    %v1114 = vpop.permute.xlu0 %1113
    %v1116 = vmul.f32 %v1110, %v1114
    %1118 = vrot.lane.b32.xlu0 %v1116, 64
    %v1119 = vpop.permute.xlu0 %1118
    %v1121 = vadd.f32 %v1111, %v1119
    %v1122 = vtanh.pop %v1121
    %v1123 = vsub.f32 1.0, %v1110
    %1125 = vrot.lane.b32.xlu0 %v1122, 96
    %v1126 = vpop.permute.xlu0 %1125
    %v1128 = vmul.f32 %v1123, %v1126
    %v1129 = vmul.f32 %v1110, %v855
    %v1130 = vadd.f32 %v1128, %v1129
    %1132 = vrot.lane.b32.xlu0 %v1130, 96
    %v1133 = vpop.permute.xlu0 %1132
    %v1134 = vsel %vm289, %v1133, 0
    %1136 = vmatprep.subr.mxu0 0.0
    %1137 = vmatpush1.msra.mxu0 0.0
    %1138 = vmatprep.subr.mxu0 0.0
    %1139 = vmatpush1.msra.mxu0 0.0
    %1140 = vmatprep.subr.mxu0 0.0
    %1141 = vmatpush1.msra.mxu0 0.0
    %1142 = vmatprep.subr.mxu0 0.0
    %1143 = vmatpush1.msra.mxu0 0.0
    %1144 = vmatprep.subr.mxu0 0.0
    %1145 = vmatpush1.msra.mxu0 0.0
    %1146 = vmatprep.subr.mxu0 0.0
    %1147 = vmatpush1.msra.mxu0 0.0
    %1148 = vmatprep.subr.mxu0 0.0
    %1149 = vmatpush1.msra.mxu0 0.0
    %1150 = vmatprep.subr.mxu0 0.0
    %1151 = vmatpush1.msra.mxu0 0.0
    %1152 = vmatprep.subr.mxu0 0.0
    %1153 = vmatpush1.msra.mxu0 0.0
    %1154 = vmatprep.subr.mxu0 0.0
    %1155 = vmatpush1.msra.mxu0 0.0
    %1156 = vmatprep.subr.mxu0 0.0
    %1157 = vmatpush1.msra.mxu0 0.0
    %1158 = vmatprep.subr.mxu0 0.0
    %1159 = vmatpush1.msra.mxu0 0.0
    %1160 = vmatprep.subr.mxu0 0.0
    %1161 = vmatpush1.msra.mxu0 %v155
    %1162 = vmatprep.subr.mxu0 0.0
    %1163 = vmatpush1.msra.mxu0 %v154
    %1164 = vmatprep.subr.mxu0 0.0
    %1165 = vmatpush1.msra.mxu0 %v153
    %1166 = vmatprep.subr.mxu0 0.0
    %1167 = vmatpush1.msra.mxu0 %v152
    %1168 = vmatprep.subr.mxu0 0.0
    %1169 = vmatpush2.msra.mxu0 0.0
    %1170 = vmatprep.subr.mxu0 0.0
    %1171 = vmatpush2.msra.mxu0 0.0
    %1172 = vmatprep.subr.mxu0 0.0
    %1173 = vmatpush2.msra.mxu0 0.0
    %1174 = vmatprep.subr.mxu0 0.0
    %1175 = vmatpush2.msra.mxu0 0.0
    %1176 = vmatprep.subr.mxu0 0.0
    %1177 = vmatpush2.msra.mxu0 0.0
    %1178 = vmatprep.subr.mxu0 0.0
    %1179 = vmatpush2.msra.mxu0 0.0
    %1180 = vmatprep.subr.mxu0 0.0
    %1181 = vmatpush2.msra.mxu0 0.0
    %1182 = vmatprep.subr.mxu0 0.0
    %1183 = vmatpush2.msra.mxu0 0.0
    %1184 = vmatprep.subr.mxu0 0.0
    %1185 = vmatpush2.msra.mxu0 0.0
    %1186 = vmatprep.subr.mxu0 0.0
    %1187 = vmatpush2.msra.mxu0 0.0
    %1188 = vmatprep.subr.mxu0 0.0
    %1189 = vmatpush2.msra.mxu0 0.0
    %1190 = vmatprep.subr.mxu0 0.0
    %1191 = vmatpush2.msra.mxu0 0.0
    %1192 = vmatprep.subr.mxu0 0.0
    %1193 = vmatpush2.msra.mxu0 0.0
    %1194 = vmatprep.subr.mxu0 0.0
    %1195 = vmatpush2.msra.mxu0 0.0
    %1196 = vmatprep.subr.mxu0 0.0
    %1197 = vmatpush2.msra.mxu0 0.0
    %1198 = vmatprep.subr.mxu0 0.0
    %1199 = vmatpush2.msra.mxu0 0.0
    %1200 = vmatprep.mubr.f32.mxu0 0.0
    %1201 = vmatmul.mubr.f32.gmra.mxu0 %v1134
    %v1202 = vpop.f32.mrf.mxu0
    %v1203 = vadd.f32 %v173, %v1202
    %v1204 = vpop.f32.mrf.mxu0
    %1205 = vdwg.mxu0
    %1206 = vmatprep.subr.mxu0 0.0
    %1207 = vmatpush1.msra.mxu0 0.0
    %1208 = vmatprep.subr.mxu0 0.0
    %1209 = vmatpush1.msra.mxu0 0.0
    %1210 = vmatprep.subr.mxu0 0.0
    %1211 = vmatpush1.msra.mxu0 0.0
    %1212 = vmatprep.subr.mxu0 0.0
    %1213 = vmatpush1.msra.mxu0 0.0
    %1214 = vmatprep.subr.mxu0 0.0
    %1215 = vmatpush1.msra.mxu0 0.0
    %1216 = vmatprep.subr.mxu0 0.0
    %1217 = vmatpush1.msra.mxu0 0.0
    %1218 = vmatprep.subr.mxu0 0.0
    %1219 = vmatpush1.msra.mxu0 0.0
    %1220 = vmatprep.subr.mxu0 0.0
    %1221 = vmatpush1.msra.mxu0 0.0
    %1222 = vmatprep.subr.mxu0 0.0
    %1223 = vmatpush1.msra.mxu0 0.0
    %1224 = vmatprep.subr.mxu0 0.0
    %1225 = vmatpush1.msra.mxu0 0.0
    %1226 = vmatprep.subr.mxu0 0.0
    %1227 = vmatpush1.msra.mxu0 0.0
    %1228 = vmatprep.subr.mxu0 0.0
    %1229 = vmatpush1.msra.mxu0 0.0
    %1230 = vmatprep.subr.mxu0 0.0
    %1231 = vmatpush1.msra.mxu0 %v147
    %1232 = vmatprep.subr.mxu0 0.0
    %1233 = vmatpush1.msra.mxu0 %v146
    %1234 = vmatprep.subr.mxu0 0.0
    %1235 = vmatpush1.msra.mxu0 %v145
    %1236 = vmatprep.subr.mxu0 0.0
    %1237 = vmatpush1.msra.mxu0 %v144
    %1238 = vmatprep.subr.mxu0 0.0
    %1239 = vmatpush2.msra.mxu0 0.0
    %1240 = vmatprep.subr.mxu0 0.0
    %1241 = vmatpush2.msra.mxu0 0.0
    %1242 = vmatprep.subr.mxu0 0.0
    %1243 = vmatpush2.msra.mxu0 0.0
    %1244 = vmatprep.subr.mxu0 0.0
    %1245 = vmatpush2.msra.mxu0 0.0
    %1246 = vmatprep.subr.mxu0 0.0
    %1247 = vmatpush2.msra.mxu0 0.0
    %1248 = vmatprep.subr.mxu0 0.0
    %1249 = vmatpush2.msra.mxu0 0.0
    %1250 = vmatprep.subr.mxu0 0.0
    %1251 = vmatpush2.msra.mxu0 0.0
    %1252 = vmatprep.subr.mxu0 0.0
    %1253 = vmatpush2.msra.mxu0 0.0
    %1254 = vmatprep.subr.mxu0 0.0
    %1255 = vmatpush2.msra.mxu0 0.0
    %1256 = vmatprep.subr.mxu0 0.0
    %1257 = vmatpush2.msra.mxu0 0.0
    %1258 = vmatprep.subr.mxu0 0.0
    %1259 = vmatpush2.msra.mxu0 0.0
    %1260 = vmatprep.subr.mxu0 0.0
    %1261 = vmatpush2.msra.mxu0 0.0
    %1262 = vmatprep.subr.mxu0 0.0
    %1263 = vmatpush2.msra.mxu0 0.0
    %1264 = vmatprep.subr.mxu0 0.0
    %1265 = vmatpush2.msra.mxu0 0.0
    %1266 = vmatprep.subr.mxu0 0.0
    %1267 = vmatpush2.msra.mxu0 0.0
    %1268 = vmatprep.subr.mxu0 0.0
    %1269 = vmatpush2.msra.mxu0 0.0
    %1270 = vmatprep.mubr.f32.mxu0 0.0
    %1271 = vmatmul.mubr.f32.gmra.mxu0 %v1032
    %v1272 = vpop.f32.mrf.mxu0
    %v1273 = vadd.f32 0.0, %v1272
    %v1274 = vpop.f32.mrf.mxu0
    %1275 = vdwg.mxu0
    %v1277 = vrot.slane %v1273, 4
    %v1279 = vadd.f32 %v273, %v1277
    %v1280 = vxor.u32 %v1279, 2147483648
    %v1281 = vmul.f32 %v1280, 1.442695
    %v1282 = vpow.pop %v1281
    %v1283 = vadd.f32 %v1282, 1.0
    %v1284 = vrcp.pop %v1283
    %v1285 = vmul.f32 1.0, %v1284
    %v1286 = vadd.f32 %v1273, %v442
    %v1288 = vrot.slane %v1286, 4
    %1289 = vrot.lane.b32.xlu0 %v1288, 64
    %v1290 = vpop.permute.xlu0 %1289
    %v1292 = vmul.f32 %v1285, %v1290
    %1294 = vrot.lane.b32.xlu0 %v1292, 64
    %v1295 = vpop.permute.xlu0 %1294
    %v1297 = vadd.f32 %v273, %v1295
    %v1298 = vtanh.pop %v1297
    %v1299 = vsub.f32 1.0, %v1285
    %1301 = vrot.lane.b32.xlu0 %v1298, 96
    %v1302 = vpop.permute.xlu0 %1301
    %v1304 = vmul.f32 %v1299, %v1302
    %v1305 = vrot.slane %v1028, 4
    %v1307 = vmul.f32 %v1285, %v1305
    %v1308 = vadd.f32 %v1304, %v1307
    %v1310 = vrot.slane %v1308, 4
    %1311 = vrot.lane.b32.xlu0 %v1310, 96
    %v1312 = vpop.permute.xlu0 %1311
    %v1313 = vsel %vm289, %v1312, 0
    %1315 = vmatprep.subr.mxu0 0.0
    %1316 = vmatpush1.msra.mxu0 0.0
    %1317 = vmatprep.subr.mxu0 0.0
    %1318 = vmatpush1.msra.mxu0 0.0
    %1319 = vmatprep.subr.mxu0 0.0
    %1320 = vmatpush1.msra.mxu0 0.0
    %1321 = vmatprep.subr.mxu0 0.0
    %1322 = vmatpush1.msra.mxu0 0.0
    %1323 = vmatprep.subr.mxu0 0.0
    %1324 = vmatpush1.msra.mxu0 0.0
    %1325 = vmatprep.subr.mxu0 0.0
    %1326 = vmatpush1.msra.mxu0 0.0
    %1327 = vmatprep.subr.mxu0 0.0
    %1328 = vmatpush1.msra.mxu0 0.0
    %1329 = vmatprep.subr.mxu0 0.0
    %1330 = vmatpush1.msra.mxu0 0.0
    %1331 = vmatprep.subr.mxu0 0.0
    %1332 = vmatpush1.msra.mxu0 0.0
    %1333 = vmatprep.subr.mxu0 0.0
    %1334 = vmatpush1.msra.mxu0 0.0
    %1335 = vmatprep.subr.mxu0 0.0
    %1336 = vmatpush1.msra.mxu0 0.0
    %1337 = vmatprep.subr.mxu0 0.0
    %1338 = vmatpush1.msra.mxu0 0.0
    %1339 = vmatprep.subr.mxu0 0.0
    %1340 = vmatpush1.msra.mxu0 %v151
    %1341 = vmatprep.subr.mxu0 0.0
    %1342 = vmatpush1.msra.mxu0 %v150
    %1343 = vmatprep.subr.mxu0 0.0
    %1344 = vmatpush1.msra.mxu0 %v149
    %1345 = vmatprep.subr.mxu0 0.0
    %1346 = vmatpush1.msra.mxu0 %v148
    %1347 = vmatprep.subr.mxu0 0.0
    %1348 = vmatpush2.msra.mxu0 0.0
    %1349 = vmatprep.subr.mxu0 0.0
    %1350 = vmatpush2.msra.mxu0 0.0
    %1351 = vmatprep.subr.mxu0 0.0
    %1352 = vmatpush2.msra.mxu0 0.0
    %1353 = vmatprep.subr.mxu0 0.0
    %1354 = vmatpush2.msra.mxu0 0.0
    %1355 = vmatprep.subr.mxu0 0.0
    %1356 = vmatpush2.msra.mxu0 0.0
    %1357 = vmatprep.subr.mxu0 0.0
    %1358 = vmatpush2.msra.mxu0 0.0
    %1359 = vmatprep.subr.mxu0 0.0
    %1360 = vmatpush2.msra.mxu0 0.0
    %1361 = vmatprep.subr.mxu0 0.0
    %1362 = vmatpush2.msra.mxu0 0.0
    %1363 = vmatprep.subr.mxu0 0.0
    %1364 = vmatpush2.msra.mxu0 0.0
    %1365 = vmatprep.subr.mxu0 0.0
    %1366 = vmatpush2.msra.mxu0 0.0
    %1367 = vmatprep.subr.mxu0 0.0
    %1368 = vmatpush2.msra.mxu0 0.0
    %1369 = vmatprep.subr.mxu0 0.0
    %1370 = vmatpush2.msra.mxu0 0.0
    %1371 = vmatprep.subr.mxu0 0.0
    %1372 = vmatpush2.msra.mxu0 0.0
    %1373 = vmatprep.subr.mxu0 0.0
    %1374 = vmatpush2.msra.mxu0 0.0
    %1375 = vmatprep.subr.mxu0 0.0
    %1376 = vmatpush2.msra.mxu0 0.0
    %1377 = vmatprep.subr.mxu0 0.0
    %1378 = vmatpush2.msra.mxu0 0.0
    %1379 = vmatprep.mubr.f32.mxu0 0.0
    %1380 = vmatmul.mubr.f32.gmra.mxu0 %v1313
    %v1381 = vpop.f32.mrf.mxu0
    %v1382 = vadd.f32 0.0, %v1381
    %v1383 = vpop.f32.mrf.mxu0
    %1384 = vdwg.mxu0
    %v1385 = vadd.f32 %v1382, %v1203
    %v1386 = vxor.u32 %v1385, 2147483648
    %v1387 = vmul.f32 %v1386, 1.442695
    %v1388 = vpow.pop %v1387
    %v1389 = vadd.f32 %v1388, 1.0
    %v1390 = vrcp.pop %v1389
    %v1391 = vmul.f32 1.0, %v1390
    %v1392 = vadd.f32 %v1382, %v550
    %1394 = vrot.lane.b32.xlu0 %v1203, 64
    %v1395 = vpop.permute.xlu0 %1394
    %v1397 = vmul.f32 %v1391, %v1395
    %1399 = vrot.lane.b32.xlu0 %v1397, 64
    %v1400 = vpop.permute.xlu0 %1399
    %v1402 = vadd.f32 %v1392, %v1400
    %v1403 = vtanh.pop %v1402
    %v1404 = vsub.f32 1.0, %v1391
    %1406 = vrot.lane.b32.xlu0 %v1403, 96
    %v1407 = vpop.permute.xlu0 %1406
    %v1409 = vmul.f32 %v1404, %v1407
    %v1410 = vmul.f32 %v1391, %v1130
    %v1411 = vadd.f32 %v1409, %v1410
    %1413 = vrot.lane.b32.xlu0 %v1411, 96
    %v1414 = vpop.permute.xlu0 %1413
    %v1415 = vsel %vm289, %v1414, 0
    %1417 = vmatprep.subr.mxu0 0.0
    %1418 = vmatpush1.msra.mxu0 0.0
    %1419 = vmatprep.subr.mxu0 0.0
    %1420 = vmatpush1.msra.mxu0 0.0
    %1421 = vmatprep.subr.mxu0 0.0
    %1422 = vmatpush1.msra.mxu0 0.0
    %1423 = vmatprep.subr.mxu0 0.0
    %1424 = vmatpush1.msra.mxu0 0.0
    %1425 = vmatprep.subr.mxu0 0.0
    %1426 = vmatpush1.msra.mxu0 0.0
    %1427 = vmatprep.subr.mxu0 0.0
    %1428 = vmatpush1.msra.mxu0 0.0
    %1429 = vmatprep.subr.mxu0 0.0
    %1430 = vmatpush1.msra.mxu0 0.0
    %1431 = vmatprep.subr.mxu0 0.0
    %1432 = vmatpush1.msra.mxu0 0.0
    %1433 = vmatprep.subr.mxu0 0.0
    %1434 = vmatpush1.msra.mxu0 0.0
    %1435 = vmatprep.subr.mxu0 0.0
    %1436 = vmatpush1.msra.mxu0 0.0
    %1437 = vmatprep.subr.mxu0 0.0
    %1438 = vmatpush1.msra.mxu0 0.0
    %1439 = vmatprep.subr.mxu0 0.0
    %1440 = vmatpush1.msra.mxu0 0.0
    %1441 = vmatprep.subr.mxu0 0.0
    %1442 = vmatpush1.msra.mxu0 %v155
    %1443 = vmatprep.subr.mxu0 0.0
    %1444 = vmatpush1.msra.mxu0 %v154
    %1445 = vmatprep.subr.mxu0 0.0
    %1446 = vmatpush1.msra.mxu0 %v153
    %1447 = vmatprep.subr.mxu0 0.0
    %1448 = vmatpush1.msra.mxu0 %v152
    %1449 = vmatprep.subr.mxu0 0.0
    %1450 = vmatpush2.msra.mxu0 0.0
    %1451 = vmatprep.subr.mxu0 0.0
    %1452 = vmatpush2.msra.mxu0 0.0
    %1453 = vmatprep.subr.mxu0 0.0
    %1454 = vmatpush2.msra.mxu0 0.0
    %1455 = vmatprep.subr.mxu0 0.0
    %1456 = vmatpush2.msra.mxu0 0.0
    %1457 = vmatprep.subr.mxu0 0.0
    %1458 = vmatpush2.msra.mxu0 0.0
    %1459 = vmatprep.subr.mxu0 0.0
    %1460 = vmatpush2.msra.mxu0 0.0
    %1461 = vmatprep.subr.mxu0 0.0
    %1462 = vmatpush2.msra.mxu0 0.0
    %1463 = vmatprep.subr.mxu0 0.0
    %1464 = vmatpush2.msra.mxu0 0.0
    %1465 = vmatprep.subr.mxu0 0.0
    %1466 = vmatpush2.msra.mxu0 0.0
    %1467 = vmatprep.subr.mxu0 0.0
    %1468 = vmatpush2.msra.mxu0 0.0
    %1469 = vmatprep.subr.mxu0 0.0
    %1470 = vmatpush2.msra.mxu0 0.0
    %1471 = vmatprep.subr.mxu0 0.0
    %1472 = vmatpush2.msra.mxu0 0.0
    %1473 = vmatprep.subr.mxu0 0.0
    %1474 = vmatpush2.msra.mxu0 0.0
    %1475 = vmatprep.subr.mxu0 0.0
    %1476 = vmatpush2.msra.mxu0 0.0
    %1477 = vmatprep.subr.mxu0 0.0
    %1478 = vmatpush2.msra.mxu0 0.0
    %1479 = vmatprep.subr.mxu0 0.0
    %1480 = vmatpush2.msra.mxu0 0.0
    %1481 = vmatprep.mubr.f32.mxu0 0.0
    %1482 = vmatmul.mubr.f32.gmra.mxu0 %v1415
    %v1483 = vpop.f32.mrf.mxu0
    %v1484 = vadd.f32 %v173, %v1483
    %v1485 = vpop.f32.mrf.mxu0
    %1486 = vdwg.mxu0
    %1487 = vmatprep.subr.mxu0 0.0
    %1488 = vmatpush1.msra.mxu0 0.0
    %1489 = vmatprep.subr.mxu0 0.0
    %1490 = vmatpush1.msra.mxu0 0.0
    %1491 = vmatprep.subr.mxu0 0.0
    %1492 = vmatpush1.msra.mxu0 0.0
    %1493 = vmatprep.subr.mxu0 0.0
    %1494 = vmatpush1.msra.mxu0 0.0
    %1495 = vmatprep.subr.mxu0 0.0
    %1496 = vmatpush1.msra.mxu0 0.0
    %1497 = vmatprep.subr.mxu0 0.0
    %1498 = vmatpush1.msra.mxu0 0.0
    %1499 = vmatprep.subr.mxu0 0.0
    %1500 = vmatpush1.msra.mxu0 0.0
    %1501 = vmatprep.subr.mxu0 0.0
    %1502 = vmatpush1.msra.mxu0 0.0
    %1503 = vmatprep.subr.mxu0 0.0
    %1504 = vmatpush1.msra.mxu0 0.0
    %1505 = vmatprep.subr.mxu0 0.0
    %1506 = vmatpush1.msra.mxu0 0.0
    %1507 = vmatprep.subr.mxu0 0.0
    %1508 = vmatpush1.msra.mxu0 0.0
    %1509 = vmatprep.subr.mxu0 0.0
    %1510 = vmatpush1.msra.mxu0 0.0
    %1511 = vmatprep.subr.mxu0 0.0
    %1512 = vmatpush1.msra.mxu0 %v147
    %1513 = vmatprep.subr.mxu0 0.0
    %1514 = vmatpush1.msra.mxu0 %v146
    %1515 = vmatprep.subr.mxu0 0.0
    %1516 = vmatpush1.msra.mxu0 %v145
    %1517 = vmatprep.subr.mxu0 0.0
    %1518 = vmatpush1.msra.mxu0 %v144
    %1519 = vmatprep.subr.mxu0 0.0
    %1520 = vmatpush2.msra.mxu0 0.0
    %1521 = vmatprep.subr.mxu0 0.0
    %1522 = vmatpush2.msra.mxu0 0.0
    %1523 = vmatprep.subr.mxu0 0.0
    %1524 = vmatpush2.msra.mxu0 0.0
    %1525 = vmatprep.subr.mxu0 0.0
    %1526 = vmatpush2.msra.mxu0 0.0
    %1527 = vmatprep.subr.mxu0 0.0
    %1528 = vmatpush2.msra.mxu0 0.0
    %1529 = vmatprep.subr.mxu0 0.0
    %1530 = vmatpush2.msra.mxu0 0.0
    %1531 = vmatprep.subr.mxu0 0.0
    %1532 = vmatpush2.msra.mxu0 0.0
    %1533 = vmatprep.subr.mxu0 0.0
    %1534 = vmatpush2.msra.mxu0 0.0
    %1535 = vmatprep.subr.mxu0 0.0
    %1536 = vmatpush2.msra.mxu0 0.0
    %1537 = vmatprep.subr.mxu0 0.0
    %1538 = vmatpush2.msra.mxu0 0.0
    %1539 = vmatprep.subr.mxu0 0.0
    %1540 = vmatpush2.msra.mxu0 0.0
    %1541 = vmatprep.subr.mxu0 0.0
    %1542 = vmatpush2.msra.mxu0 0.0
    %1543 = vmatprep.subr.mxu0 0.0
    %1544 = vmatpush2.msra.mxu0 0.0
    %1545 = vmatprep.subr.mxu0 0.0
    %1546 = vmatpush2.msra.mxu0 0.0
    %1547 = vmatprep.subr.mxu0 0.0
    %1548 = vmatpush2.msra.mxu0 0.0
    %1549 = vmatprep.subr.mxu0 0.0
    %1550 = vmatpush2.msra.mxu0 0.0
    %1551 = vmatprep.mubr.f32.mxu0 0.0
    %1552 = vmatmul.mubr.f32.gmra.mxu0 %v1313
    %v1553 = vpop.f32.mrf.mxu0
    %v1554 = vadd.f32 0.0, %v1553
    %v1555 = vpop.f32.mrf.mxu0
    %1556 = vdwg.mxu0
    %v1557 = vadd.f32 %v278, %v1554
    %v1558 = vxor.u32 %v1557, 2147483648
    %v1559 = vmul.f32 %v1558, 1.442695
    %v1560 = vpow.pop %v1559
    %v1561 = vadd.f32 %v1560, 1.0
    %v1562 = vrcp.pop %v1561
    %v1563 = vmul.f32 1.0, %v1562
    %v1564 = vadd.f32 %v1554, %v442
    %1566 = vrot.lane.b32.xlu0 %v1564, 64
    %v1567 = vpop.permute.xlu0 %1566
    %v1569 = vmul.f32 %v1563, %v1567
    %1571 = vrot.lane.b32.xlu0 %v1569, 64
    %v1572 = vpop.permute.xlu0 %1571
    %v1574 = vadd.f32 %v278, %v1572
    %v1575 = vtanh.pop %v1574
    %v1576 = vsub.f32 1.0, %v1563
    %1578 = vrot.lane.b32.xlu0 %v1575, 96
    %v1579 = vpop.permute.xlu0 %1578
    %v1581 = vmul.f32 %v1576, %v1579
    %v1583 = vmul.f32 %v1563, %v1310
    %v1584 = vadd.f32 %v1581, %v1583
    %1586 = vrot.lane.b32.xlu0 %v1584, 96
    %v1587 = vpop.permute.xlu0 %1586
    %v1588 = vsel %vm289, %v1587, 0
    %1590 = vmatprep.subr.mxu0 0.0
    %1591 = vmatpush1.msra.mxu0 0.0
    %1592 = vmatprep.subr.mxu0 0.0
    %1593 = vmatpush1.msra.mxu0 0.0
    %1594 = vmatprep.subr.mxu0 0.0
    %1595 = vmatpush1.msra.mxu0 0.0
    %1596 = vmatprep.subr.mxu0 0.0
    %1597 = vmatpush1.msra.mxu0 0.0
    %1598 = vmatprep.subr.mxu0 0.0
    %1599 = vmatpush1.msra.mxu0 0.0
    %1600 = vmatprep.subr.mxu0 0.0
    %1601 = vmatpush1.msra.mxu0 0.0
    %1602 = vmatprep.subr.mxu0 0.0
    %1603 = vmatpush1.msra.mxu0 0.0
    %1604 = vmatprep.subr.mxu0 0.0
    %1605 = vmatpush1.msra.mxu0 0.0
    %1606 = vmatprep.subr.mxu0 0.0
    %1607 = vmatpush1.msra.mxu0 0.0
    %1608 = vmatprep.subr.mxu0 0.0
    %1609 = vmatpush1.msra.mxu0 0.0
    %1610 = vmatprep.subr.mxu0 0.0
    %1611 = vmatpush1.msra.mxu0 0.0
    %1612 = vmatprep.subr.mxu0 0.0
    %1613 = vmatpush1.msra.mxu0 0.0
    %1614 = vmatprep.subr.mxu0 0.0
    %1615 = vmatpush1.msra.mxu0 %v151
    %1616 = vmatprep.subr.mxu0 0.0
    %1617 = vmatpush1.msra.mxu0 %v150
    %1618 = vmatprep.subr.mxu0 0.0
    %1619 = vmatpush1.msra.mxu0 %v149
    %1620 = vmatprep.subr.mxu0 0.0
    %1621 = vmatpush1.msra.mxu0 %v148
    %1622 = vmatprep.subr.mxu0 0.0
    %1623 = vmatpush2.msra.mxu0 0.0
    %1624 = vmatprep.subr.mxu0 0.0
    %1625 = vmatpush2.msra.mxu0 0.0
    %1626 = vmatprep.subr.mxu0 0.0
    %1627 = vmatpush2.msra.mxu0 0.0
    %1628 = vmatprep.subr.mxu0 0.0
    %1629 = vmatpush2.msra.mxu0 0.0
    %1630 = vmatprep.subr.mxu0 0.0
    %1631 = vmatpush2.msra.mxu0 0.0
    %1632 = vmatprep.subr.mxu0 0.0
    %1633 = vmatpush2.msra.mxu0 0.0
    %1634 = vmatprep.subr.mxu0 0.0
    %1635 = vmatpush2.msra.mxu0 0.0
    %1636 = vmatprep.subr.mxu0 0.0
    %1637 = vmatpush2.msra.mxu0 0.0
    %1638 = vmatprep.subr.mxu0 0.0
    %1639 = vmatpush2.msra.mxu0 0.0
    %1640 = vmatprep.subr.mxu0 0.0
    %1641 = vmatpush2.msra.mxu0 0.0
    %1642 = vmatprep.subr.mxu0 0.0
    %1643 = vmatpush2.msra.mxu0 0.0
    %1644 = vmatprep.subr.mxu0 0.0
    %1645 = vmatpush2.msra.mxu0 0.0
    %1646 = vmatprep.subr.mxu0 0.0
    %1647 = vmatpush2.msra.mxu0 0.0
    %1648 = vmatprep.subr.mxu0 0.0
    %1649 = vmatpush2.msra.mxu0 0.0
    %1650 = vmatprep.subr.mxu0 0.0
    %1651 = vmatpush2.msra.mxu0 0.0
    %1652 = vmatprep.subr.mxu0 0.0
    %1653 = vmatpush2.msra.mxu0 0.0
    %1654 = vmatprep.mubr.f32.mxu0 0.0
    %1655 = vmatmul.mubr.f32.gmra.mxu0 %v1588
    %v1656 = vpop.f32.mrf.mxu0
    %v1657 = vadd.f32 0.0, %v1656
    %v1658 = vpop.f32.mrf.mxu0
    %1659 = vdwg.mxu0
    %v1660 = vadd.f32 %v1657, %v1484
    %v1661 = vxor.u32 %v1660, 2147483648
    %v1662 = vmul.f32 %v1661, 1.442695
    %v1663 = vpow.pop %v1662
    %v1664 = vadd.f32 %v1663, 1.0
    %v1665 = vrcp.pop %v1664
    %v1666 = vmul.f32 1.0, %v1665
    %v1667 = vadd.f32 %v1657, %v550
    %1669 = vrot.lane.b32.xlu0 %v1484, 64
    %v1670 = vpop.permute.xlu0 %1669
    %v1672 = vmul.f32 %v1666, %v1670
    %1674 = vrot.lane.b32.xlu0 %v1672, 64
    %v1675 = vpop.permute.xlu0 %1674
    %v1677 = vadd.f32 %v1667, %v1675
    %v1678 = vtanh.pop %v1677
    %v1679 = vsub.f32 1.0, %v1666
    %1681 = vrot.lane.b32.xlu0 %v1678, 96
    %v1682 = vpop.permute.xlu0 %1681
    %v1684 = vmul.f32 %v1679, %v1682
    %v1685 = vmul.f32 %v1666, %v1411
    %v1686 = vadd.f32 %v1684, %v1685
    %1688 = vrot.lane.b32.xlu0 %v1686, 96
    %v1689 = vpop.permute.xlu0 %1688
    %v1690 = vsel %vm289, %v1689, 0
    %1692 = vmatprep.subr.mxu0 0.0
    %1693 = vmatpush1.msra.mxu0 0.0
    %1694 = vmatprep.subr.mxu0 0.0
    %1695 = vmatpush1.msra.mxu0 0.0
    %1696 = vmatprep.subr.mxu0 0.0
    %1697 = vmatpush1.msra.mxu0 0.0
    %1698 = vmatprep.subr.mxu0 0.0
    %1699 = vmatpush1.msra.mxu0 0.0
    %1700 = vmatprep.subr.mxu0 0.0
    %1701 = vmatpush1.msra.mxu0 0.0
    %1702 = vmatprep.subr.mxu0 0.0
    %1703 = vmatpush1.msra.mxu0 0.0
    %1704 = vmatprep.subr.mxu0 0.0
    %1705 = vmatpush1.msra.mxu0 0.0
    %1706 = vmatprep.subr.mxu0 0.0
    %1707 = vmatpush1.msra.mxu0 0.0
    %1708 = vmatprep.subr.mxu0 0.0
    %1709 = vmatpush1.msra.mxu0 0.0
    %1710 = vmatprep.subr.mxu0 0.0
    %1711 = vmatpush1.msra.mxu0 0.0
    %1712 = vmatprep.subr.mxu0 0.0
    %1713 = vmatpush1.msra.mxu0 0.0
    %1714 = vmatprep.subr.mxu0 0.0
    %1715 = vmatpush1.msra.mxu0 0.0
    %1716 = vmatprep.subr.mxu0 0.0
    %1717 = vmatpush1.msra.mxu0 %v155
    %1718 = vmatprep.subr.mxu0 0.0
    %1719 = vmatpush1.msra.mxu0 %v154
    %1720 = vmatprep.subr.mxu0 0.0
    %1721 = vmatpush1.msra.mxu0 %v153
    %1722 = vmatprep.subr.mxu0 0.0
    %1723 = vmatpush1.msra.mxu0 %v152
    %1724 = vmatprep.subr.mxu0 0.0
    %1725 = vmatpush2.msra.mxu0 0.0
    %1726 = vmatprep.subr.mxu0 0.0
    %1727 = vmatpush2.msra.mxu0 0.0
    %1728 = vmatprep.subr.mxu0 0.0
    %1729 = vmatpush2.msra.mxu0 0.0
    %1730 = vmatprep.subr.mxu0 0.0
    %1731 = vmatpush2.msra.mxu0 0.0
    %1732 = vmatprep.subr.mxu0 0.0
    %1733 = vmatpush2.msra.mxu0 0.0
    %1734 = vmatprep.subr.mxu0 0.0
    %1735 = vmatpush2.msra.mxu0 0.0
    %1736 = vmatprep.subr.mxu0 0.0
    %1737 = vmatpush2.msra.mxu0 0.0
    %1738 = vmatprep.subr.mxu0 0.0
    %1739 = vmatpush2.msra.mxu0 0.0
    %1740 = vmatprep.subr.mxu0 0.0
    %1741 = vmatpush2.msra.mxu0 0.0
    %1742 = vmatprep.subr.mxu0 0.0
    %1743 = vmatpush2.msra.mxu0 0.0
    %1744 = vmatprep.subr.mxu0 0.0
    %1745 = vmatpush2.msra.mxu0 0.0
    %1746 = vmatprep.subr.mxu0 0.0
    %1747 = vmatpush2.msra.mxu0 0.0
    %1748 = vmatprep.subr.mxu0 0.0
    %1749 = vmatpush2.msra.mxu0 0.0
    %1750 = vmatprep.subr.mxu0 0.0
    %1751 = vmatpush2.msra.mxu0 0.0
    %1752 = vmatprep.subr.mxu0 0.0
    %1753 = vmatpush2.msra.mxu0 0.0
    %1754 = vmatprep.subr.mxu0 0.0
    %1755 = vmatpush2.msra.mxu0 0.0
    %1756 = vmatprep.mubr.f32.mxu0 0.0
    %1757 = vmatmul.mubr.f32.gmra.mxu0 %v1690
    %v1758 = vpop.f32.mrf.mxu0
    %v1759 = vadd.f32 %v173, %v1758
    %v1760 = vpop.f32.mrf.mxu0
    %1761 = vdwg.mxu0
    %1762 = vmatprep.subr.mxu0 0.0
    %1763 = vmatpush1.msra.mxu0 0.0
    %1764 = vmatprep.subr.mxu0 0.0
    %1765 = vmatpush1.msra.mxu0 0.0
    %1766 = vmatprep.subr.mxu0 0.0
    %1767 = vmatpush1.msra.mxu0 0.0
    %1768 = vmatprep.subr.mxu0 0.0
    %1769 = vmatpush1.msra.mxu0 0.0
    %1770 = vmatprep.subr.mxu0 0.0
    %1771 = vmatpush1.msra.mxu0 0.0
    %1772 = vmatprep.subr.mxu0 0.0
    %1773 = vmatpush1.msra.mxu0 0.0
    %1774 = vmatprep.subr.mxu0 0.0
    %1775 = vmatpush1.msra.mxu0 0.0
    %1776 = vmatprep.subr.mxu0 0.0
    %1777 = vmatpush1.msra.mxu0 0.0
    %1778 = vmatprep.subr.mxu0 0.0
    %1779 = vmatpush1.msra.mxu0 0.0
    %1780 = vmatprep.subr.mxu0 0.0
    %1781 = vmatpush1.msra.mxu0 0.0
    %1782 = vmatprep.subr.mxu0 0.0
    %1783 = vmatpush1.msra.mxu0 0.0
    %1784 = vmatprep.subr.mxu0 0.0
    %1785 = vmatpush1.msra.mxu0 0.0
    %1786 = vmatprep.subr.mxu0 0.0
    %1787 = vmatpush1.msra.mxu0 %v147
    %1788 = vmatprep.subr.mxu0 0.0
    %1789 = vmatpush1.msra.mxu0 %v146
    %1790 = vmatprep.subr.mxu0 0.0
    %1791 = vmatpush1.msra.mxu0 %v145
    %1792 = vmatprep.subr.mxu0 0.0
    %1793 = vmatpush1.msra.mxu0 %v144
    %1794 = vmatprep.subr.mxu0 0.0
    %1795 = vmatpush2.msra.mxu0 0.0
    %1796 = vmatprep.subr.mxu0 0.0
    %1797 = vmatpush2.msra.mxu0 0.0
    %1798 = vmatprep.subr.mxu0 0.0
    %1799 = vmatpush2.msra.mxu0 0.0
    %1800 = vmatprep.subr.mxu0 0.0
    %1801 = vmatpush2.msra.mxu0 0.0
    %1802 = vmatprep.subr.mxu0 0.0
    %1803 = vmatpush2.msra.mxu0 0.0
    %1804 = vmatprep.subr.mxu0 0.0
    %1805 = vmatpush2.msra.mxu0 0.0
    %1806 = vmatprep.subr.mxu0 0.0
    %1807 = vmatpush2.msra.mxu0 0.0
    %1808 = vmatprep.subr.mxu0 0.0
    %1809 = vmatpush2.msra.mxu0 0.0
    %1810 = vmatprep.subr.mxu0 0.0
    %1811 = vmatpush2.msra.mxu0 0.0
    %1812 = vmatprep.subr.mxu0 0.0
    %1813 = vmatpush2.msra.mxu0 0.0
    %1814 = vmatprep.subr.mxu0 0.0
    %1815 = vmatpush2.msra.mxu0 0.0
    %1816 = vmatprep.subr.mxu0 0.0
    %1817 = vmatpush2.msra.mxu0 0.0
    %1818 = vmatprep.subr.mxu0 0.0
    %1819 = vmatpush2.msra.mxu0 0.0
    %1820 = vmatprep.subr.mxu0 0.0
    %1821 = vmatpush2.msra.mxu0 0.0
    %1822 = vmatprep.subr.mxu0 0.0
    %1823 = vmatpush2.msra.mxu0 0.0
    %1824 = vmatprep.subr.mxu0 0.0
    %1825 = vmatpush2.msra.mxu0 0.0
    %1826 = vmatprep.mubr.f32.mxu0 0.0
    %1827 = vmatmul.mubr.f32.gmra.mxu0 %v1588
    %v1828 = vpop.f32.mrf.mxu0
    %v1829 = vadd.f32 0.0, %v1828
    %v1830 = vpop.f32.mrf.mxu0
    %1831 = vdwg.mxu0
    %v1833 = vrot.slane %v1829, 4
    %v1835 = vadd.f32 %v278, %v1833
    %v1836 = vxor.u32 %v1835, 2147483648
    %v1837 = vmul.f32 %v1836, 1.442695
    %v1838 = vpow.pop %v1837
    %v1839 = vadd.f32 %v1838, 1.0
    %v1840 = vrcp.pop %v1839
    %v1841 = vmul.f32 1.0, %v1840
    %v1842 = vadd.f32 %v1829, %v442
    %v1844 = vrot.slane %v1842, 4
    %1845 = vrot.lane.b32.xlu0 %v1844, 64
    %v1846 = vpop.permute.xlu0 %1845
    %v1848 = vmul.f32 %v1841, %v1846
    %1850 = vrot.lane.b32.xlu0 %v1848, 64
    %v1851 = vpop.permute.xlu0 %1850
    %v1853 = vadd.f32 %v278, %v1851
    %v1854 = vtanh.pop %v1853
    %v1855 = vsub.f32 1.0, %v1841
    %1857 = vrot.lane.b32.xlu0 %v1854, 96
    %v1858 = vpop.permute.xlu0 %1857
    %v1860 = vmul.f32 %v1855, %v1858
    %v1861 = vrot.slane %v1584, 4
    %v1863 = vmul.f32 %v1841, %v1861
    %v1864 = vadd.f32 %v1860, %v1863
    %v1866 = vrot.slane %v1864, 4
    %1867 = vrot.lane.b32.xlu0 %v1866, 96
    %v1868 = vpop.permute.xlu0 %1867
    %v1869 = vsel %vm289, %v1868, 0
    %1871 = vmatprep.subr.mxu0 0.0
    %1872 = vmatpush1.msra.mxu0 0.0
    %1873 = vmatprep.subr.mxu0 0.0
    %1874 = vmatpush1.msra.mxu0 0.0
    %1875 = vmatprep.subr.mxu0 0.0
    %1876 = vmatpush1.msra.mxu0 0.0
    %1877 = vmatprep.subr.mxu0 0.0
    %1878 = vmatpush1.msra.mxu0 0.0
    %1879 = vmatprep.subr.mxu0 0.0
    %1880 = vmatpush1.msra.mxu0 0.0
    %1881 = vmatprep.subr.mxu0 0.0
    %1882 = vmatpush1.msra.mxu0 0.0
    %1883 = vmatprep.subr.mxu0 0.0
    %1884 = vmatpush1.msra.mxu0 0.0
    %1885 = vmatprep.subr.mxu0 0.0
    %1886 = vmatpush1.msra.mxu0 0.0
    %1887 = vmatprep.subr.mxu0 0.0
    %1888 = vmatpush1.msra.mxu0 0.0
    %1889 = vmatprep.subr.mxu0 0.0
    %1890 = vmatpush1.msra.mxu0 0.0
    %1891 = vmatprep.subr.mxu0 0.0
    %1892 = vmatpush1.msra.mxu0 0.0
    %1893 = vmatprep.subr.mxu0 0.0
    %1894 = vmatpush1.msra.mxu0 0.0
    %1895 = vmatprep.subr.mxu0 0.0
    %1896 = vmatpush1.msra.mxu0 %v151
    %1897 = vmatprep.subr.mxu0 0.0
    %1898 = vmatpush1.msra.mxu0 %v150
    %1899 = vmatprep.subr.mxu0 0.0
    %1900 = vmatpush1.msra.mxu0 %v149
    %1901 = vmatprep.subr.mxu0 0.0
    %1902 = vmatpush1.msra.mxu0 %v148
    %1903 = vmatprep.subr.mxu0 0.0
    %1904 = vmatpush2.msra.mxu0 0.0
    %1905 = vmatprep.subr.mxu0 0.0
    %1906 = vmatpush2.msra.mxu0 0.0
    %1907 = vmatprep.subr.mxu0 0.0
    %1908 = vmatpush2.msra.mxu0 0.0
    %1909 = vmatprep.subr.mxu0 0.0
    %1910 = vmatpush2.msra.mxu0 0.0
    %1911 = vmatprep.subr.mxu0 0.0
    %1912 = vmatpush2.msra.mxu0 0.0
    %1913 = vmatprep.subr.mxu0 0.0
    %1914 = vmatpush2.msra.mxu0 0.0
    %1915 = vmatprep.subr.mxu0 0.0
    %1916 = vmatpush2.msra.mxu0 0.0
    %1917 = vmatprep.subr.mxu0 0.0
    %1918 = vmatpush2.msra.mxu0 0.0
    %1919 = vmatprep.subr.mxu0 0.0
    %1920 = vmatpush2.msra.mxu0 0.0
    %1921 = vmatprep.subr.mxu0 0.0
    %1922 = vmatpush2.msra.mxu0 0.0
    %1923 = vmatprep.subr.mxu0 0.0
    %1924 = vmatpush2.msra.mxu0 0.0
    %1925 = vmatprep.subr.mxu0 0.0
    %1926 = vmatpush2.msra.mxu0 0.0
    %1927 = vmatprep.subr.mxu0 0.0
    %1928 = vmatpush2.msra.mxu0 0.0
    %1929 = vmatprep.subr.mxu0 0.0
    %1930 = vmatpush2.msra.mxu0 0.0
    %1931 = vmatprep.subr.mxu0 0.0
    %1932 = vmatpush2.msra.mxu0 0.0
    %1933 = vmatprep.subr.mxu0 0.0
    %1934 = vmatpush2.msra.mxu0 0.0
    %1935 = vmatprep.mubr.f32.mxu0 0.0
    %1936 = vmatmul.mubr.f32.gmra.mxu0 %v1869
    %v1937 = vpop.f32.mrf.mxu0
    %v1938 = vadd.f32 0.0, %v1937
    %v1939 = vpop.f32.mrf.mxu0
    %1940 = vdwg.mxu0
    %v1941 = vadd.f32 %v1938, %v1759
    %v1942 = vxor.u32 %v1941, 2147483648
    %v1943 = vmul.f32 %v1942, 1.442695
    %v1944 = vpow.pop %v1943
    %v1945 = vadd.f32 %v1944, 1.0
    %v1946 = vrcp.pop %v1945
    %v1947 = vmul.f32 1.0, %v1946
    %v1948 = vadd.f32 %v1938, %v550
    %1950 = vrot.lane.b32.xlu0 %v1759, 64
    %v1951 = vpop.permute.xlu0 %1950
    %v1953 = vmul.f32 %v1947, %v1951
    %1955 = vrot.lane.b32.xlu0 %v1953, 64
    %v1956 = vpop.permute.xlu0 %1955
    %v1958 = vadd.f32 %v1948, %v1956
    %v1959 = vtanh.pop %v1958
    %v1960 = vsub.f32 1.0, %v1947
    %1962 = vrot.lane.b32.xlu0 %v1959, 96
    %v1963 = vpop.permute.xlu0 %1962
    %v1965 = vmul.f32 %v1960, %v1963
    %v1966 = vmul.f32 %v1947, %v1686
    %v1967 = vadd.f32 %v1965, %v1966
    %1969 = vrot.lane.b32.xlu0 %v1967, 96
    %v1970 = vpop.permute.xlu0 %1969
    %v1971 = vsel %vm289, %v1970, 0
    %1973 = vmatprep.subr.mxu0 0.0
    %1974 = vmatpush1.msra.mxu0 0.0
    %1975 = vmatprep.subr.mxu0 0.0
    %1976 = vmatpush1.msra.mxu0 0.0
    %1977 = vmatprep.subr.mxu0 0.0
    %1978 = vmatpush1.msra.mxu0 0.0
    %1979 = vmatprep.subr.mxu0 0.0
    %1980 = vmatpush1.msra.mxu0 0.0
    %1981 = vmatprep.subr.mxu0 0.0
    %1982 = vmatpush1.msra.mxu0 0.0
    %1983 = vmatprep.subr.mxu0 0.0
    %1984 = vmatpush1.msra.mxu0 0.0
    %1985 = vmatprep.subr.mxu0 0.0
    %1986 = vmatpush1.msra.mxu0 0.0
    %1987 = vmatprep.subr.mxu0 0.0
    %1988 = vmatpush1.msra.mxu0 0.0
    %1989 = vmatprep.subr.mxu0 0.0
    %1990 = vmatpush1.msra.mxu0 0.0
    %1991 = vmatprep.subr.mxu0 0.0
    %1992 = vmatpush1.msra.mxu0 0.0
    %1993 = vmatprep.subr.mxu0 0.0
    %1994 = vmatpush1.msra.mxu0 0.0
    %1995 = vmatprep.subr.mxu0 0.0
    %1996 = vmatpush1.msra.mxu0 0.0
    %1997 = vmatprep.subr.mxu0 0.0
    %1998 = vmatpush1.msra.mxu0 %v155
    %1999 = vmatprep.subr.mxu0 0.0
    %2000 = vmatpush1.msra.mxu0 %v154
    %2001 = vmatprep.subr.mxu0 0.0
    %2002 = vmatpush1.msra.mxu0 %v153
    %2003 = vmatprep.subr.mxu0 0.0
    %2004 = vmatpush1.msra.mxu0 %v152
    %2005 = vmatprep.subr.mxu0 0.0
    %2006 = vmatpush2.msra.mxu0 0.0
    %2007 = vmatprep.subr.mxu0 0.0
    %2008 = vmatpush2.msra.mxu0 0.0
    %2009 = vmatprep.subr.mxu0 0.0
    %2010 = vmatpush2.msra.mxu0 0.0
    %2011 = vmatprep.subr.mxu0 0.0
    %2012 = vmatpush2.msra.mxu0 0.0
    %2013 = vmatprep.subr.mxu0 0.0
    %2014 = vmatpush2.msra.mxu0 0.0
    %2015 = vmatprep.subr.mxu0 0.0
    %2016 = vmatpush2.msra.mxu0 0.0
    %2017 = vmatprep.subr.mxu0 0.0
    %2018 = vmatpush2.msra.mxu0 0.0
    %2019 = vmatprep.subr.mxu0 0.0
    %2020 = vmatpush2.msra.mxu0 0.0
    %2021 = vmatprep.subr.mxu0 0.0
    %2022 = vmatpush2.msra.mxu0 0.0
    %2023 = vmatprep.subr.mxu0 0.0
    %2024 = vmatpush2.msra.mxu0 0.0
    %2025 = vmatprep.subr.mxu0 0.0
    %2026 = vmatpush2.msra.mxu0 0.0
    %2027 = vmatprep.subr.mxu0 0.0
    %2028 = vmatpush2.msra.mxu0 0.0
    %2029 = vmatprep.subr.mxu0 0.0
    %2030 = vmatpush2.msra.mxu0 0.0
    %2031 = vmatprep.subr.mxu0 0.0
    %2032 = vmatpush2.msra.mxu0 0.0
    %2033 = vmatprep.subr.mxu0 0.0
    %2034 = vmatpush2.msra.mxu0 0.0
    %2035 = vmatprep.subr.mxu0 0.0
    %2036 = vmatpush2.msra.mxu0 0.0
    %2037 = vmatprep.mubr.f32.mxu0 0.0
    %2038 = vmatmul.mubr.f32.gmra.mxu0 %v1971
    %v2039 = vpop.f32.mrf.mxu0
    %v2040 = vadd.f32 %v173, %v2039
    %v2041 = vpop.f32.mrf.mxu0
    %2042 = vdwg.mxu0
    %2043 = vmatprep.subr.mxu0 0.0
    %2044 = vmatpush1.msra.mxu0 0.0
    %2045 = vmatprep.subr.mxu0 0.0
    %2046 = vmatpush1.msra.mxu0 0.0
    %2047 = vmatprep.subr.mxu0 0.0
    %2048 = vmatpush1.msra.mxu0 0.0
    %2049 = vmatprep.subr.mxu0 0.0
    %2050 = vmatpush1.msra.mxu0 0.0
    %2051 = vmatprep.subr.mxu0 0.0
    %2052 = vmatpush1.msra.mxu0 0.0
    %2053 = vmatprep.subr.mxu0 0.0
    %2054 = vmatpush1.msra.mxu0 0.0
    %2055 = vmatprep.subr.mxu0 0.0
    %2056 = vmatpush1.msra.mxu0 0.0
    %2057 = vmatprep.subr.mxu0 0.0
    %2058 = vmatpush1.msra.mxu0 0.0
    %2059 = vmatprep.subr.mxu0 0.0
    %2060 = vmatpush1.msra.mxu0 0.0
    %2061 = vmatprep.subr.mxu0 0.0
    %2062 = vmatpush1.msra.mxu0 0.0
    %2063 = vmatprep.subr.mxu0 0.0
    %2064 = vmatpush1.msra.mxu0 0.0
    %2065 = vmatprep.subr.mxu0 0.0
    %2066 = vmatpush1.msra.mxu0 0.0
    %2067 = vmatprep.subr.mxu0 0.0
    %2068 = vmatpush1.msra.mxu0 %v147
    %2069 = vmatprep.subr.mxu0 0.0
    %2070 = vmatpush1.msra.mxu0 %v146
    %2071 = vmatprep.subr.mxu0 0.0
    %2072 = vmatpush1.msra.mxu0 %v145
    %2073 = vmatprep.subr.mxu0 0.0
    %2074 = vmatpush1.msra.mxu0 %v144
    %2075 = vmatprep.subr.mxu0 0.0
    %2076 = vmatpush2.msra.mxu0 0.0
    %2077 = vmatprep.subr.mxu0 0.0
    %2078 = vmatpush2.msra.mxu0 0.0
    %2079 = vmatprep.subr.mxu0 0.0
    %2080 = vmatpush2.msra.mxu0 0.0
    %2081 = vmatprep.subr.mxu0 0.0
    %2082 = vmatpush2.msra.mxu0 0.0
    %2083 = vmatprep.subr.mxu0 0.0
    %2084 = vmatpush2.msra.mxu0 0.0
    %2085 = vmatprep.subr.mxu0 0.0
    %2086 = vmatpush2.msra.mxu0 0.0
    %2087 = vmatprep.subr.mxu0 0.0
    %2088 = vmatpush2.msra.mxu0 0.0
    %2089 = vmatprep.subr.mxu0 0.0
    %2090 = vmatpush2.msra.mxu0 0.0
    %2091 = vmatprep.subr.mxu0 0.0
    %2092 = vmatpush2.msra.mxu0 0.0
    %2093 = vmatprep.subr.mxu0 0.0
    %2094 = vmatpush2.msra.mxu0 0.0
    %2095 = vmatprep.subr.mxu0 0.0
    %2096 = vmatpush2.msra.mxu0 0.0
    %2097 = vmatprep.subr.mxu0 0.0
    %2098 = vmatpush2.msra.mxu0 0.0
    %2099 = vmatprep.subr.mxu0 0.0
    %2100 = vmatpush2.msra.mxu0 0.0
    %2101 = vmatprep.subr.mxu0 0.0
    %2102 = vmatpush2.msra.mxu0 0.0
    %2103 = vmatprep.subr.mxu0 0.0
    %2104 = vmatpush2.msra.mxu0 0.0
    %2105 = vmatprep.subr.mxu0 0.0
    %2106 = vmatpush2.msra.mxu0 0.0
    %2107 = vmatprep.mubr.f32.mxu0 0.0
    %2108 = vmatmul.mubr.f32.gmra.mxu0 %v1869
    %v2109 = vpop.f32.mrf.mxu0
    %v2110 = vadd.f32 0.0, %v2109
    %v2111 = vpop.f32.mrf.mxu0
    %2112 = vdwg.mxu0
    %v2113 = vadd.f32 %v283, %v2110
    %v2114 = vxor.u32 %v2113, 2147483648
    %v2115 = vmul.f32 %v2114, 1.442695
    %v2116 = vpow.pop %v2115
    %v2117 = vadd.f32 %v2116, 1.0
    %v2118 = vrcp.pop %v2117
    %v2119 = vmul.f32 1.0, %v2118
    %v2120 = vadd.f32 %v2110, %v442
    %2122 = vrot.lane.b32.xlu0 %v2120, 64
    %v2123 = vpop.permute.xlu0 %2122
    %v2125 = vmul.f32 %v2119, %v2123
    %2127 = vrot.lane.b32.xlu0 %v2125, 64
    %v2128 = vpop.permute.xlu0 %2127
    %v2130 = vadd.f32 %v283, %v2128
    %v2131 = vtanh.pop %v2130
    %v2132 = vsub.f32 1.0, %v2119
    %2134 = vrot.lane.b32.xlu0 %v2131, 96
    %v2135 = vpop.permute.xlu0 %2134
    %v2137 = vmul.f32 %v2132, %v2135
    %v2139 = vmul.f32 %v2119, %v1866
    %v2140 = vadd.f32 %v2137, %v2139
    %2142 = vrot.lane.b32.xlu0 %v2140, 96
    %v2143 = vpop.permute.xlu0 %2142
    %v2144 = vsel %vm289, %v2143, 0
    %2146 = vmatprep.subr.mxu0 0.0
    %2147 = vmatpush1.msra.mxu0 0.0
    %2148 = vmatprep.subr.mxu0 0.0
    %2149 = vmatpush1.msra.mxu0 0.0
    %2150 = vmatprep.subr.mxu0 0.0
    %2151 = vmatpush1.msra.mxu0 0.0
    %2152 = vmatprep.subr.mxu0 0.0
    %2153 = vmatpush1.msra.mxu0 0.0
    %2154 = vmatprep.subr.mxu0 0.0
    %2155 = vmatpush1.msra.mxu0 0.0
    %2156 = vmatprep.subr.mxu0 0.0
    %2157 = vmatpush1.msra.mxu0 0.0
    %2158 = vmatprep.subr.mxu0 0.0
    %2159 = vmatpush1.msra.mxu0 0.0
    %2160 = vmatprep.subr.mxu0 0.0
    %2161 = vmatpush1.msra.mxu0 0.0
    %2162 = vmatprep.subr.mxu0 0.0
    %2163 = vmatpush1.msra.mxu0 0.0
    %2164 = vmatprep.subr.mxu0 0.0
    %2165 = vmatpush1.msra.mxu0 0.0
    %2166 = vmatprep.subr.mxu0 0.0
    %2167 = vmatpush1.msra.mxu0 0.0
    %2168 = vmatprep.subr.mxu0 0.0
    %2169 = vmatpush1.msra.mxu0 0.0
    %2170 = vmatprep.subr.mxu0 0.0
    %2171 = vmatpush1.msra.mxu0 %v151
    %2172 = vmatprep.subr.mxu0 0.0
    %2173 = vmatpush1.msra.mxu0 %v150
    %2174 = vmatprep.subr.mxu0 0.0
    %2175 = vmatpush1.msra.mxu0 %v149
    %2176 = vmatprep.subr.mxu0 0.0
    %2177 = vmatpush1.msra.mxu0 %v148
    %2178 = vmatprep.subr.mxu0 0.0
    %2179 = vmatpush2.msra.mxu0 0.0
    %2180 = vmatprep.subr.mxu0 0.0
    %2181 = vmatpush2.msra.mxu0 0.0
    %2182 = vmatprep.subr.mxu0 0.0
    %2183 = vmatpush2.msra.mxu0 0.0
    %2184 = vmatprep.subr.mxu0 0.0
    %2185 = vmatpush2.msra.mxu0 0.0
    %2186 = vmatprep.subr.mxu0 0.0
    %2187 = vmatpush2.msra.mxu0 0.0
    %2188 = vmatprep.subr.mxu0 0.0
    %2189 = vmatpush2.msra.mxu0 0.0
    %2190 = vmatprep.subr.mxu0 0.0
    %2191 = vmatpush2.msra.mxu0 0.0
    %2192 = vmatprep.subr.mxu0 0.0
    %2193 = vmatpush2.msra.mxu0 0.0
    %2194 = vmatprep.subr.mxu0 0.0
    %2195 = vmatpush2.msra.mxu0 0.0
    %2196 = vmatprep.subr.mxu0 0.0
    %2197 = vmatpush2.msra.mxu0 0.0
    %2198 = vmatprep.subr.mxu0 0.0
    %2199 = vmatpush2.msra.mxu0 0.0
    %2200 = vmatprep.subr.mxu0 0.0
    %2201 = vmatpush2.msra.mxu0 0.0
    %2202 = vmatprep.subr.mxu0 0.0
    %2203 = vmatpush2.msra.mxu0 0.0
    %2204 = vmatprep.subr.mxu0 0.0
    %2205 = vmatpush2.msra.mxu0 0.0
    %2206 = vmatprep.subr.mxu0 0.0
    %2207 = vmatpush2.msra.mxu0 0.0
    %2208 = vmatprep.subr.mxu0 0.0
    %2209 = vmatpush2.msra.mxu0 0.0
    %2210 = vmatprep.mubr.f32.mxu0 0.0
    %2211 = vmatmul.mubr.f32.gmra.mxu0 %v2144
    %v2212 = vpop.f32.mrf.mxu0
    %v2213 = vadd.f32 0.0, %v2212
    %v2214 = vpop.f32.mrf.mxu0
    %2215 = vdwg.mxu0
    %v2216 = vadd.f32 %v2213, %v2040
    %v2217 = vxor.u32 %v2216, 2147483648
    %v2218 = vmul.f32 %v2217, 1.442695
    %v2219 = vpow.pop %v2218
    %v2220 = vadd.f32 %v2219, 1.0
    %v2221 = vrcp.pop %v2220
    %v2222 = vmul.f32 1.0, %v2221
    %v2223 = vadd.f32 %v2213, %v550
    %2225 = vrot.lane.b32.xlu0 %v2040, 64
    %v2226 = vpop.permute.xlu0 %2225
    %v2228 = vmul.f32 %v2222, %v2226
    %2230 = vrot.lane.b32.xlu0 %v2228, 64
    %v2231 = vpop.permute.xlu0 %2230
    %v2233 = vadd.f32 %v2223, %v2231
    %v2234 = vtanh.pop %v2233
    %v2235 = vsub.f32 1.0, %v2222
    %2237 = vrot.lane.b32.xlu0 %v2234, 96
    %v2238 = vpop.permute.xlu0 %2237
    %v2240 = vmul.f32 %v2235, %v2238
    %v2241 = vmul.f32 %v2222, %v1967
    %v2242 = vadd.f32 %v2240, %v2241
    %2244 = vrot.lane.b32.xlu0 %v2242, 96
    %v2245 = vpop.permute.xlu0 %2244
    %v2246 = vsel %vm289, %v2245, 0
    %2248 = vmatprep.subr.mxu0 0.0
    %2249 = vmatpush1.msra.mxu0 0.0
    %2250 = vmatprep.subr.mxu0 0.0
    %2251 = vmatpush1.msra.mxu0 0.0
    %2252 = vmatprep.subr.mxu0 0.0
    %2253 = vmatpush1.msra.mxu0 0.0
    %2254 = vmatprep.subr.mxu0 0.0
    %2255 = vmatpush1.msra.mxu0 0.0
    %2256 = vmatprep.subr.mxu0 0.0
    %2257 = vmatpush1.msra.mxu0 0.0
    %2258 = vmatprep.subr.mxu0 0.0
    %2259 = vmatpush1.msra.mxu0 0.0
    %2260 = vmatprep.subr.mxu0 0.0
    %2261 = vmatpush1.msra.mxu0 0.0
    %2262 = vmatprep.subr.mxu0 0.0
    %2263 = vmatpush1.msra.mxu0 0.0
    %2264 = vmatprep.subr.mxu0 0.0
    %2265 = vmatpush1.msra.mxu0 0.0
    %2266 = vmatprep.subr.mxu0 0.0
    %2267 = vmatpush1.msra.mxu0 0.0
    %2268 = vmatprep.subr.mxu0 0.0
    %2269 = vmatpush1.msra.mxu0 0.0
    %2270 = vmatprep.subr.mxu0 0.0
    %2271 = vmatpush1.msra.mxu0 0.0
    %2272 = vmatprep.subr.mxu0 0.0
    %2273 = vmatpush1.msra.mxu0 %v155
    %2274 = vmatprep.subr.mxu0 0.0
    %2275 = vmatpush1.msra.mxu0 %v154
    %2276 = vmatprep.subr.mxu0 0.0
    %2277 = vmatpush1.msra.mxu0 %v153
    %2278 = vmatprep.subr.mxu0 0.0
    %2279 = vmatpush1.msra.mxu0 %v152
    %2280 = vmatprep.subr.mxu0 0.0
    %2281 = vmatpush2.msra.mxu0 0.0
    %2282 = vmatprep.subr.mxu0 0.0
    %2283 = vmatpush2.msra.mxu0 0.0
    %2284 = vmatprep.subr.mxu0 0.0
    %2285 = vmatpush2.msra.mxu0 0.0
    %2286 = vmatprep.subr.mxu0 0.0
    %2287 = vmatpush2.msra.mxu0 0.0
    %2288 = vmatprep.subr.mxu0 0.0
    %2289 = vmatpush2.msra.mxu0 0.0
    %2290 = vmatprep.subr.mxu0 0.0
    %2291 = vmatpush2.msra.mxu0 0.0
    %2292 = vmatprep.subr.mxu0 0.0
    %2293 = vmatpush2.msra.mxu0 0.0
    %2294 = vmatprep.subr.mxu0 0.0
    %2295 = vmatpush2.msra.mxu0 0.0
    %2296 = vmatprep.subr.mxu0 0.0
    %2297 = vmatpush2.msra.mxu0 0.0
    %2298 = vmatprep.subr.mxu0 0.0
    %2299 = vmatpush2.msra.mxu0 0.0
    %2300 = vmatprep.subr.mxu0 0.0
    %2301 = vmatpush2.msra.mxu0 0.0
    %2302 = vmatprep.subr.mxu0 0.0
    %2303 = vmatpush2.msra.mxu0 0.0
    %2304 = vmatprep.subr.mxu0 0.0
    %2305 = vmatpush2.msra.mxu0 0.0
    %2306 = vmatprep.subr.mxu0 0.0
    %2307 = vmatpush2.msra.mxu0 0.0
    %2308 = vmatprep.subr.mxu0 0.0
    %2309 = vmatpush2.msra.mxu0 0.0
    %2310 = vmatprep.subr.mxu0 0.0
    %2311 = vmatpush2.msra.mxu0 0.0
    %2312 = vmatprep.mubr.f32.mxu0 0.0
    %2313 = vmatmul.mubr.f32.gmra.mxu0 %v2246
    %v2314 = vpop.f32.mrf.mxu0
    %v2315 = vadd.f32 %v173, %v2314
    %v2316 = vpop.f32.mrf.mxu0
    %2317 = vdwg.mxu0
    %2318 = vmatprep.subr.mxu0 0.0
    %2319 = vmatpush1.msra.mxu0 0.0
    %2320 = vmatprep.subr.mxu0 0.0
    %2321 = vmatpush1.msra.mxu0 0.0
    %2322 = vmatprep.subr.mxu0 0.0
    %2323 = vmatpush1.msra.mxu0 0.0
    %2324 = vmatprep.subr.mxu0 0.0
    %2325 = vmatpush1.msra.mxu0 0.0
    %2326 = vmatprep.subr.mxu0 0.0
    %2327 = vmatpush1.msra.mxu0 0.0
    %2328 = vmatprep.subr.mxu0 0.0
    %2329 = vmatpush1.msra.mxu0 0.0
    %2330 = vmatprep.subr.mxu0 0.0
    %2331 = vmatpush1.msra.mxu0 0.0
    %2332 = vmatprep.subr.mxu0 0.0
    %2333 = vmatpush1.msra.mxu0 0.0
    %2334 = vmatprep.subr.mxu0 0.0
    %2335 = vmatpush1.msra.mxu0 0.0
    %2336 = vmatprep.subr.mxu0 0.0
    %2337 = vmatpush1.msra.mxu0 0.0
    %2338 = vmatprep.subr.mxu0 0.0
    %2339 = vmatpush1.msra.mxu0 0.0
    %2340 = vmatprep.subr.mxu0 0.0
    %2341 = vmatpush1.msra.mxu0 0.0
    %2342 = vmatprep.subr.mxu0 0.0
    %2343 = vmatpush1.msra.mxu0 %v147
    %2344 = vmatprep.subr.mxu0 0.0
    %2345 = vmatpush1.msra.mxu0 %v146
    %2346 = vmatprep.subr.mxu0 0.0
    %2347 = vmatpush1.msra.mxu0 %v145
    %2348 = vmatprep.subr.mxu0 0.0
    %2349 = vmatpush1.msra.mxu0 %v144
    %2350 = vmatprep.subr.mxu0 0.0
    %2351 = vmatpush2.msra.mxu0 0.0
    %2352 = vmatprep.subr.mxu0 0.0
    %2353 = vmatpush2.msra.mxu0 0.0
    %2354 = vmatprep.subr.mxu0 0.0
    %2355 = vmatpush2.msra.mxu0 0.0
    %2356 = vmatprep.subr.mxu0 0.0
    %2357 = vmatpush2.msra.mxu0 0.0
    %2358 = vmatprep.subr.mxu0 0.0
    %2359 = vmatpush2.msra.mxu0 0.0
    %2360 = vmatprep.subr.mxu0 0.0
    %2361 = vmatpush2.msra.mxu0 0.0
    %2362 = vmatprep.subr.mxu0 0.0
    %2363 = vmatpush2.msra.mxu0 0.0
    %2364 = vmatprep.subr.mxu0 0.0
    %2365 = vmatpush2.msra.mxu0 0.0
    %2366 = vmatprep.subr.mxu0 0.0
    %2367 = vmatpush2.msra.mxu0 0.0
    %2368 = vmatprep.subr.mxu0 0.0
    %2369 = vmatpush2.msra.mxu0 0.0
    %2370 = vmatprep.subr.mxu0 0.0
    %2371 = vmatpush2.msra.mxu0 0.0
    %2372 = vmatprep.subr.mxu0 0.0
    %2373 = vmatpush2.msra.mxu0 0.0
    %2374 = vmatprep.subr.mxu0 0.0
    %2375 = vmatpush2.msra.mxu0 0.0
    %2376 = vmatprep.subr.mxu0 0.0
    %2377 = vmatpush2.msra.mxu0 0.0
    %2378 = vmatprep.subr.mxu0 0.0
    %2379 = vmatpush2.msra.mxu0 0.0
    %2380 = vmatprep.subr.mxu0 0.0
    %2381 = vmatpush2.msra.mxu0 0.0
    %2382 = vmatprep.mubr.f32.mxu0 0.0
    %2383 = vmatmul.mubr.f32.gmra.mxu0 %v2144
    %v2384 = vpop.f32.mrf.mxu0
    %v2385 = vadd.f32 0.0, %v2384
    %v2386 = vpop.f32.mrf.mxu0
    %2387 = vdwg.mxu0
    %v2389 = vrot.slane %v2385, 4
    %v2391 = vadd.f32 %v283, %v2389
    %v2392 = vxor.u32 %v2391, 2147483648
    %v2393 = vmul.f32 %v2392, 1.442695
    %v2394 = vpow.pop %v2393
    %v2395 = vadd.f32 %v2394, 1.0
    %v2396 = vrcp.pop %v2395
    %v2397 = vmul.f32 1.0, %v2396
    %v2398 = vadd.f32 %v2385, %v442
    %v2400 = vrot.slane %v2398, 4
    %2401 = vrot.lane.b32.xlu0 %v2400, 64
    %v2402 = vpop.permute.xlu0 %2401
    %v2404 = vmul.f32 %v2397, %v2402
    %2406 = vrot.lane.b32.xlu0 %v2404, 64
    %v2407 = vpop.permute.xlu0 %2406
    %v2409 = vadd.f32 %v283, %v2407
    %v2410 = vtanh.pop %v2409
    %v2411 = vsub.f32 1.0, %v2397
    %2413 = vrot.lane.b32.xlu0 %v2410, 96
    %v2414 = vpop.permute.xlu0 %2413
    %v2416 = vmul.f32 %v2411, %v2414
    %v2417 = vrot.slane %v2140, 4
    %v2419 = vmul.f32 %v2397, %v2417
    %v2420 = vadd.f32 %v2416, %v2419
    %v2422 = vrot.slane %v2420, 4
    %2423 = vrot.lane.b32.xlu0 %v2422, 96
    %v2424 = vpop.permute.xlu0 %2423
    %v2425 = vsel %vm289, %v2424, 0
    %2427 = vmatprep.subr.mxu0 0.0
    %2428 = vmatpush1.msra.mxu0 0.0
    %2429 = vmatprep.subr.mxu0 0.0
    %2430 = vmatpush1.msra.mxu0 0.0
    %2431 = vmatprep.subr.mxu0 0.0
    %2432 = vmatpush1.msra.mxu0 0.0
    %2433 = vmatprep.subr.mxu0 0.0
    %2434 = vmatpush1.msra.mxu0 0.0
    %2435 = vmatprep.subr.mxu0 0.0
    %2436 = vmatpush1.msra.mxu0 0.0
    %2437 = vmatprep.subr.mxu0 0.0
    %2438 = vmatpush1.msra.mxu0 0.0
    %2439 = vmatprep.subr.mxu0 0.0
    %2440 = vmatpush1.msra.mxu0 0.0
    %2441 = vmatprep.subr.mxu0 0.0
    %2442 = vmatpush1.msra.mxu0 0.0
    %2443 = vmatprep.subr.mxu0 0.0
    %2444 = vmatpush1.msra.mxu0 0.0
    %2445 = vmatprep.subr.mxu0 0.0
    %2446 = vmatpush1.msra.mxu0 0.0
    %2447 = vmatprep.subr.mxu0 0.0
    %2448 = vmatpush1.msra.mxu0 0.0
    %2449 = vmatprep.subr.mxu0 0.0
    %2450 = vmatpush1.msra.mxu0 0.0
    %2451 = vmatprep.subr.mxu0 0.0
    %2452 = vmatpush1.msra.mxu0 %v151
    %2453 = vmatprep.subr.mxu0 0.0
    %2454 = vmatpush1.msra.mxu0 %v150
    %2455 = vmatprep.subr.mxu0 0.0
    %2456 = vmatpush1.msra.mxu0 %v149
    %2457 = vmatprep.subr.mxu0 0.0
    %2458 = vmatpush1.msra.mxu0 %v148
    %2459 = vmatprep.subr.mxu0 0.0
    %2460 = vmatpush2.msra.mxu0 0.0
    %2461 = vmatprep.subr.mxu0 0.0
    %2462 = vmatpush2.msra.mxu0 0.0
    %2463 = vmatprep.subr.mxu0 0.0
    %2464 = vmatpush2.msra.mxu0 0.0
    %2465 = vmatprep.subr.mxu0 0.0
    %2466 = vmatpush2.msra.mxu0 0.0
    %2467 = vmatprep.subr.mxu0 0.0
    %2468 = vmatpush2.msra.mxu0 0.0
    %2469 = vmatprep.subr.mxu0 0.0
    %2470 = vmatpush2.msra.mxu0 0.0
    %2471 = vmatprep.subr.mxu0 0.0
    %2472 = vmatpush2.msra.mxu0 0.0
    %2473 = vmatprep.subr.mxu0 0.0
    %2474 = vmatpush2.msra.mxu0 0.0
    %2475 = vmatprep.subr.mxu0 0.0
    %2476 = vmatpush2.msra.mxu0 0.0
    %2477 = vmatprep.subr.mxu0 0.0
    %2478 = vmatpush2.msra.mxu0 0.0
    %2479 = vmatprep.subr.mxu0 0.0
    %2480 = vmatpush2.msra.mxu0 0.0
    %2481 = vmatprep.subr.mxu0 0.0
    %2482 = vmatpush2.msra.mxu0 0.0
    %2483 = vmatprep.subr.mxu0 0.0
    %2484 = vmatpush2.msra.mxu0 0.0
    %2485 = vmatprep.subr.mxu0 0.0
    %2486 = vmatpush2.msra.mxu0 0.0
    %2487 = vmatprep.subr.mxu0 0.0
    %2488 = vmatpush2.msra.mxu0 0.0
    %2489 = vmatprep.subr.mxu0 0.0
    %2490 = vmatpush2.msra.mxu0 0.0
    %2491 = vmatprep.mubr.f32.mxu0 0.0
    %2492 = vmatmul.mubr.f32.gmra.mxu0 %v2425
    %v2493 = vpop.f32.mrf.mxu0
    %v2494 = vadd.f32 0.0, %v2493
    %v2495 = vpop.f32.mrf.mxu0
    %2496 = vdwg.mxu0
    %v2497 = vadd.f32 %v2494, %v2315
    %v2498 = vxor.u32 %v2497, 2147483648
    %v2499 = vmul.f32 %v2498, 1.442695
    %v2500 = vpow.pop %v2499
    %v2501 = vadd.f32 %v2500, 1.0
    %v2502 = vrcp.pop %v2501
    %v2503 = vmul.f32 1.0, %v2502
    %v2504 = vadd.f32 %v2494, %v550
    %2506 = vrot.lane.b32.xlu0 %v2315, 64
    %v2507 = vpop.permute.xlu0 %2506
    %v2509 = vmul.f32 %v2503, %v2507
    %2511 = vrot.lane.b32.xlu0 %v2509, 64
    %v2512 = vpop.permute.xlu0 %2511
    %v2514 = vadd.f32 %v2504, %v2512
    %v2515 = vtanh.pop %v2514
    %v2516 = vsub.f32 1.0, %v2503
    %2518 = vrot.lane.b32.xlu0 %v2515, 96
    %v2519 = vpop.permute.xlu0 %2518
    %v2521 = vmul.f32 %v2516, %v2519
    %v2522 = vmul.f32 %v2503, %v2242
    %v2523 = vadd.f32 %v2521, %v2522
    %v2526 = vrot.slane %v2523, 4
    %vm2528 = vcmask 1043456
    %v2529 = vsel %vm2528, %v2422, %v2526
    %2531 = vrot.lane.b32.xlu0 %v2529, 96
    %v2532 = vpop.permute.xlu0 %2531
    %2534 = vst.msk [vmem:[#allocation17] sm:$0xff] %vm289, %v2532
    %v2535 = vrot.slane %v855, 4
    %v2537 = vrot.slane %v1411, 4
    %v2539 = vrot.slane %v1967, 4
    %v2541 = vsel %vm2528, %v574, %v2535
    %v2542 = vsel %vm2528, %v1130, %v2537
    %v2543 = vsel %vm2528, %v1686, %v2539
    %v2544 = vsel %vm2528, %v2242, %v2526
    %v2545 = vld [vmem:[%s10] sm:$0xff]
    %v2546 = vld [vmem:[%s10 + $0x8] sm:$0xff]
    %v2547 = vld [vmem:[%s10 + $0x10] sm:$0xff]
    %v2548 = vld [vmem:[%s10 + $0x18] sm:$0xff]
    %v2549 = vld [vmem:[%s11] sm:$0x1]
    %v2551 = vlaneseq
    %v2552 = vshrl.u32 %v2551, 7
    %v2553 = vsub.s32 0, %v2552
    %v2554 = vrot.slane %v2549, %v2553
    %2560 = vrot.lane.b32.xlu0 %v2541, 96
    %v2561 = vpop.permute.xlu0 %2560
    %2562 = vrot.lane.b32.xlu0 %v2542, 96
    %v2563 = vpop.permute.xlu0 %2562
    %2564 = vrot.lane.b32.xlu0 %v2543, 96
    %v2565 = vpop.permute.xlu0 %2564
    %2566 = vrot.lane.b32.xlu0 %v2544, 96
    %v2567 = vpop.permute.xlu0 %2566
    %v2568 = vsel %vm289, %v2561, 0
    %v2570 = vsel %vm289, %v2563, 0
    %v2572 = vsel %vm289, %v2565, 0
    %v2574 = vsel %vm289, %v2567, 0
    %2576 = vmatprep.subr.mxu0 0.0
    %2577 = vmatpush1.msra.mxu0 0.0
    %2578 = vmatprep.subr.mxu0 0.0
    %2579 = vmatpush1.msra.mxu0 0.0
    %2580 = vmatprep.subr.mxu0 0.0
    %2581 = vmatpush1.msra.mxu0 0.0
    %2582 = vmatprep.subr.mxu0 0.0
    %2583 = vmatpush1.msra.mxu0 0.0
    %2584 = vmatprep.subr.mxu0 0.0
    %2585 = vmatpush1.msra.mxu0 0.0
    %2586 = vmatprep.subr.mxu0 0.0
    %2587 = vmatpush1.msra.mxu0 0.0
    %2588 = vmatprep.subr.mxu0 0.0
    %2589 = vmatpush1.msra.mxu0 0.0
    %2590 = vmatprep.subr.mxu0 0.0
    %2591 = vmatpush1.msra.mxu0 0.0
    %2592 = vmatprep.subr.mxu0 0.0
    %2593 = vmatpush1.msra.mxu0 0.0
    %2594 = vmatprep.subr.mxu0 0.0
    %2595 = vmatpush1.msra.mxu0 0.0
    %2596 = vmatprep.subr.mxu0 0.0
    %2597 = vmatpush1.msra.mxu0 0.0
    %2598 = vmatprep.subr.mxu0 0.0
    %2599 = vmatpush1.msra.mxu0 0.0
    %2600 = vmatprep.subr.mxu0 0.0
    %2601 = vmatpush1.msra.mxu0 %v2548
    %2602 = vmatprep.subr.mxu0 0.0
    %2603 = vmatpush1.msra.mxu0 %v2547
    %2604 = vmatprep.subr.mxu0 0.0
    %2605 = vmatpush1.msra.mxu0 %v2546
    %2606 = vmatprep.subr.mxu0 0.0
    %2607 = vmatpush1.msra.mxu0 %v2545
    %2608 = vmatprep.subr.mxu0 0.0
    %2609 = vmatpush2.msra.mxu0 0.0
    %2610 = vmatprep.subr.mxu0 0.0
    %2611 = vmatpush2.msra.mxu0 0.0
    %2612 = vmatprep.subr.mxu0 0.0
    %2613 = vmatpush2.msra.mxu0 0.0
    %2614 = vmatprep.subr.mxu0 0.0
    %2615 = vmatpush2.msra.mxu0 0.0
    %2616 = vmatprep.subr.mxu0 0.0
    %2617 = vmatpush2.msra.mxu0 0.0
    %2618 = vmatprep.subr.mxu0 0.0
    %2619 = vmatpush2.msra.mxu0 0.0
    %2620 = vmatprep.subr.mxu0 0.0
    %2621 = vmatpush2.msra.mxu0 0.0
    %2622 = vmatprep.subr.mxu0 0.0
    %2623 = vmatpush2.msra.mxu0 0.0
    %2624 = vmatprep.subr.mxu0 0.0
    %2625 = vmatpush2.msra.mxu0 0.0
    %2626 = vmatprep.subr.mxu0 0.0
    %2627 = vmatpush2.msra.mxu0 0.0
    %2628 = vmatprep.subr.mxu0 0.0
    %2629 = vmatpush2.msra.mxu0 0.0
    %2630 = vmatprep.subr.mxu0 0.0
    %2631 = vmatpush2.msra.mxu0 0.0
    %2632 = vmatprep.subr.mxu0 0.0
    %2633 = vmatpush2.msra.mxu0 0.0
    %2634 = vmatprep.subr.mxu0 0.0
    %2635 = vmatpush2.msra.mxu0 0.0
    %2636 = vmatprep.subr.mxu0 0.0
    %2637 = vmatpush2.msra.mxu0 0.0
    %2638 = vmatprep.subr.mxu0 0.0
    %2639 = vmatpush2.msra.mxu0 0.0
    %2640 = vmatprep.mubr.f32.mxu0 0.0
    %2641 = vmatmul.mubr.f32.gmra.mxu0 %v2568
    %v2642 = vpop.f32.mrf.mxu0
    %v2643 = vadd.f32 %v2554, %v2642
    %v2644 = vpop.f32.mrf.mxu0
    %2645 = vmatprep.mubr.f32.mxu0 0.0
    %2646 = vmatmul.mubr.f32.gmra.mxu0 %v2570
    %v2647 = vpop.f32.mrf.mxu0
    %v2648 = vadd.f32 %v2554, %v2647
    %v2649 = vpop.f32.mrf.mxu0
    %2650 = vmatprep.mubr.f32.mxu0 0.0
    %2651 = vmatmul.mubr.f32.gmra.mxu0 %v2572
    %v2652 = vpop.f32.mrf.mxu0
    %v2653 = vadd.f32 %v2554, %v2652
    %v2654 = vpop.f32.mrf.mxu0
    %2655 = vmatprep.mubr.f32.mxu0 0.0
    %2656 = vmatmul.mubr.f32.gmra.mxu0 %v2574
    %v2657 = vpop.f32.mrf.mxu0
    %v2658 = vadd.f32 %v2554, %v2657
    %v2659 = vpop.f32.mrf.mxu0
    %2660 = vdwg.mxu0
    %v2661 = vtanh.pop %v2643
    %v2662 = vtanh.pop %v2648
    %v2663 = vtanh.pop %v2653
    %v2664 = vtanh.pop %v2658
    %2665 = vst [vmem:[#allocation16] sm:$0xff] %v2661
    %2666 = vst [vmem:[#allocation16 + $0x8] sm:$0xff] %v2662
    %2667 = vst [vmem:[#allocation16 + $0x10] sm:$0xff] %v2663
    %2668 = vst [vmem:[#allocation16 + $0x18] sm:$0xff] %v2664
    // Predicated region
    $region82: #{tpu_custom_call.1} parent=1 // pred_check
      _
    $region83: #{tpu_custom_call.1} parent=1 // pred_check_branch
      %2670 = sbr.rel (0) target = $region85
    $region84: #{tpu_custom_call.1} parent=1 // pred_region
      %s2672 = ssub.s32 512, 512
      %2673 = vsyncadd [#allocation4], %s2672
      %s2674 = sshll.u32 [#allocation16], 4
      %s2675 = int_to_ptr.vmem [resolvable:$true] %s2674
      %2680 = dma.vmem_to_hbm [thread:$0]  %s2675, 512, %s12, [#allocation4], 128, 128, 8
    $region85: #{tpu_custom_call.1} parent=1 // pred_fallthru
      _
    // Predicated region
    $region86: #{tpu_custom_call.1} parent=1 // pred_check
      _
    $region87: #{tpu_custom_call.1} parent=1 // pred_check_branch
      %2682 = sbr.rel (0) target = $region89
    $region88: #{tpu_custom_call.1} parent=1 // pred_region
      %s2684 = ssub.s32 128, 128
      %2685 = vsyncadd [#allocation18], %s2684
      %s2687 = sshll.u32 [#allocation17], 4
      %s2688 = int_to_ptr.vmem [resolvable:$true] %s2687
      %2690 = dma.vmem_to_hbm [thread:$0]  %s2688, 128, %s13, [#allocation18]
    $region89: #{tpu_custom_call.1} parent=1 // pred_fallthru
      _
    // Predicated region
    $region90: #{tpu_custom_call.1} parent=1 // pred_check
      _
    $region91: #{tpu_custom_call.1} parent=1 // pred_check_branch
      %2692 = sbr.rel (0) target = $region93
    $region92: #{tpu_custom_call.1} parent=1 // pred_region
      %2693 = dma.done [#allocation4], 512
    $region93: #{tpu_custom_call.1} parent=1 // pred_fallthru
      _
    // Predicated region
    $region94: #{tpu_custom_call.1} parent=1 // pred_check
      _
    $region95: #{tpu_custom_call.1} parent=1 // pred_check_branch
      %2695 = sbr.rel (0) target = $region97
    $region96: #{tpu_custom_call.1} parent=1 // pred_region
      %2696 = dma.done [#allocation18], 128
    $region97: #{tpu_custom_call.1} parent=1 // pred_fallthru
      _
    %2697 = vsyncpa [#allocation3], 1
    %2698 = vsyncpa [#allocation6], 1
    %2699 = vsyncpa [#allocation9], 1
    %2700 = vsyncpa [#allocation12], 1
    %2701 = vsyncpa [#allocation15], 1
    %2702 = vsyncpa [#allocation4], 1
    %2703 = vsyncpa [#allocation18], 1

</llo_original>
